<compile_context>
chip_gen: v7x
topology: tpu7x:2x2x1
jax: 0.10.0
libtpu: 0.0.40
codegen_flags: <defaults>
</compile_context>

<pallas_src>
import jax
import jax.numpy as jnp
import numpy as np
from jax import lax
from jax.experimental import pallas as pl
from jax.experimental.pallas import tpu as pltpu

EPI_DIM = 22     # number of epigenetic features
SEQ_LEN = 23     # target sequence length
NEG_INF = -1e30  # MaxPool1d padding value (PyTorch pads max-pool windows with -inf)
_BN_EPS = 1e-5   # PyTorch BatchNorm1d default eps

# Per-layer output lengths (valid convs).
_L1 = 11   # conv1: (23 - 3)//2 + 1
_L2 = 9    # conv2:  11 - 3 + 1
_L3 = 4    # conv3: (9 - 3)//2 + 1
_L4 = 2    # conv4:  4 - 3 + 1

_XDIM = EPI_DIM * SEQ_LEN   # 506  (channel-major flattened input)
_H1 = _L1 * 32              # 352
_H2 = _L2 * 64              # 576
_H3 = _L3 * 128             # 512


def _round_up(x, m):
    return ((x + m - 1) // m) * m


def _leaky_relu(v, alpha=0.2):
    return jnp.where(v > 0, v, alpha * v)


# --------------------------------- the kernel ---------------------------------

def _cnn_kernel(x_ref,
                w1_ref, b1_ref, w2_ref, b2_ref, w3_ref, b3_ref,
                w4_ref, b4_ref, w5_ref, b5_ref, wl_ref, bl_ref,
                out_ref,
                h1_ref, h2_ref, h3_ref, h4_ref):
    """One grid step processes one block of B samples.

    x_ref : (B, 506) float32   — native channel-major flattening x[:, c*23 + l]
    h1/h2/h3 scratch: lane-packed bf16 (B, L*C) activation slabs
    h4 scratch: (B, 256) f32 accumulator for conv4 position 0
    """

    def dot(a, w):  # bf16 x bf16 operands, float32 accumulation on the MXU
        return jnp.dot(a, w, preferred_element_type=jnp.float32)

    # EncodeLayer1: BatchNorm1d(22) [folded] + Conv1d(22->32, k=3, s=2)
    #               [+ GaussianNoise/Dropout = id] + LeakyReLU(0.2).
    # One block-banded matmul over all 11 output positions: (B,506) @ (506, 11*32).
    x_bf = x_ref[...].astype(jnp.bfloat16)
    h1_ref[...] = _leaky_relu(dot(x_bf, w1_ref[...]) + b1_ref[...]).astype(jnp.bfloat16)

    # EncodeLayer2: Conv1d(32->64, k=3, s=1) + LeakyReLU(0.2).
    # Tap-concat: window for output position l is lanes [32*l, 32*l + 96).
    w2 = w2_ref[...]
    b2 = b2_ref[...]
    for l in range(_L2):
        a = h1_ref[:, 32 * l: 32 * l + 96]
        h2_ref[:, 64 * l: 64 * l + 64] = _leaky_relu(dot(a, w2) + b2).astype(jnp.bfloat16)

    # EncodeLayer3: Conv1d(64->128, k=3, s=2) + BatchNorm1d(128) [folded] + LeakyReLU(0.2).
    # Stride-2 window for output position l is lanes [128*l, 128*l + 192) (128-aligned).
    w3 = w3_ref[...]
    b3 = b3_ref[...]
    for l in range(_L3):
        a = h2_ref[:, 128 * l: 128 * l + 192]
        h3_ref[:, 128 * l: 128 * l + 128] = _leaky_relu(dot(a, w3) + b3).astype(jnp.bfloat16)

    # conjoinedLayer1: Conv1d(128->256, k=3, s=1) -> length 2; MaxPool1d(3,1,pad=1) on a
    # length-2 sequence makes both positions equal max(row0,row1); then ReLU.
    w4 = w4_ref[...]
    h4_ref[...] = dot(h3_ref[:, 0:384], w4)          # position 0 (pre-bias), to VMEM
    acc1 = dot(h3_ref[:, 128:512], w4)               # position 1 (pre-bias)
    m = jnp.maximum(jnp.maximum(h4_ref[...], acc1) + b4_ref[...], 0.0)

    # conjoinedLayer2: Conv1d(256->512, k=2, s=1) on two identical rows == m @ (w5[0]+w5[1])
    # (taps pre-summed at prep time); MaxPool1d(3,1,pad=1) on length 1 is the identity; ReLU.
    h5 = jnp.maximum(dot(m.astype(jnp.bfloat16), w5_ref[...]) + b5_ref[...], 0.0)

    # conjoinedLinear: Linear(512 -> 1); flatten of (512, L=1) is the channel vector.
    # Done on the VPU/XLU (elementwise mul + lane reduction) — an N=1 MXU pass is wasted.
    y = jnp.sum(h5 * wl_ref[...], axis=-1, keepdims=True) + bl_ref[...]
    out_ref[...] = y.astype(out_ref.dtype)


# --------------------------------- the wrapper --------------------------------

def convnet_forward(x_ncl, prepared, *, block_batch=512):
    """x_ncl: (N, 22, 23) float32 (PyTorch NCL layout).  Returns (N, 1) float32."""
    n = x_ncl.shape[0]

    # (N, 22, 23) -> (N, 506) channel-major flattening: a free bitcast reshape — no HBM
    # transpose pass.  The banded conv1 weight was built for exactly this layout.
    x_flat = x_ncl.reshape(n, _XDIM).astype(jnp.float32)

    # Batch block: multiple of 16, capped by the requested block size.
    bb = min(_round_up(block_batch, 16), _round_up(n, 16))
    # Prefer >= 2 grid steps when the batch is big enough so the "parallel" batch axis can
    # shard across both TensorCores on v7x.
    if n >= 256 and _round_up(n, bb) // bb < 2:
        bb = _round_up((n + 1) // 2, 16)
    n_pad = _round_up(n, bb)
    if n_pad != n:
        x_flat = jnp.pad(x_flat, ((0, n_pad - n), (0, 0)))

    # Weights: whole array resident in VMEM, constant block index.
    param_specs = [pl.BlockSpec(p.shape, lambda i, _nd=p.ndim: (0,) * _nd) for p in prepared]
    in_specs = [pl.BlockSpec((bb, _XDIM), lambda i: (i, 0))] + param_specs

    out = pl.pallas_call(
        _cnn_kernel,
        out_shape=jax.ShapeDtypeStruct((n_pad, 1), jnp.float32),
        grid=(n_pad // bb,),
        in_specs=in_specs,
        # Per-grid-block output (no shared resident block) -> safe with "parallel"
        # semantics, which lets the grid shard across both TensorCores on v7x.
        out_specs=pl.BlockSpec((bb, 1), lambda i: (i, 0)),
        scratch_shapes=[
            pltpu.VMEM((bb, _H1), jnp.bfloat16),   # h1 lane-packed (B, 11*32)
            pltpu.VMEM((bb, _H2), jnp.bfloat16),   # h2 lane-packed (B, 9*64)
            pltpu.VMEM((bb, _H3), jnp.bfloat16),   # h3 lane-packed (B, 4*128)
            pltpu.VMEM((bb, 256), jnp.float32),    # conv4 position-0 f32 accumulator
        ],
        compiler_params=pltpu.CompilerParams(
            dimension_semantics=("parallel",)),
    )(x_flat, *prepared)
    return out[:n]


# --------------------------- parameters (PyTorch layouts) ----------------------

def init_raw_params(key):
    """Deterministic random parameters in the native PyTorch layouts (all float32)."""
    ks = jax.random.split(key, 20)

    def conv(kw, kb, co, ci, ksz):
        bound = 1.0 / np.sqrt(ci * ksz)
        w = jax.random.uniform(kw, (co, ci, ksz), jnp.float32, -bound, bound)
        b = jax.random.uniform(kb, (co,), jnp.float32, -bound, bound)
        return w, b

    def bn(kg, kb, km, kv, c):
        gamma = 1.0 + 0.1 * jax.random.normal(kg, (c,), jnp.float32)
        beta = 0.1 * jax.random.normal(kb, (c,), jnp.float32)
        rmean = 0.1 * jax.random.normal(km, (c,), jnp.float32)
        rvar = 1.0 + 0.1 * jnp.abs(jax.random.normal(kv, (c,), jnp.float32))
        return gamma, beta, rmean, rvar

    raw = {
        "bn1": bn(ks[0], ks[1], ks[2], ks[3], EPI_DIM),
        "conv1": conv(ks[4], ks[5], 32, EPI_DIM, 3),
        "conv2": conv(ks[6], ks[7], 64, 32, 3),
        "conv3": conv(ks[8], ks[9], 128, 64, 3),
        "bn3": bn(ks[10], ks[11], ks[12], ks[13], 128),
        "conv4": conv(ks[14], ks[15], 256, 128, 3),
        "conv5": conv(ks[16], ks[17], 512, 256, 2),
    }
    lb = 1.0 / np.sqrt(512)
    raw["linear"] = (jax.random.uniform(ks[18], (1, 512), jnp.float32, -lb, lb),
                     jax.random.uniform(ks[19], (1,), jnp.float32, -lb, lb))
    return raw


def _bn_scale_shift(bn_params):
    gamma, beta, rmean, rvar = bn_params
    scale = gamma / jnp.sqrt(rvar + _BN_EPS)
    shift = beta - rmean * scale
    return scale, shift


def prepare_params(raw):
    """Build kernel-layout parameters.

    * BN1 is folded into conv1; conv1 becomes a block-banded (506, 352) matrix built
      against the channel-major input flattening x[:, c*23 + l].
    * conv2/conv3/conv4 become tap-concatenated (K*Cin, Cout) matrices (im2col-in-K)
      matching the lane-packed (B, L*C) activation layout; BN3 folded into conv3.
    * conv5's two taps are pre-summed; the linear is a (1, 512) row for a VPU dot.
    """
    bf, f32 = jnp.bfloat16, jnp.float32

    def kic(w):  # (Co, Ci, K) -> (K, Ci, Co)
        return np.transpose(np.asarray(w, np.float32), (2, 1, 0))

    # ---- conv1 + BN1 folded -> block-banded (506, 352) ----
    s1 = np.asarray(_bn_scale_shift(raw["bn1"])[0], np.float32)
    t1 = np.asarray(_bn_scale_shift(raw["bn1"])[1], np.float32)
    w1 = np.asarray(raw["conv1"][0], np.float32)           # (32, 22, 3)
    b1 = np.asarray(raw["conv1"][1], np.float32)            # (32,)
    w1e = w1 * s1[None, :, None]                             # BN scale on input channels
    b1e = b1 + np.einsum("ock,c->o", w1, t1)                 # BN shift folded into bias

    W1 = np.zeros((_XDIM, _H1), np.float32)                  # (506, 352)
    for lo in range(_L1):
        for k in range(3):
            li = 2 * lo + k
            for c in range(EPI_DIM):
                W1[c * SEQ_LEN + li, lo * 32:(lo + 1) * 32] = w1e[:, c, k]
    b1_full = np.tile(b1e, _L1)[None, :]                     # (1, 352)

    # ---- conv2: tap-concat (96, 64) ----
    w2cat = kic(raw["conv2"][0]).reshape(3 * 32, 64)
    b2 = np.asarray(raw["conv2"][1], np.float32)[None, :]

    # ---- conv3 + BN3 folded: tap-concat (192, 128) ----
    s3 = np.asarray(_bn_scale_shift(raw["bn3"])[0], np.float32)
    t3 = np.asarray(_bn_scale_shift(raw["bn3"])[1], np.float32)
    w3 = np.asarray(raw["conv3"][0], np.float32) * s3[:, None, None]
    w3cat = kic(w3).reshape(3 * 64, 128)
    b3 = (np.asarray(raw["conv3"][1], np.float32) * s3 + t3)[None, :]

    # ---- conv4: tap-concat (384, 256) ----
    w4cat = kic(raw["conv4"][0]).reshape(3 * 128, 256)
    b4 = np.asarray(raw["conv4"][1], np.float32)[None, :]

    # ---- conv5: taps pre-summed (input rows identical after length-2 MaxPool) ----
    w5k = kic(raw["conv5"][0])                               # (2, 256, 512)
    w5s = w5k[0] + w5k[1]
    b5 = np.asarray(raw["conv5"][1], np.float32)[None, :]

    # ---- linear as a (1, 512) row (VPU dot) ----
    wl = np.asarray(raw["linear"][0], np.float32)            # (1, 512)
    bl = np.asarray(raw["linear"][1], np.float32).reshape(1, 1)

    return (jnp.asarray(W1, bf), jnp.asarray(b1_full, f32),
            jnp.asarray(w2cat, bf), jnp.asarray(b2, f32),
            jnp.asarray(w3cat, bf), jnp.asarray(b3, f32),
            jnp.asarray(w4cat, bf), jnp.asarray(b4, f32),
            jnp.asarray(w5s, bf), jnp.asarray(b5, f32),
            jnp.asarray(wl, f32), jnp.asarray(bl, f32))


# --------------------------- pure-JAX reference check --------------------------

def reference_forward(x_ncl, raw):
    """Pure-JAX float32 eval-mode reference using the *unfolded* parameters."""
    def kic(w_oik):
        return jnp.transpose(w_oik, (2, 1, 0))

    def conv(x_nlc, w_oik, b, stride):
        return lax.conv_general_dilated(
            x_nlc, kic(w_oik), (stride,), 'VALID',
            dimension_numbers=('NWC', 'WIO', 'NWC')) + b

    def maxpool3_pad1(x_nlc):
        n, l, c = x_nlc.shape
        pad = jnp.full((n, 1, c), NEG_INF, x_nlc.dtype)
        xp = jnp.concatenate([pad, x_nlc, pad], axis=1)
        return jnp.maximum(jnp.maximum(xp[:, 0:l], xp[:, 1:l + 1]), xp[:, 2:l + 2])

    lrelu = lambda v: jnp.where(v > 0, v, 0.2 * v)

    x = jnp.transpose(x_ncl, (0, 2, 1)).astype(jnp.float32)   # (N, L, C)
    s1, t1 = _bn_scale_shift(raw["bn1"])
    h = x * s1 + t1
    h = lrelu(conv(h, *raw["conv1"], 2))
    h = lrelu(conv(h, *raw["conv2"], 1))
    h = conv(h, *raw["conv3"], 2)
    s3, t3 = _bn_scale_shift(raw["bn3"])
    h = lrelu(h * s3 + t3)
    h = jnp.maximum(maxpool3_pad1(conv(h, *raw["conv4"], 1)), 0.0)
    h = jnp.maximum(maxpool3_pad1(conv(h, *raw["conv5"], 1)), 0.0)
    h = h.reshape(h.shape[0], -1)
    wl, bl = raw["linear"]
    return h @ wl.T + bl


# -------------------------------------- main -----------------------------------

if __name__ == "__main__":
    key = jax.random.PRNGKey(0)
    kx1, kx2, kp = jax.random.split(key, 3)

    raw = init_raw_params(kp)
    prepared = prepare_params(raw)

    # Tolerance: kernel uses bf16 MXU operands (f32 accumulation) vs a pure-f32 reference.
    RTOL = ATOL = 3e-2

    # Small correctness check (single grid block).
    n_small = 16
    x_small = jax.random.normal(kx1, (n_small, EPI_DIM, SEQ_LEN), jnp.float32)
    fwd_small = jax.jit(lambda x, p: convnet_forward(x, p))
    out_small = jax.block_until_ready(fwd_small(x_small, prepared))
    assert out_small.shape == (n_small, 1)
    np.testing.assert_allclose(np.asarray(out_small),
                               np.asarray(reference_forward(x_small, raw)),
                               rtol=RTOL, atol=ATOL)

    # Batched-block path: multiple grid steps + batch padding (600 not a multiple of 256).
    n_big = 600
    x_big = jax.random.normal(kx2, (n_big, EPI_DIM, SEQ_LEN), jnp.float32)
    fwd_big = jax.jit(lambda x, p: convnet_forward(x, p, block_batch=256))
    out_big = jax.block_until_ready(fwd_big(x_big, prepared))
    assert out_big.shape == (n_big, 1)
    np.testing.assert_allclose(np.asarray(out_big),
                               np.asarray(reference_forward(x_big, raw)),
                               rtol=RTOL, atol=ATOL)

    print("KERNEL_OK")
</pallas_src>

<mosaic_0001>
module attributes {stable_mosaic.version = 11 : i64} {
  func.func @_cnn_kernel(%arg0: i32, %arg1: memref<16x506xf32, #tpu.memory_space<vmem>>, %arg2: memref<506x352xbf16, #tpu.memory_space<vmem>>, %arg3: memref<1x352xf32, #tpu.memory_space<vmem>>, %arg4: memref<96x64xbf16, #tpu.memory_space<vmem>>, %arg5: memref<1x64xf32, #tpu.memory_space<vmem>>, %arg6: memref<192x128xbf16, #tpu.memory_space<vmem>>, %arg7: memref<1x128xf32, #tpu.memory_space<vmem>>, %arg8: memref<384x256xbf16, #tpu.memory_space<vmem>>, %arg9: memref<1x256xf32, #tpu.memory_space<vmem>>, %arg10: memref<256x512xbf16, #tpu.memory_space<vmem>>, %arg11: memref<1x512xf32, #tpu.memory_space<vmem>>, %arg12: memref<1x512xf32, #tpu.memory_space<vmem>>, %arg13: memref<1x1xf32, #tpu.memory_space<vmem>>, %arg14: memref<16x1xf32, #tpu.memory_space<vmem>>, %arg15: memref<16x352xbf16, #tpu.memory_space<vmem>>, %arg16: memref<16x576xbf16, #tpu.memory_space<vmem>>, %arg17: memref<16x512xbf16, #tpu.memory_space<vmem>>, %arg18: memref<16x256xf32, #tpu.memory_space<vmem>>) attributes {dimension_semantics = [#tpu.dimension_semantics<parallel>], iteration_bounds = array<i64: 1>, scalar_prefetch = 0 : i64, scratch_operands = 4 : i64, tpu.core_type = #tpu.core_type<tc>, window_params = [{transform_indices = @transform_0, window_bounds = array<i64: 16, 506>}, {pipeline_mode = #tpu.pipeline_mode<synchronous>, transform_indices = @transform_1, window_bounds = array<i64: 506, 352>}, {pipeline_mode = #tpu.pipeline_mode<synchronous>, transform_indices = @transform_2, window_bounds = array<i64: 1, 352>}, {pipeline_mode = #tpu.pipeline_mode<synchronous>, transform_indices = @transform_3, window_bounds = array<i64: 96, 64>}, {pipeline_mode = #tpu.pipeline_mode<synchronous>, transform_indices = @transform_4, window_bounds = array<i64: 1, 64>}, {pipeline_mode = #tpu.pipeline_mode<synchronous>, transform_indices = @transform_5, window_bounds = array<i64: 192, 128>}, {pipeline_mode = #tpu.pipeline_mode<synchronous>, transform_indices = @transform_6, window_bounds = array<i64: 1, 128>}, {pipeline_mode = #tpu.pipeline_mode<synchronous>, transform_indices = @transform_7, window_bounds = array<i64: 384, 256>}, {pipeline_mode = #tpu.pipeline_mode<synchronous>, transform_indices = @transform_8, window_bounds = array<i64: 1, 256>}, {pipeline_mode = #tpu.pipeline_mode<synchronous>, transform_indices = @transform_9, window_bounds = array<i64: 256, 512>}, {pipeline_mode = #tpu.pipeline_mode<synchronous>, transform_indices = @transform_10, window_bounds = array<i64: 1, 512>}, {pipeline_mode = #tpu.pipeline_mode<synchronous>, transform_indices = @transform_11, window_bounds = array<i64: 1, 512>}, {pipeline_mode = #tpu.pipeline_mode<synchronous>, transform_indices = @transform_12, window_bounds = array<i64: 1, 1>}, {transform_indices = @transform_13, window_bounds = array<i64: 16, 1>}]} {
    %c0 = arith.constant 0 : index
    %c0_0 = arith.constant 0 : index
    %0 = vector.load %arg1[%c0, %c0_0] : memref<16x506xf32, #tpu.memory_space<vmem>>, vector<16x506xf32>
    %1 = arith.truncf %0 : vector<16x506xf32> to vector<16x506xbf16>
    %c0_1 = arith.constant 0 : index
    %c0_2 = arith.constant 0 : index
    %2 = vector.load %arg2[%c0_1, %c0_2] : memref<506x352xbf16, #tpu.memory_space<vmem>>, vector<506x352xbf16>
    %cst = arith.constant dense<0.000000e+00> : vector<16x352xf32>
    %3 = tpu.matmul %1, %2, %cst {dimension_numbers = #tpu.dot_dimension_numbers<[1], [0], [0], [1], [0, 0, 1, 1], [], []>} : vector<16x506xbf16>, vector<506x352xbf16>, vector<16x352xf32> -> vector<16x352xf32>
    %c0_3 = arith.constant 0 : index
    %c0_4 = arith.constant 0 : index
    %4 = vector.load %arg3[%c0_3, %c0_4] : memref<1x352xf32, #tpu.memory_space<vmem>>, vector<1x352xf32>
    %5 = vector.broadcast %4 : vector<1x352xf32> to vector<16x352xf32>
    %6 = arith.addf %3, %5 : vector<16x352xf32>
    %cst_5 = arith.constant 0.000000e+00 : f32
    %7 = vector.broadcast %cst_5 : f32 to vector<16x352xf32>
    %8 = arith.cmpf ogt, %6, %7 : vector<16x352xf32>
    %cst_6 = arith.constant 2.000000e-01 : f32
    %9 = vector.broadcast %cst_6 : f32 to vector<16x352xf32>
    %10 = arith.mulf %9, %6 : vector<16x352xf32>
    %11 = arith.select %8, %6, %10 : vector<16x352xi1>, vector<16x352xf32>
    %12 = arith.truncf %11 : vector<16x352xf32> to vector<16x352xbf16>
    %c0_7 = arith.constant 0 : index
    %c0_8 = arith.constant 0 : index
    %13 = vector.load %arg15[%c0_7, %c0_8] : memref<16x352xbf16, #tpu.memory_space<vmem>>, vector<16x352xbf16>
    tpu.vector_store %arg15[%c0_7, %c0_8], %12 {strides = array<i32>} : memref<16x352xbf16, #tpu.memory_space<vmem>>, vector<16x352xbf16>,
    %c0_9 = arith.constant 0 : index
    %c0_10 = arith.constant 0 : index
    %14 = vector.load %arg4[%c0_9, %c0_10] : memref<96x64xbf16, #tpu.memory_space<vmem>>, vector<96x64xbf16>
    %c0_11 = arith.constant 0 : index
    %c0_12 = arith.constant 0 : index
    %15 = vector.load %arg5[%c0_11, %c0_12] : memref<1x64xf32, #tpu.memory_space<vmem>>, vector<1x64xf32>
    %c0_13 = arith.constant 0 : index
    %c0_14 = arith.constant 0 : index
    %16 = vector.load %arg15[%c0_13, %c0_14] : memref<16x352xbf16, #tpu.memory_space<vmem>>, vector<16x96xbf16>
    %cst_15 = arith.constant dense<0.000000e+00> : vector<16x64xf32>
    %17 = tpu.matmul %16, %14, %cst_15 {dimension_numbers = #tpu.dot_dimension_numbers<[1], [0], [0], [1], [0, 0, 1, 1], [], []>} : vector<16x96xbf16>, vector<96x64xbf16>, vector<16x64xf32> -> vector<16x64xf32>
    %18 = vector.broadcast %15 : vector<1x64xf32> to vector<16x64xf32>
    %19 = arith.addf %17, %18 : vector<16x64xf32>
    %cst_16 = arith.constant 0.000000e+00 : f32
    %20 = vector.broadcast %cst_16 : f32 to vector<16x64xf32>
    %21 = arith.cmpf ogt, %19, %20 : vector<16x64xf32>
    %cst_17 = arith.constant 2.000000e-01 : f32
    %22 = vector.broadcast %cst_17 : f32 to vector<16x64xf32>
    %23 = arith.mulf %22, %19 : vector<16x64xf32>
    %24 = arith.select %21, %19, %23 : vector<16x64xi1>, vector<16x64xf32>
    %25 = arith.truncf %24 : vector<16x64xf32> to vector<16x64xbf16>
    %c0_18 = arith.constant 0 : index
    %c0_19 = arith.constant 0 : index
    %26 = vector.load %arg16[%c0_18, %c0_19] : memref<16x576xbf16, #tpu.memory_space<vmem>>, vector<16x64xbf16>
    tpu.vector_store %arg16[%c0_18, %c0_19], %25 {strides = array<i32>} : memref<16x576xbf16, #tpu.memory_space<vmem>>, vector<16x64xbf16>,
    %c0_20 = arith.constant 0 : index
    %c32 = arith.constant 32 : index
    %27 = vector.load %arg15[%c0_20, %c32] : memref<16x352xbf16, #tpu.memory_space<vmem>>, vector<16x96xbf16>
    %cst_21 = arith.constant dense<0.000000e+00> : vector<16x64xf32>
    %28 = tpu.matmul %27, %14, %cst_21 {dimension_numbers = #tpu.dot_dimension_numbers<[1], [0], [0], [1], [0, 0, 1, 1], [], []>} : vector<16x96xbf16>, vector<96x64xbf16>, vector<16x64xf32> -> vector<16x64xf32>
    %29 = vector.broadcast %15 : vector<1x64xf32> to vector<16x64xf32>
    %30 = arith.addf %28, %29 : vector<16x64xf32>
    %cst_22 = arith.constant 0.000000e+00 : f32
    %31 = vector.broadcast %cst_22 : f32 to vector<16x64xf32>
    %32 = arith.cmpf ogt, %30, %31 : vector<16x64xf32>
    %cst_23 = arith.constant 2.000000e-01 : f32
    %33 = vector.broadcast %cst_23 : f32 to vector<16x64xf32>
    %34 = arith.mulf %33, %30 : vector<16x64xf32>
    %35 = arith.select %32, %30, %34 : vector<16x64xi1>, vector<16x64xf32>
    %36 = arith.truncf %35 : vector<16x64xf32> to vector<16x64xbf16>
    %c0_24 = arith.constant 0 : index
    %c64 = arith.constant 64 : index
    %37 = vector.load %arg16[%c0_24, %c64] : memref<16x576xbf16, #tpu.memory_space<vmem>>, vector<16x64xbf16>
    tpu.vector_store %arg16[%c0_24, %c64], %36 {strides = array<i32>} : memref<16x576xbf16, #tpu.memory_space<vmem>>, vector<16x64xbf16>,
    %c0_25 = arith.constant 0 : index
    %c64_26 = arith.constant 64 : index
    %38 = vector.load %arg15[%c0_25, %c64_26] : memref<16x352xbf16, #tpu.memory_space<vmem>>, vector<16x96xbf16>
    %cst_27 = arith.constant dense<0.000000e+00> : vector<16x64xf32>
    %39 = tpu.matmul %38, %14, %cst_27 {dimension_numbers = #tpu.dot_dimension_numbers<[1], [0], [0], [1], [0, 0, 1, 1], [], []>} : vector<16x96xbf16>, vector<96x64xbf16>, vector<16x64xf32> -> vector<16x64xf32>
    %40 = vector.broadcast %15 : vector<1x64xf32> to vector<16x64xf32>
    %41 = arith.addf %39, %40 : vector<16x64xf32>
    %cst_28 = arith.constant 0.000000e+00 : f32
    %42 = vector.broadcast %cst_28 : f32 to vector<16x64xf32>
    %43 = arith.cmpf ogt, %41, %42 : vector<16x64xf32>
    %cst_29 = arith.constant 2.000000e-01 : f32
    %44 = vector.broadcast %cst_29 : f32 to vector<16x64xf32>
    %45 = arith.mulf %44, %41 : vector<16x64xf32>
    %46 = arith.select %43, %41, %45 : vector<16x64xi1>, vector<16x64xf32>
    %47 = arith.truncf %46 : vector<16x64xf32> to vector<16x64xbf16>
    %c0_30 = arith.constant 0 : index
    %c128 = arith.constant 128 : index
    %48 = vector.load %arg16[%c0_30, %c128] : memref<16x576xbf16, #tpu.memory_space<vmem>>, vector<16x64xbf16>
    tpu.vector_store %arg16[%c0_30, %c128], %47 {strides = array<i32>} : memref<16x576xbf16, #tpu.memory_space<vmem>>, vector<16x64xbf16>,
    %c0_31 = arith.constant 0 : index
    %c96 = arith.constant 96 : index
    %49 = vector.load %arg15[%c0_31, %c96] : memref<16x352xbf16, #tpu.memory_space<vmem>>, vector<16x96xbf16>
    %cst_32 = arith.constant dense<0.000000e+00> : vector<16x64xf32>
    %50 = tpu.matmul %49, %14, %cst_32 {dimension_numbers = #tpu.dot_dimension_numbers<[1], [0], [0], [1], [0, 0, 1, 1], [], []>} : vector<16x96xbf16>, vector<96x64xbf16>, vector<16x64xf32> -> vector<16x64xf32>
    %51 = vector.broadcast %15 : vector<1x64xf32> to vector<16x64xf32>
    %52 = arith.addf %50, %51 : vector<16x64xf32>
    %cst_33 = arith.constant 0.000000e+00 : f32
    %53 = vector.broadcast %cst_33 : f32 to vector<16x64xf32>
    %54 = arith.cmpf ogt, %52, %53 : vector<16x64xf32>
    %cst_34 = arith.constant 2.000000e-01 : f32
    %55 = vector.broadcast %cst_34 : f32 to vector<16x64xf32>
    %56 = arith.mulf %55, %52 : vector<16x64xf32>
    %57 = arith.select %54, %52, %56 : vector<16x64xi1>, vector<16x64xf32>
    %58 = arith.truncf %57 : vector<16x64xf32> to vector<16x64xbf16>
    %c0_35 = arith.constant 0 : index
    %c192 = arith.constant 192 : index
    %59 = vector.load %arg16[%c0_35, %c192] : memref<16x576xbf16, #tpu.memory_space<vmem>>, vector<16x64xbf16>
    tpu.vector_store %arg16[%c0_35, %c192], %58 {strides = array<i32>} : memref<16x576xbf16, #tpu.memory_space<vmem>>, vector<16x64xbf16>,
    %c0_36 = arith.constant 0 : index
    %c128_37 = arith.constant 128 : index
    %60 = vector.load %arg15[%c0_36, %c128_37] : memref<16x352xbf16, #tpu.memory_space<vmem>>, vector<16x96xbf16>
    %cst_38 = arith.constant dense<0.000000e+00> : vector<16x64xf32>
    %61 = tpu.matmul %60, %14, %cst_38 {dimension_numbers = #tpu.dot_dimension_numbers<[1], [0], [0], [1], [0, 0, 1, 1], [], []>} : vector<16x96xbf16>, vector<96x64xbf16>, vector<16x64xf32> -> vector<16x64xf32>
    %62 = vector.broadcast %15 : vector<1x64xf32> to vector<16x64xf32>
    %63 = arith.addf %61, %62 : vector<16x64xf32>
    %cst_39 = arith.constant 0.000000e+00 : f32
    %64 = vector.broadcast %cst_39 : f32 to vector<16x64xf32>
    %65 = arith.cmpf ogt, %63, %64 : vector<16x64xf32>
    %cst_40 = arith.constant 2.000000e-01 : f32
    %66 = vector.broadcast %cst_40 : f32 to vector<16x64xf32>
    %67 = arith.mulf %66, %63 : vector<16x64xf32>
    %68 = arith.select %65, %63, %67 : vector<16x64xi1>, vector<16x64xf32>
    %69 = arith.truncf %68 : vector<16x64xf32> to vector<16x64xbf16>
    %c0_41 = arith.constant 0 : index
    %c256 = arith.constant 256 : index
    %70 = vector.load %arg16[%c0_41, %c256] : memref<16x576xbf16, #tpu.memory_space<vmem>>, vector<16x64xbf16>
    tpu.vector_store %arg16[%c0_41, %c256], %69 {strides = array<i32>} : memref<16x576xbf16, #tpu.memory_space<vmem>>, vector<16x64xbf16>,
    %c0_42 = arith.constant 0 : index
    %c160 = arith.constant 160 : index
    %71 = vector.load %arg15[%c0_42, %c160] : memref<16x352xbf16, #tpu.memory_space<vmem>>, vector<16x96xbf16>
    %cst_43 = arith.constant dense<0.000000e+00> : vector<16x64xf32>
    %72 = tpu.matmul %71, %14, %cst_43 {dimension_numbers = #tpu.dot_dimension_numbers<[1], [0], [0], [1], [0, 0, 1, 1], [], []>} : vector<16x96xbf16>, vector<96x64xbf16>, vector<16x64xf32> -> vector<16x64xf32>
    %73 = vector.broadcast %15 : vector<1x64xf32> to vector<16x64xf32>
    %74 = arith.addf %72, %73 : vector<16x64xf32>
    %cst_44 = arith.constant 0.000000e+00 : f32
    %75 = vector.broadcast %cst_44 : f32 to vector<16x64xf32>
    %76 = arith.cmpf ogt, %74, %75 : vector<16x64xf32>
    %cst_45 = arith.constant 2.000000e-01 : f32
    %77 = vector.broadcast %cst_45 : f32 to vector<16x64xf32>
    %78 = arith.mulf %77, %74 : vector<16x64xf32>
    %79 = arith.select %76, %74, %78 : vector<16x64xi1>, vector<16x64xf32>
    %80 = arith.truncf %79 : vector<16x64xf32> to vector<16x64xbf16>
    %c0_46 = arith.constant 0 : index
    %c320 = arith.constant 320 : index
    %81 = vector.load %arg16[%c0_46, %c320] : memref<16x576xbf16, #tpu.memory_space<vmem>>, vector<16x64xbf16>
    tpu.vector_store %arg16[%c0_46, %c320], %80 {strides = array<i32>} : memref<16x576xbf16, #tpu.memory_space<vmem>>, vector<16x64xbf16>,
    %c0_47 = arith.constant 0 : index
    %c192_48 = arith.constant 192 : index
    %82 = vector.load %arg15[%c0_47, %c192_48] : memref<16x352xbf16, #tpu.memory_space<vmem>>, vector<16x96xbf16>
    %cst_49 = arith.constant dense<0.000000e+00> : vector<16x64xf32>
    %83 = tpu.matmul %82, %14, %cst_49 {dimension_numbers = #tpu.dot_dimension_numbers<[1], [0], [0], [1], [0, 0, 1, 1], [], []>} : vector<16x96xbf16>, vector<96x64xbf16>, vector<16x64xf32> -> vector<16x64xf32>
    %84 = vector.broadcast %15 : vector<1x64xf32> to vector<16x64xf32>
    %85 = arith.addf %83, %84 : vector<16x64xf32>
    %cst_50 = arith.constant 0.000000e+00 : f32
    %86 = vector.broadcast %cst_50 : f32 to vector<16x64xf32>
    %87 = arith.cmpf ogt, %85, %86 : vector<16x64xf32>
    %cst_51 = arith.constant 2.000000e-01 : f32
    %88 = vector.broadcast %cst_51 : f32 to vector<16x64xf32>
    %89 = arith.mulf %88, %85 : vector<16x64xf32>
    %90 = arith.select %87, %85, %89 : vector<16x64xi1>, vector<16x64xf32>
    %91 = arith.truncf %90 : vector<16x64xf32> to vector<16x64xbf16>
    %c0_52 = arith.constant 0 : index
    %c384 = arith.constant 384 : index
    %92 = vector.load %arg16[%c0_52, %c384] : memref<16x576xbf16, #tpu.memory_space<vmem>>, vector<16x64xbf16>
    tpu.vector_store %arg16[%c0_52, %c384], %91 {strides = array<i32>} : memref<16x576xbf16, #tpu.memory_space<vmem>>, vector<16x64xbf16>,
    %c0_53 = arith.constant 0 : index
    %c224 = arith.constant 224 : index
    %93 = vector.load %arg15[%c0_53, %c224] : memref<16x352xbf16, #tpu.memory_space<vmem>>, vector<16x96xbf16>
    %cst_54 = arith.constant dense<0.000000e+00> : vector<16x64xf32>
    %94 = tpu.matmul %93, %14, %cst_54 {dimension_numbers = #tpu.dot_dimension_numbers<[1], [0], [0], [1], [0, 0, 1, 1], [], []>} : vector<16x96xbf16>, vector<96x64xbf16>, vector<16x64xf32> -> vector<16x64xf32>
    %95 = vector.broadcast %15 : vector<1x64xf32> to vector<16x64xf32>
    %96 = arith.addf %94, %95 : vector<16x64xf32>
    %cst_55 = arith.constant 0.000000e+00 : f32
    %97 = vector.broadcast %cst_55 : f32 to vector<16x64xf32>
    %98 = arith.cmpf ogt, %96, %97 : vector<16x64xf32>
    %cst_56 = arith.constant 2.000000e-01 : f32
    %99 = vector.broadcast %cst_56 : f32 to vector<16x64xf32>
    %100 = arith.mulf %99, %96 : vector<16x64xf32>
    %101 = arith.select %98, %96, %100 : vector<16x64xi1>, vector<16x64xf32>
    %102 = arith.truncf %101 : vector<16x64xf32> to vector<16x64xbf16>
    %c0_57 = arith.constant 0 : index
    %c448 = arith.constant 448 : index
    %103 = vector.load %arg16[%c0_57, %c448] : memref<16x576xbf16, #tpu.memory_space<vmem>>, vector<16x64xbf16>
    tpu.vector_store %arg16[%c0_57, %c448], %102 {strides = array<i32>} : memref<16x576xbf16, #tpu.memory_space<vmem>>, vector<16x64xbf16>,
    %c0_58 = arith.constant 0 : index
    %c256_59 = arith.constant 256 : index
    %104 = vector.load %arg15[%c0_58, %c256_59] : memref<16x352xbf16, #tpu.memory_space<vmem>>, vector<16x96xbf16>
    %cst_60 = arith.constant dense<0.000000e+00> : vector<16x64xf32>
    %105 = tpu.matmul %104, %14, %cst_60 {dimension_numbers = #tpu.dot_dimension_numbers<[1], [0], [0], [1], [0, 0, 1, 1], [], []>} : vector<16x96xbf16>, vector<96x64xbf16>, vector<16x64xf32> -> vector<16x64xf32>
    %106 = vector.broadcast %15 : vector<1x64xf32> to vector<16x64xf32>
    %107 = arith.addf %105, %106 : vector<16x64xf32>
    %cst_61 = arith.constant 0.000000e+00 : f32
    %108 = vector.broadcast %cst_61 : f32 to vector<16x64xf32>
    %109 = arith.cmpf ogt, %107, %108 : vector<16x64xf32>
    %cst_62 = arith.constant 2.000000e-01 : f32
    %110 = vector.broadcast %cst_62 : f32 to vector<16x64xf32>
    %111 = arith.mulf %110, %107 : vector<16x64xf32>
    %112 = arith.select %109, %107, %111 : vector<16x64xi1>, vector<16x64xf32>
    %113 = arith.truncf %112 : vector<16x64xf32> to vector<16x64xbf16>
    %c0_63 = arith.constant 0 : index
    %c512 = arith.constant 512 : index
    %114 = vector.load %arg16[%c0_63, %c512] : memref<16x576xbf16, #tpu.memory_space<vmem>>, vector<16x64xbf16>
    tpu.vector_store %arg16[%c0_63, %c512], %113 {strides = array<i32>} : memref<16x576xbf16, #tpu.memory_space<vmem>>, vector<16x64xbf16>,
    %c0_64 = arith.constant 0 : index
    %c0_65 = arith.constant 0 : index
    %115 = vector.load %arg6[%c0_64, %c0_65] : memref<192x128xbf16, #tpu.memory_space<vmem>>, vector<192x128xbf16>
    %c0_66 = arith.constant 0 : index
    %c0_67 = arith.constant 0 : index
    %116 = vector.load %arg7[%c0_66, %c0_67] : memref<1x128xf32, #tpu.memory_space<vmem>>, vector<1x128xf32>
    %c0_68 = arith.constant 0 : index
    %c0_69 = arith.constant 0 : index
    %117 = vector.load %arg16[%c0_68, %c0_69] : memref<16x576xbf16, #tpu.memory_space<vmem>>, vector<16x192xbf16>
    %cst_70 = arith.constant dense<0.000000e+00> : vector<16x128xf32>
    %118 = tpu.matmul %117, %115, %cst_70 {dimension_numbers = #tpu.dot_dimension_numbers<[1], [0], [0], [1], [0, 0, 1, 1], [], []>} : vector<16x192xbf16>, vector<192x128xbf16>, vector<16x128xf32> -> vector<16x128xf32>
    %119 = vector.broadcast %116 : vector<1x128xf32> to vector<16x128xf32>
    %120 = arith.addf %118, %119 : vector<16x128xf32>
    %cst_71 = arith.constant 0.000000e+00 : f32
    %121 = vector.broadcast %cst_71 : f32 to vector<16x128xf32>
    %122 = arith.cmpf ogt, %120, %121 : vector<16x128xf32>
    %cst_72 = arith.constant 2.000000e-01 : f32
    %123 = vector.broadcast %cst_72 : f32 to vector<16x128xf32>
    %124 = arith.mulf %123, %120 : vector<16x128xf32>
    %125 = arith.select %122, %120, %124 : vector<16x128xi1>, vector<16x128xf32>
    %126 = arith.truncf %125 : vector<16x128xf32> to vector<16x128xbf16>
    %c0_73 = arith.constant 0 : index
    %c0_74 = arith.constant 0 : index
    %127 = vector.load %arg17[%c0_73, %c0_74] : memref<16x512xbf16, #tpu.memory_space<vmem>>, vector<16x128xbf16>
    tpu.vector_store %arg17[%c0_73, %c0_74], %126 {strides = array<i32>} : memref<16x512xbf16, #tpu.memory_space<vmem>>, vector<16x128xbf16>,
    %c0_75 = arith.constant 0 : index
    %c128_76 = arith.constant 128 : index
    %128 = vector.load %arg16[%c0_75, %c128_76] : memref<16x576xbf16, #tpu.memory_space<vmem>>, vector<16x192xbf16>
    %cst_77 = arith.constant dense<0.000000e+00> : vector<16x128xf32>
    %129 = tpu.matmul %128, %115, %cst_77 {dimension_numbers = #tpu.dot_dimension_numbers<[1], [0], [0], [1], [0, 0, 1, 1], [], []>} : vector<16x192xbf16>, vector<192x128xbf16>, vector<16x128xf32> -> vector<16x128xf32>
    %130 = vector.broadcast %116 : vector<1x128xf32> to vector<16x128xf32>
    %131 = arith.addf %129, %130 : vector<16x128xf32>
    %cst_78 = arith.constant 0.000000e+00 : f32
    %132 = vector.broadcast %cst_78 : f32 to vector<16x128xf32>
    %133 = arith.cmpf ogt, %131, %132 : vector<16x128xf32>
    %cst_79 = arith.constant 2.000000e-01 : f32
    %134 = vector.broadcast %cst_79 : f32 to vector<16x128xf32>
    %135 = arith.mulf %134, %131 : vector<16x128xf32>
    %136 = arith.select %133, %131, %135 : vector<16x128xi1>, vector<16x128xf32>
    %137 = arith.truncf %136 : vector<16x128xf32> to vector<16x128xbf16>
    %c0_80 = arith.constant 0 : index
    %c128_81 = arith.constant 128 : index
    %138 = vector.load %arg17[%c0_80, %c128_81] : memref<16x512xbf16, #tpu.memory_space<vmem>>, vector<16x128xbf16>
    tpu.vector_store %arg17[%c0_80, %c128_81], %137 {strides = array<i32>} : memref<16x512xbf16, #tpu.memory_space<vmem>>, vector<16x128xbf16>,
    %c0_82 = arith.constant 0 : index
    %c256_83 = arith.constant 256 : index
    %139 = vector.load %arg16[%c0_82, %c256_83] : memref<16x576xbf16, #tpu.memory_space<vmem>>, vector<16x192xbf16>
    %cst_84 = arith.constant dense<0.000000e+00> : vector<16x128xf32>
    %140 = tpu.matmul %139, %115, %cst_84 {dimension_numbers = #tpu.dot_dimension_numbers<[1], [0], [0], [1], [0, 0, 1, 1], [], []>} : vector<16x192xbf16>, vector<192x128xbf16>, vector<16x128xf32> -> vector<16x128xf32>
    %141 = vector.broadcast %116 : vector<1x128xf32> to vector<16x128xf32>
    %142 = arith.addf %140, %141 : vector<16x128xf32>
    %cst_85 = arith.constant 0.000000e+00 : f32
    %143 = vector.broadcast %cst_85 : f32 to vector<16x128xf32>
    %144 = arith.cmpf ogt, %142, %143 : vector<16x128xf32>
    %cst_86 = arith.constant 2.000000e-01 : f32
    %145 = vector.broadcast %cst_86 : f32 to vector<16x128xf32>
    %146 = arith.mulf %145, %142 : vector<16x128xf32>
    %147 = arith.select %144, %142, %146 : vector<16x128xi1>, vector<16x128xf32>
    %148 = arith.truncf %147 : vector<16x128xf32> to vector<16x128xbf16>
    %c0_87 = arith.constant 0 : index
    %c256_88 = arith.constant 256 : index
    %149 = vector.load %arg17[%c0_87, %c256_88] : memref<16x512xbf16, #tpu.memory_space<vmem>>, vector<16x128xbf16>
    tpu.vector_store %arg17[%c0_87, %c256_88], %148 {strides = array<i32>} : memref<16x512xbf16, #tpu.memory_space<vmem>>, vector<16x128xbf16>,
    %c0_89 = arith.constant 0 : index
    %c384_90 = arith.constant 384 : index
    %150 = vector.load %arg16[%c0_89, %c384_90] : memref<16x576xbf16, #tpu.memory_space<vmem>>, vector<16x192xbf16>
    %cst_91 = arith.constant dense<0.000000e+00> : vector<16x128xf32>
    %151 = tpu.matmul %150, %115, %cst_91 {dimension_numbers = #tpu.dot_dimension_numbers<[1], [0], [0], [1], [0, 0, 1, 1], [], []>} : vector<16x192xbf16>, vector<192x128xbf16>, vector<16x128xf32> -> vector<16x128xf32>
    %152 = vector.broadcast %116 : vector<1x128xf32> to vector<16x128xf32>
    %153 = arith.addf %151, %152 : vector<16x128xf32>
    %cst_92 = arith.constant 0.000000e+00 : f32
    %154 = vector.broadcast %cst_92 : f32 to vector<16x128xf32>
    %155 = arith.cmpf ogt, %153, %154 : vector<16x128xf32>
    %cst_93 = arith.constant 2.000000e-01 : f32
    %156 = vector.broadcast %cst_93 : f32 to vector<16x128xf32>
    %157 = arith.mulf %156, %153 : vector<16x128xf32>
    %158 = arith.select %155, %153, %157 : vector<16x128xi1>, vector<16x128xf32>
    %159 = arith.truncf %158 : vector<16x128xf32> to vector<16x128xbf16>
    %c0_94 = arith.constant 0 : index
    %c384_95 = arith.constant 384 : index
    %160 = vector.load %arg17[%c0_94, %c384_95] : memref<16x512xbf16, #tpu.memory_space<vmem>>, vector<16x128xbf16>
    tpu.vector_store %arg17[%c0_94, %c384_95], %159 {strides = array<i32>} : memref<16x512xbf16, #tpu.memory_space<vmem>>, vector<16x128xbf16>,
    %c0_96 = arith.constant 0 : index
    %c0_97 = arith.constant 0 : index
    %161 = vector.load %arg8[%c0_96, %c0_97] : memref<384x256xbf16, #tpu.memory_space<vmem>>, vector<384x256xbf16>
    %c0_98 = arith.constant 0 : index
    %c0_99 = arith.constant 0 : index
    %162 = vector.load %arg17[%c0_98, %c0_99] : memref<16x512xbf16, #tpu.memory_space<vmem>>, vector<16x384xbf16>
    %cst_100 = arith.constant dense<0.000000e+00> : vector<16x256xf32>
    %163 = tpu.matmul %162, %161, %cst_100 {dimension_numbers = #tpu.dot_dimension_numbers<[1], [0], [0], [1], [0, 0, 1, 1], [], []>} : vector<16x384xbf16>, vector<384x256xbf16>, vector<16x256xf32> -> vector<16x256xf32>
    %c0_101 = arith.constant 0 : index
    %c0_102 = arith.constant 0 : index
    %164 = vector.load %arg18[%c0_101, %c0_102] : memref<16x256xf32, #tpu.memory_space<vmem>>, vector<16x256xf32>
    tpu.vector_store %arg18[%c0_101, %c0_102], %163 {strides = array<i32>} : memref<16x256xf32, #tpu.memory_space<vmem>>, vector<16x256xf32>,
    %c0_103 = arith.constant 0 : index
    %c128_104 = arith.constant 128 : index
    %165 = vector.load %arg17[%c0_103, %c128_104] : memref<16x512xbf16, #tpu.memory_space<vmem>>, vector<16x384xbf16>
    %cst_105 = arith.constant dense<0.000000e+00> : vector<16x256xf32>
    %166 = tpu.matmul %165, %161, %cst_105 {dimension_numbers = #tpu.dot_dimension_numbers<[1], [0], [0], [1], [0, 0, 1, 1], [], []>} : vector<16x384xbf16>, vector<384x256xbf16>, vector<16x256xf32> -> vector<16x256xf32>
    %c0_106 = arith.constant 0 : index
    %c0_107 = arith.constant 0 : index
    %167 = vector.load %arg18[%c0_106, %c0_107] : memref<16x256xf32, #tpu.memory_space<vmem>>, vector<16x256xf32>
    %168 = arith.maximumf %167, %166 : vector<16x256xf32>
    %c0_108 = arith.constant 0 : index
    %c0_109 = arith.constant 0 : index
    %169 = vector.load %arg9[%c0_108, %c0_109] : memref<1x256xf32, #tpu.memory_space<vmem>>, vector<1x256xf32>
    %170 = vector.broadcast %169 : vector<1x256xf32> to vector<16x256xf32>
    %171 = arith.addf %168, %170 : vector<16x256xf32>
    %cst_110 = arith.constant 0.000000e+00 : f32
    %172 = vector.broadcast %cst_110 : f32 to vector<16x256xf32>
    %173 = arith.maximumf %171, %172 : vector<16x256xf32>
    %174 = arith.truncf %173 : vector<16x256xf32> to vector<16x256xbf16>
    %c0_111 = arith.constant 0 : index
    %c0_112 = arith.constant 0 : index
    %175 = vector.load %arg10[%c0_111, %c0_112] : memref<256x512xbf16, #tpu.memory_space<vmem>>, vector<256x512xbf16>
    %cst_113 = arith.constant dense<0.000000e+00> : vector<16x512xf32>
    %176 = tpu.matmul %174, %175, %cst_113 {dimension_numbers = #tpu.dot_dimension_numbers<[1], [0], [0], [1], [0, 0, 1, 1], [], []>} : vector<16x256xbf16>, vector<256x512xbf16>, vector<16x512xf32> -> vector<16x512xf32>
    %c0_114 = arith.constant 0 : index
    %c0_115 = arith.constant 0 : index
    %177 = vector.load %arg11[%c0_114, %c0_115] : memref<1x512xf32, #tpu.memory_space<vmem>>, vector<1x512xf32>
    %178 = vector.broadcast %177 : vector<1x512xf32> to vector<16x512xf32>
    %179 = arith.addf %176, %178 : vector<16x512xf32>
    %cst_116 = arith.constant 0.000000e+00 : f32
    %180 = vector.broadcast %cst_116 : f32 to vector<16x512xf32>
    %181 = arith.maximumf %179, %180 : vector<16x512xf32>
    %c0_117 = arith.constant 0 : index
    %c0_118 = arith.constant 0 : index
    %182 = vector.load %arg12[%c0_117, %c0_118] : memref<1x512xf32, #tpu.memory_space<vmem>>, vector<1x512xf32>
    %183 = vector.broadcast %182 : vector<1x512xf32> to vector<16x512xf32>
    %184 = arith.mulf %181, %183 : vector<16x512xf32>
    %cst_119 = arith.constant dense<0.000000e+00> : vector<16xf32>
    %185 = vector.multi_reduction <add>, %184, %cst_119 [1] : vector<16x512xf32> to vector<16xf32>
    %186 = vector.shape_cast %185 : vector<16xf32> to vector<16x1xf32>
    %c0_120 = arith.constant 0 : index
    %c0_121 = arith.constant 0 : index
    %187 = vector.load %arg13[%c0_120, %c0_121] : memref<1x1xf32, #tpu.memory_space<vmem>>, vector<1x1xf32>
    %188 = vector.broadcast %187 : vector<1x1xf32> to vector<16x1xf32>
    %189 = arith.addf %186, %188 : vector<16x1xf32>
    %c0_122 = arith.constant 0 : index
    %c0_123 = arith.constant 0 : index
    %190 = vector.load %arg14[%c0_122, %c0_123] : memref<16x1xf32, #tpu.memory_space<vmem>>, vector<16x1xf32>
    tpu.vector_store %arg14[%c0_122, %c0_123], %189 {strides = array<i32>} : memref<16x1xf32, #tpu.memory_space<vmem>>, vector<16x1xf32>,
    return
  }
  func.func @transform_0(%arg0: i32) -> (i32, i32) {
    %c0_i32 = arith.constant 0 : i32
    %c0_i32_0 = arith.constant 0 : i32
    return %arg0, %c0_i32 : i32, i32
  }
  func.func @transform_1(%arg0: i32) -> (i32, i32) {
    %c0_i32 = arith.constant 0 : i32
    %c0_i32_0 = arith.constant 0 : i32
    %c0_i32_1 = arith.constant 0 : i32
    return %c0_i32, %c0_i32_0 : i32, i32
  }
  func.func @transform_2(%arg0: i32) -> (i32, i32) {
    %c0_i32 = arith.constant 0 : i32
    %c0_i32_0 = arith.constant 0 : i32
    %c0_i32_1 = arith.constant 0 : i32
    return %c0_i32, %c0_i32_0 : i32, i32
  }
  func.func @transform_3(%arg0: i32) -> (i32, i32) {
    %c0_i32 = arith.constant 0 : i32
    %c0_i32_0 = arith.constant 0 : i32
    %c0_i32_1 = arith.constant 0 : i32
    return %c0_i32, %c0_i32_0 : i32, i32
  }
  func.func @transform_4(%arg0: i32) -> (i32, i32) {
    %c0_i32 = arith.constant 0 : i32
    %c0_i32_0 = arith.constant 0 : i32
    %c0_i32_1 = arith.constant 0 : i32
    return %c0_i32, %c0_i32_0 : i32, i32
  }
  func.func @transform_5(%arg0: i32) -> (i32, i32) {
    %c0_i32 = arith.constant 0 : i32
    %c0_i32_0 = arith.constant 0 : i32
    %c0_i32_1 = arith.constant 0 : i32
    return %c0_i32, %c0_i32_0 : i32, i32
  }
  func.func @transform_6(%arg0: i32) -> (i32, i32) {
    %c0_i32 = arith.constant 0 : i32
    %c0_i32_0 = arith.constant 0 : i32
    %c0_i32_1 = arith.constant 0 : i32
    return %c0_i32, %c0_i32_0 : i32, i32
  }
  func.func @transform_7(%arg0: i32) -> (i32, i32) {
    %c0_i32 = arith.constant 0 : i32
    %c0_i32_0 = arith.constant 0 : i32
    %c0_i32_1 = arith.constant 0 : i32
    return %c0_i32, %c0_i32_0 : i32, i32
  }
  func.func @transform_8(%arg0: i32) -> (i32, i32) {
    %c0_i32 = arith.constant 0 : i32
    %c0_i32_0 = arith.constant 0 : i32
    %c0_i32_1 = arith.constant 0 : i32
    return %c0_i32, %c0_i32_0 : i32, i32
  }
  func.func @transform_9(%arg0: i32) -> (i32, i32) {
    %c0_i32 = arith.constant 0 : i32
    %c0_i32_0 = arith.constant 0 : i32
    %c0_i32_1 = arith.constant 0 : i32
    return %c0_i32, %c0_i32_0 : i32, i32
  }
  func.func @transform_10(%arg0: i32) -> (i32, i32) {
    %c0_i32 = arith.constant 0 : i32
    %c0_i32_0 = arith.constant 0 : i32
    %c0_i32_1 = arith.constant 0 : i32
    return %c0_i32, %c0_i32_0 : i32, i32
  }
  func.func @transform_11(%arg0: i32) -> (i32, i32) {
    %c0_i32 = arith.constant 0 : i32
    %c0_i32_0 = arith.constant 0 : i32
    %c0_i32_1 = arith.constant 0 : i32
    return %c0_i32, %c0_i32_0 : i32, i32
  }
  func.func @transform_12(%arg0: i32) -> (i32, i32) {
    %c0_i32 = arith.constant 0 : i32
    %c0_i32_0 = arith.constant 0 : i32
    %c0_i32_1 = arith.constant 0 : i32
    return %c0_i32, %c0_i32_0 : i32, i32
  }
  func.func @transform_13(%arg0: i32) -> (i32, i32) {
    %c0_i32 = arith.constant 0 : i32
    %c0_i32_0 = arith.constant 0 : i32
    return %arg0, %c0_i32 : i32, i32
  }
}

</mosaic_0001>

<llo_original>
// kernel: _lambda_.1
$region0: #{_lambda_.1}
  #allocation0 [shape = 'u32[]', space=smem, size = 0x4, offset = 0x4, fixed_abs, tag = 'smem constant byte address 0x4 - core index']
  #allocation1 [shape = 'u32[144,128]{1,0:T(1,128)}', space=vmem, size = 0x12000, scoped, tag = 'internal scratch']
  #allocation2 [shape = 'bf16[16,352]{1,0:T(16,128)(2,1)}', space=vmem, size = 0x3000, scoped, tag = 'scratch operand']
  #allocation3 [shape = 'bf16[16,576]{1,0:T(16,128)(2,1)}', space=vmem, size = 0x5000, scoped, tag = 'scratch operand']
  #allocation4 [shape = 'bf16[16,512]{1,0:T(16,128)(2,1)}', space=vmem, size = 0x4000, scoped, tag = 'scratch operand']
  #allocation5 [shape = 'f32[16,256]{1,0:T(8,128)}', space=vmem, size = 0x4000, scoped, tag = 'scratch operand']
  #allocation6 [shape = 'f32[1,1]{1,0:T(1,128)S(1)}', space=vmem, size = 0x200, scoped, tag = 'scoped memory for _lambda_.1']
  %s0 = inlined_call_operand.vmem [shape: f32[16,506], index: 0, kind: input, shape index: {}]
  %s1 = inlined_call_operand.vmem [shape: bf16[506,352], index: 1, kind: input, shape index: {}]
  %s2 = inlined_call_operand.vmem [shape: f32[1,352], index: 2, kind: input, shape index: {}]
  %s3 = inlined_call_operand.vmem [shape: bf16[96,64], index: 3, kind: input, shape index: {}]
  %s4 = inlined_call_operand.vmem [shape: f32[1,64], index: 4, kind: input, shape index: {}]
  %s5 = inlined_call_operand.vmem [shape: bf16[192,128], index: 5, kind: input, shape index: {}]
  %s6 = inlined_call_operand.vmem [shape: f32[1,128], index: 6, kind: input, shape index: {}]
  %s7 = inlined_call_operand.vmem [shape: bf16[384,256], index: 7, kind: input, shape index: {}]
  %s8 = inlined_call_operand.vmem [shape: f32[1,256], index: 8, kind: input, shape index: {}]
  %s9 = inlined_call_operand.vmem [shape: bf16[256,512], index: 9, kind: input, shape index: {}]
  %s10 = inlined_call_operand.vmem [shape: f32[1,512], index: 10, kind: input, shape index: {}]
  %s11 = inlined_call_operand.vmem [shape: f32[1,512], index: 11, kind: input, shape index: {}]
  %s12 = inlined_call_operand.<no memory space> [shape: f32[1,1], index: 12, kind: input, shape index: {}]
  %s13 = inlined_call_operand.vmem [shape: f32[16,1], index: 13, kind: output, shape index: {}]
  %s14 = sld [smem:[#allocation0]]
  $region62: #{_lambda_.1} parent=0
    _
  %s16 = ssub.s32 1, %s14
  %s17 = scalar_select 0, %s16, %s14
  %v18 = vstv %s12
  %19 = vst [vmem:[#allocation6] sm:$0x1] %v18
  // Predicated region
  $region2: #{_lambda_.1} parent=0 // pred_check
    _
  $region3: #{_lambda_.1} parent=0 // pred_check_branch
    %21 = sbr.rel (0) target = $region5
  $region4: #{_lambda_.1} parent=0 // pred_region
    _
  $region5: #{_lambda_.1} parent=0 // pred_fallthru
    _
  // Predicated region
  $region6: #{_lambda_.1} parent=0 // pred_check
    _
  $region7: #{_lambda_.1} parent=0 // pred_check_branch
    %23 = sbr.rel (0) target = $region9
  $region8: #{_lambda_.1} parent=0 // pred_region
    _
  $region9: #{_lambda_.1} parent=0 // pred_fallthru
    _
  // Predicated region
  $region10: #{_lambda_.1} parent=0 // pred_check
    _
  $region11: #{_lambda_.1} parent=0 // pred_check_branch
    %25 = sbr.rel (0) target = $region13
  $region12: #{_lambda_.1} parent=0 // pred_region
    _
  $region13: #{_lambda_.1} parent=0 // pred_fallthru
    _
  // Predicated region
  $region14: #{_lambda_.1} parent=0 // pred_check
    _
  $region15: #{_lambda_.1} parent=0 // pred_check_branch
    %27 = sbr.rel (0) target = $region17
  $region16: #{_lambda_.1} parent=0 // pred_region
    _
  $region17: #{_lambda_.1} parent=0 // pred_fallthru
    _
  // Predicated region
  $region18: #{_lambda_.1} parent=0 // pred_check
    _
  $region19: #{_lambda_.1} parent=0 // pred_check_branch
    %29 = sbr.rel (0) target = $region21
  $region20: #{_lambda_.1} parent=0 // pred_region
    _
  $region21: #{_lambda_.1} parent=0 // pred_fallthru
    _
  // Predicated region
  $region22: #{_lambda_.1} parent=0 // pred_check
    _
  $region23: #{_lambda_.1} parent=0 // pred_check_branch
    %31 = sbr.rel (0) target = $region25
  $region24: #{_lambda_.1} parent=0 // pred_region
    _
  $region25: #{_lambda_.1} parent=0 // pred_fallthru
    _
  // Predicated region
  $region26: #{_lambda_.1} parent=0 // pred_check
    _
  $region27: #{_lambda_.1} parent=0 // pred_check_branch
    %33 = sbr.rel (0) target = $region29
  $region28: #{_lambda_.1} parent=0 // pred_region
    _
  $region29: #{_lambda_.1} parent=0 // pred_fallthru
    _
  // Predicated region
  $region30: #{_lambda_.1} parent=0 // pred_check
    _
  $region31: #{_lambda_.1} parent=0 // pred_check_branch
    %35 = sbr.rel (0) target = $region33
  $region32: #{_lambda_.1} parent=0 // pred_region
    _
  $region33: #{_lambda_.1} parent=0 // pred_fallthru
    _
  // Predicated region
  $region34: #{_lambda_.1} parent=0 // pred_check
    _
  $region35: #{_lambda_.1} parent=0 // pred_check_branch
    %37 = sbr.rel (0) target = $region37
  $region36: #{_lambda_.1} parent=0 // pred_region
    _
  $region37: #{_lambda_.1} parent=0 // pred_fallthru
    _
  // Predicated region
  $region38: #{_lambda_.1} parent=0 // pred_check
    _
  $region39: #{_lambda_.1} parent=0 // pred_check_branch
    %39 = sbr.rel (0) target = $region41
  $region40: #{_lambda_.1} parent=0 // pred_region
    _
  $region41: #{_lambda_.1} parent=0 // pred_fallthru
    _
  // Predicated region
  $region42: #{_lambda_.1} parent=0 // pred_check
    _
  $region43: #{_lambda_.1} parent=0 // pred_check_branch
    %41 = sbr.rel (0) target = $region45
  $region44: #{_lambda_.1} parent=0 // pred_region
    _
  $region45: #{_lambda_.1} parent=0 // pred_fallthru
    _
  // Predicated region
  $region46: #{_lambda_.1} parent=0 // pred_check
    _
  $region47: #{_lambda_.1} parent=0 // pred_check_branch
    %43 = sbr.rel (0) target = $region49
  $region48: #{_lambda_.1} parent=0 // pred_region
    _
  $region49: #{_lambda_.1} parent=0 // pred_fallthru
    _
  // Predicated region
  $region50: #{_lambda_.1} parent=0 // pred_check
    _
  $region51: #{_lambda_.1} parent=0 // pred_check_branch
    %45 = sbr.rel (0) target = $region53
  $region52: #{_lambda_.1} parent=0 // pred_region
    _
  $region53: #{_lambda_.1} parent=0 // pred_fallthru
    _
  %v47 = vld [vmem:[%s0] sm:$0xff]
  %v48 = vld [vmem:[%s0 + $0x8] sm:$0xff]
  %v49 = vld [vmem:[%s0 + $0x10] sm:$0xff]
  %v50 = vld [vmem:[%s0 + $0x18] sm:$0xff]
  %v51 = vld [vmem:[%s0 + $0x20] sm:$0xff]
  %v52 = vld [vmem:[%s0 + $0x28] sm:$0xff]
  %v53 = vld [vmem:[%s0 + $0x30] sm:$0xff]
  %v54 = vld [vmem:[%s0 + $0x38] sm:$0xff]
  %v55 = vpack.c.bf16 %v51, %v47
  %v56 = vpack.c.bf16 %v52, %v48
  %v57 = vpack.c.bf16 %v53, %v49
  %v58 = vpack.c.bf16 %v54, %v50
  %v59 = vld [vmem:[%s1] sm:$0xff]
  %v60 = vld [vmem:[%s1 + $0x8] sm:$0xf]
  %v61 = vld [vmem:[%s1 + $0xc] sm:$0xff]
  %v62 = vld [vmem:[%s1 + $0x14] sm:$0xf]
  %v63 = vld [vmem:[%s1 + $0x18] sm:$0xff]
  %v64 = vld [vmem:[%s1 + $0x20] sm:$0xf]
  %v65 = vld [vmem:[%s1 + $0x24] sm:$0xff]
  %v66 = vld [vmem:[%s1 + $0x2c] sm:$0xf]
  %v67 = vld [vmem:[%s1 + $0x30] sm:$0xff]
  %v68 = vld [vmem:[%s1 + $0x38] sm:$0xf]
  %v69 = vld [vmem:[%s1 + $0x3c] sm:$0xff]
  %v70 = vld [vmem:[%s1 + $0x44] sm:$0xf]
  %v71 = vld [vmem:[%s1 + $0x48] sm:$0xff]
  %v72 = vld [vmem:[%s1 + $0x50] sm:$0xf]
  %v73 = vld [vmem:[%s1 + $0x54] sm:$0xff]
  %v74 = vld [vmem:[%s1 + $0x5c] sm:$0xf]
  %v75 = vld [vmem:[%s1 + $0x60] sm:$0xff]
  %v76 = vld [vmem:[%s1 + $0x68] sm:$0xf]
  %v77 = vld [vmem:[%s1 + $0x6c] sm:$0xff]
  %v78 = vld [vmem:[%s1 + $0x74] sm:$0xf]
  %v79 = vld [vmem:[%s1 + $0x78] sm:$0xff]
  %v80 = vld [vmem:[%s1 + $0x80] sm:$0xf]
  %v81 = vld [vmem:[%s1 + $0x84] sm:$0xff]
  %v82 = vld [vmem:[%s1 + $0x8c] sm:$0xf]
  %v83 = vld [vmem:[%s1 + $0x90] sm:$0xff]
  %v84 = vld [vmem:[%s1 + $0x98] sm:$0xf]
  %v85 = vld [vmem:[%s1 + $0x9c] sm:$0xff]
  %v86 = vld [vmem:[%s1 + $0xa4] sm:$0xf]
  %v87 = vld [vmem:[%s1 + $0xa8] sm:$0xff]
  %v88 = vld [vmem:[%s1 + $0xb0] sm:$0xf]
  %v89 = vld [vmem:[%s1 + $0xb4] sm:$0xff]
  %v90 = vld [vmem:[%s1 + $0xbc] sm:$0xf]
  %v91 = vld [vmem:[%s1 + $0xc0] sm:$0xff]
  %v92 = vld [vmem:[%s1 + $0xc8] sm:$0xf]
  %v93 = vld [vmem:[%s1 + $0xcc] sm:$0xff]
  %v94 = vld [vmem:[%s1 + $0xd4] sm:$0xf]
  %v95 = vld [vmem:[%s1 + $0xd8] sm:$0xff]
  %v96 = vld [vmem:[%s1 + $0xe0] sm:$0xf]
  %v97 = vld [vmem:[%s1 + $0xe4] sm:$0xff]
  %v98 = vld [vmem:[%s1 + $0xec] sm:$0xf]
  %v99 = vld [vmem:[%s1 + $0xf0] sm:$0xff]
  %v100 = vld [vmem:[%s1 + $0xf8] sm:$0xf]
  %v101 = vld [vmem:[%s1 + $0xfc] sm:$0xff]
  %v102 = vld [vmem:[%s1 + $0x104] sm:$0xf]
  %v103 = vld [vmem:[%s1 + $0x108] sm:$0xff]
  %v104 = vld [vmem:[%s1 + $0x110] sm:$0xf]
  %v105 = vld [vmem:[%s1 + $0x114] sm:$0xff]
  %v106 = vld [vmem:[%s1 + $0x11c] sm:$0xf]
  %v107 = vld [vmem:[%s1 + $0x120] sm:$0xff]
  %v108 = vld [vmem:[%s1 + $0x128] sm:$0xf]
  %v109 = vld [vmem:[%s1 + $0x12c] sm:$0xff]
  %v110 = vld [vmem:[%s1 + $0x134] sm:$0xf]
  %v111 = vld [vmem:[%s1 + $0x138] sm:$0xff]
  %v112 = vld [vmem:[%s1 + $0x140] sm:$0xf]
  %v113 = vld [vmem:[%s1 + $0x144] sm:$0xff]
  %v114 = vld [vmem:[%s1 + $0x14c] sm:$0xf]
  %v115 = vld [vmem:[%s1 + $0x150] sm:$0xff]
  %v116 = vld [vmem:[%s1 + $0x158] sm:$0xf]
  %v117 = vld [vmem:[%s1 + $0x15c] sm:$0xff]
  %v118 = vld [vmem:[%s1 + $0x164] sm:$0xf]
  %v119 = vld [vmem:[%s1 + $0x168] sm:$0xff]
  %v120 = vld [vmem:[%s1 + $0x170] sm:$0xf]
  %v121 = vld [vmem:[%s1 + $0x174] sm:$0xff]
  %v122 = vld [vmem:[%s1 + $0x17c] sm:$0xf]
  %v123 = vld [vmem:[%s1 + $0x180] sm:$0xff]
  %v124 = vld [vmem:[%s1 + $0x188] sm:$0xf]
  %v125 = vld [vmem:[%s1 + $0x18c] sm:$0xff]
  %v126 = vld [vmem:[%s1 + $0x194] sm:$0xf]
  %v127 = vld [vmem:[%s1 + $0x198] sm:$0xff]
  %v128 = vld [vmem:[%s1 + $0x1a0] sm:$0xf]
  %v129 = vld [vmem:[%s1 + $0x1a4] sm:$0xff]
  %v130 = vld [vmem:[%s1 + $0x1ac] sm:$0xf]
  %v131 = vld [vmem:[%s1 + $0x1b0] sm:$0xff]
  %v132 = vld [vmem:[%s1 + $0x1b8] sm:$0xf]
  %v133 = vld [vmem:[%s1 + $0x1bc] sm:$0xff]
  %v134 = vld [vmem:[%s1 + $0x1c4] sm:$0xf]
  %v135 = vld [vmem:[%s1 + $0x1c8] sm:$0xff]
  %v136 = vld [vmem:[%s1 + $0x1d0] sm:$0xf]
  %v137 = vld [vmem:[%s1 + $0x1d4] sm:$0xff]
  %v138 = vld [vmem:[%s1 + $0x1dc] sm:$0xf]
  %v139 = vld [vmem:[%s1 + $0x1e0] sm:$0xff]
  %v140 = vld [vmem:[%s1 + $0x1e8] sm:$0xf]
  %v141 = vld [vmem:[%s1 + $0x1ec] sm:$0xff]
  %v142 = vld [vmem:[%s1 + $0x1f4] sm:$0xf]
  %v143 = vld [vmem:[%s1 + $0x1f8] sm:$0xff]
  %v144 = vld [vmem:[%s1 + $0x200] sm:$0xf]
  %v145 = vld [vmem:[%s1 + $0x204] sm:$0xff]
  %v146 = vld [vmem:[%s1 + $0x20c] sm:$0xf]
  %v147 = vld [vmem:[%s1 + $0x210] sm:$0xff]
  %v148 = vld [vmem:[%s1 + $0x218] sm:$0xf]
  %v149 = vld [vmem:[%s1 + $0x21c] sm:$0xff]
  %v150 = vld [vmem:[%s1 + $0x224] sm:$0xf]
  %v151 = vld [vmem:[%s1 + $0x228] sm:$0xff]
  %v152 = vld [vmem:[%s1 + $0x230] sm:$0xf]
  %v153 = vld [vmem:[%s1 + $0x234] sm:$0xff]
  %v154 = vld [vmem:[%s1 + $0x23c] sm:$0xf]
  %v155 = vld [vmem:[%s1 + $0x240] sm:$0xff]
  %v156 = vld [vmem:[%s1 + $0x248] sm:$0xf]
  %v157 = vld [vmem:[%s1 + $0x24c] sm:$0xff]
  %v158 = vld [vmem:[%s1 + $0x254] sm:$0xf]
  %v159 = vld [vmem:[%s1 + $0x258] sm:$0xff]
  %v160 = vld [vmem:[%s1 + $0x260] sm:$0xf]
  %v161 = vld [vmem:[%s1 + $0x264] sm:$0xff]
  %v162 = vld [vmem:[%s1 + $0x26c] sm:$0xf]
  %v163 = vld [vmem:[%s1 + $0x270] sm:$0xff]
  %v164 = vld [vmem:[%s1 + $0x278] sm:$0xf]
  %v165 = vld [vmem:[%s1 + $0x27c] sm:$0xff]
  %v166 = vld [vmem:[%s1 + $0x284] sm:$0xf]
  %v167 = vld [vmem:[%s1 + $0x288] sm:$0xff]
  %v168 = vld [vmem:[%s1 + $0x290] sm:$0xf]
  %v169 = vld [vmem:[%s1 + $0x294] sm:$0xff]
  %v170 = vld [vmem:[%s1 + $0x29c] sm:$0xf]
  %v171 = vld [vmem:[%s1 + $0x2a0] sm:$0xff]
  %v172 = vld [vmem:[%s1 + $0x2a8] sm:$0xf]
  %v173 = vld [vmem:[%s1 + $0x2ac] sm:$0xff]
  %v174 = vld [vmem:[%s1 + $0x2b4] sm:$0xf]
  %v175 = vld [vmem:[%s1 + $0x2b8] sm:$0xff]
  %v176 = vld [vmem:[%s1 + $0x2c0] sm:$0xf]
  %v177 = vld [vmem:[%s1 + $0x2c4] sm:$0xff]
  %v178 = vld [vmem:[%s1 + $0x2cc] sm:$0xf]
  %v179 = vld [vmem:[%s1 + $0x2d0] sm:$0xff]
  %v180 = vld [vmem:[%s1 + $0x2d8] sm:$0xf]
  %v181 = vld [vmem:[%s1 + $0x2dc] sm:$0xff]
  %v182 = vld [vmem:[%s1 + $0x2e4] sm:$0xf]
  %v183 = vld [vmem:[%s1 + $0x2e8] sm:$0xff]
  %v184 = vld [vmem:[%s1 + $0x2f0] sm:$0xf]
  %v185 = vld [vmem:[%s1 + $0x2f4] sm:$0x11]
  %v186 = vld [vmem:[%s1 + $0x2fc] sm:$0x1]
  %v187 = vld [vmem:[%s2] sm:$0x7]
  %v189 = vlaneseq
  %v190 = vshrl.u32 %v189, 7
  %v191 = vsub.s32 0, %v190
  %v192 = vrot.slane %v187, %v191
  %v193 = vlaneseq
  %v194 = vshrl.u32 %v193, 7
  %v195 = vsub.s32 1, %v194
  %v196 = vrot.slane %v187, %v195
  %v197 = vlaneseq
  %v198 = vshrl.u32 %v197, 7
  %v199 = vsub.s32 2, %v198
  %v200 = vrot.slane %v187, %v199
  %v332 = vunpack.c.l.b16 %v59
  %v333 = vunpack.c.h.b16 %v59
  %v334 = vunpack.c.l.b16 %v60
  %v335 = vunpack.c.l.b16 %v61
  %v336 = vunpack.c.h.b16 %v61
  %v337 = vunpack.c.l.b16 %v62
  %v338 = vunpack.c.l.b16 %v63
  %v339 = vunpack.c.h.b16 %v63
  %v340 = vunpack.c.l.b16 %v64
  %v341 = vunpack.c.l.b16 %v65
  %v342 = vunpack.c.h.b16 %v65
  %v343 = vunpack.c.l.b16 %v66
  %v344 = vunpack.c.l.b16 %v67
  %v345 = vunpack.c.h.b16 %v67
  %v346 = vunpack.c.l.b16 %v68
  %v347 = vunpack.c.l.b16 %v69
  %v348 = vunpack.c.h.b16 %v69
  %v349 = vunpack.c.l.b16 %v70
  %v350 = vunpack.c.l.b16 %v71
  %v351 = vunpack.c.h.b16 %v71
  %v352 = vunpack.c.l.b16 %v72
  %v353 = vunpack.c.l.b16 %v73
  %v354 = vunpack.c.h.b16 %v73
  %v355 = vunpack.c.l.b16 %v74
  %v356 = vunpack.c.l.b16 %v75
  %v357 = vunpack.c.h.b16 %v75
  %v358 = vunpack.c.l.b16 %v76
  %v359 = vunpack.c.l.b16 %v77
  %v360 = vunpack.c.h.b16 %v77
  %v361 = vunpack.c.l.b16 %v78
  %v362 = vunpack.c.l.b16 %v79
  %v363 = vunpack.c.h.b16 %v79
  %v364 = vunpack.c.l.b16 %v80
  %v365 = vunpack.c.l.b16 %v81
  %v366 = vunpack.c.h.b16 %v81
  %v367 = vunpack.c.l.b16 %v82
  %v368 = vunpack.c.l.b16 %v83
  %v369 = vunpack.c.h.b16 %v83
  %v370 = vunpack.c.l.b16 %v84
  %v371 = vunpack.c.l.b16 %v85
  %v372 = vunpack.c.h.b16 %v85
  %v373 = vunpack.c.l.b16 %v86
  %v374 = vunpack.c.l.b16 %v87
  %v375 = vunpack.c.h.b16 %v87
  %v376 = vunpack.c.l.b16 %v88
  %v377 = vunpack.c.l.b16 %v89
  %v378 = vunpack.c.h.b16 %v89
  %v379 = vunpack.c.l.b16 %v90
  %v380 = vunpack.c.l.b16 %v91
  %v381 = vunpack.c.h.b16 %v91
  %v382 = vunpack.c.l.b16 %v92
  %v383 = vunpack.c.l.b16 %v93
  %v384 = vunpack.c.h.b16 %v93
  %v385 = vunpack.c.l.b16 %v94
  %v386 = vunpack.c.l.b16 %v95
  %v387 = vunpack.c.h.b16 %v95
  %v388 = vunpack.c.l.b16 %v96
  %v389 = vunpack.c.l.b16 %v97
  %v390 = vunpack.c.h.b16 %v97
  %v391 = vunpack.c.l.b16 %v98
  %v392 = vunpack.c.l.b16 %v99
  %v393 = vunpack.c.h.b16 %v99
  %v394 = vunpack.c.l.b16 %v100
  %v395 = vunpack.c.l.b16 %v101
  %v396 = vunpack.c.h.b16 %v101
  %v397 = vunpack.c.l.b16 %v102
  %v398 = vunpack.c.l.b16 %v103
  %v399 = vunpack.c.h.b16 %v103
  %v400 = vunpack.c.l.b16 %v104
  %v401 = vunpack.c.l.b16 %v105
  %v402 = vunpack.c.h.b16 %v105
  %v403 = vunpack.c.l.b16 %v106
  %v404 = vunpack.c.l.b16 %v107
  %v405 = vunpack.c.h.b16 %v107
  %v406 = vunpack.c.l.b16 %v108
  %v407 = vunpack.c.l.b16 %v109
  %v408 = vunpack.c.h.b16 %v109
  %v409 = vunpack.c.l.b16 %v110
  %v410 = vunpack.c.l.b16 %v111
  %v411 = vunpack.c.h.b16 %v111
  %v412 = vunpack.c.l.b16 %v112
  %v413 = vunpack.c.l.b16 %v113
  %v414 = vunpack.c.h.b16 %v113
  %v415 = vunpack.c.l.b16 %v114
  %v416 = vunpack.c.l.b16 %v115
  %v417 = vunpack.c.h.b16 %v115
  %v418 = vunpack.c.l.b16 %v116
  %v419 = vunpack.c.l.b16 %v117
  %v420 = vunpack.c.h.b16 %v117
  %v421 = vunpack.c.l.b16 %v118
  %v422 = vunpack.c.l.b16 %v119
  %v423 = vunpack.c.h.b16 %v119
  %v424 = vunpack.c.l.b16 %v120
  %v425 = vunpack.c.l.b16 %v121
  %v426 = vunpack.c.h.b16 %v121
  %v427 = vunpack.c.l.b16 %v122
  %v428 = vunpack.c.l.b16 %v123
  %v429 = vunpack.c.h.b16 %v123
  %v430 = vunpack.c.l.b16 %v124
  %v431 = vunpack.c.l.b16 %v125
  %v432 = vunpack.c.h.b16 %v125
  %v433 = vunpack.c.l.b16 %v126
  %v434 = vunpack.c.l.b16 %v127
  %v435 = vunpack.c.h.b16 %v127
  %v436 = vunpack.c.l.b16 %v128
  %v437 = vunpack.c.l.b16 %v129
  %v438 = vunpack.c.h.b16 %v129
  %v439 = vunpack.c.l.b16 %v130
  %v440 = vunpack.c.l.b16 %v131
  %v441 = vunpack.c.h.b16 %v131
  %v442 = vunpack.c.l.b16 %v132
  %v443 = vunpack.c.l.b16 %v133
  %v444 = vunpack.c.h.b16 %v133
  %v445 = vunpack.c.l.b16 %v134
  %v446 = vunpack.c.l.b16 %v135
  %v447 = vunpack.c.h.b16 %v135
  %v448 = vunpack.c.l.b16 %v136
  %v449 = vunpack.c.l.b16 %v137
  %v450 = vunpack.c.h.b16 %v137
  %v451 = vunpack.c.l.b16 %v138
  %v452 = vunpack.c.l.b16 %v139
  %v453 = vunpack.c.h.b16 %v139
  %v454 = vunpack.c.l.b16 %v140
  %v455 = vunpack.c.l.b16 %v141
  %v456 = vunpack.c.h.b16 %v141
  %v457 = vunpack.c.l.b16 %v142
  %v458 = vunpack.c.l.b16 %v143
  %v459 = vunpack.c.h.b16 %v143
  %v460 = vunpack.c.l.b16 %v144
  %v461 = vunpack.c.l.b16 %v145
  %v462 = vunpack.c.h.b16 %v145
  %v463 = vunpack.c.l.b16 %v146
  %v464 = vunpack.c.l.b16 %v147
  %v465 = vunpack.c.h.b16 %v147
  %v466 = vunpack.c.l.b16 %v148
  %v467 = vunpack.c.l.b16 %v149
  %v468 = vunpack.c.h.b16 %v149
  %v469 = vunpack.c.l.b16 %v150
  %v470 = vunpack.c.l.b16 %v151
  %v471 = vunpack.c.h.b16 %v151
  %v472 = vunpack.c.l.b16 %v152
  %v473 = vunpack.c.l.b16 %v153
  %v474 = vunpack.c.h.b16 %v153
  %v475 = vunpack.c.l.b16 %v154
  %v476 = vunpack.c.l.b16 %v155
  %v477 = vunpack.c.h.b16 %v155
  %v478 = vunpack.c.l.b16 %v156
  %v479 = vunpack.c.l.b16 %v157
  %v480 = vunpack.c.h.b16 %v157
  %v481 = vunpack.c.l.b16 %v158
  %v482 = vunpack.c.l.b16 %v159
  %v483 = vunpack.c.h.b16 %v159
  %v484 = vunpack.c.l.b16 %v160
  %v485 = vunpack.c.l.b16 %v161
  %v486 = vunpack.c.h.b16 %v161
  %v487 = vunpack.c.l.b16 %v162
  %v488 = vunpack.c.l.b16 %v163
  %v489 = vunpack.c.h.b16 %v163
  %v490 = vunpack.c.l.b16 %v164
  %v491 = vunpack.c.l.b16 %v165
  %v492 = vunpack.c.h.b16 %v165
  %v493 = vunpack.c.l.b16 %v166
  %v494 = vunpack.c.l.b16 %v167
  %v495 = vunpack.c.h.b16 %v167
  %v496 = vunpack.c.l.b16 %v168
  %v497 = vunpack.c.l.b16 %v169
  %v498 = vunpack.c.h.b16 %v169
  %v499 = vunpack.c.l.b16 %v170
  %v500 = vunpack.c.l.b16 %v171
  %v501 = vunpack.c.h.b16 %v171
  %v502 = vunpack.c.l.b16 %v172
  %v503 = vunpack.c.l.b16 %v173
  %v504 = vunpack.c.h.b16 %v173
  %v505 = vunpack.c.l.b16 %v174
  %v506 = vunpack.c.l.b16 %v175
  %v507 = vunpack.c.h.b16 %v175
  %v508 = vunpack.c.l.b16 %v176
  %v509 = vunpack.c.l.b16 %v177
  %v510 = vunpack.c.h.b16 %v177
  %v511 = vunpack.c.l.b16 %v178
  %v512 = vunpack.c.l.b16 %v179
  %v513 = vunpack.c.h.b16 %v179
  %v514 = vunpack.c.l.b16 %v180
  %v515 = vunpack.c.l.b16 %v181
  %v516 = vunpack.c.h.b16 %v181
  %v517 = vunpack.c.l.b16 %v182
  %v518 = vunpack.c.l.b16 %v183
  %v519 = vunpack.c.h.b16 %v183
  %v520 = vunpack.c.l.b16 %v184
  %v521 = vunpack.c.l.b16 %v185
  %v522 = vunpack.c.h.b16 %v185
  %v523 = vunpack.c.l.b16 %v186
  %v524 = vpack.c.b16 %v335, %v332
  %v525 = vpack.c.b16 %v336, %v333
  %v526 = vpack.c.b16 %v337, %v334
  %v527 = vpack.c.b16 %v341, %v338
  %v528 = vpack.c.b16 %v342, %v339
  %v529 = vpack.c.b16 %v343, %v340
  %v530 = vpack.c.b16 %v347, %v344
  %v531 = vpack.c.b16 %v348, %v345
  %v532 = vpack.c.b16 %v349, %v346
  %v533 = vpack.c.b16 %v353, %v350
  %v534 = vpack.c.b16 %v354, %v351
  %v535 = vpack.c.b16 %v355, %v352
  %v536 = vpack.c.b16 %v359, %v356
  %v537 = vpack.c.b16 %v360, %v357
  %v538 = vpack.c.b16 %v361, %v358
  %v539 = vpack.c.b16 %v365, %v362
  %v540 = vpack.c.b16 %v366, %v363
  %v541 = vpack.c.b16 %v367, %v364
  %v542 = vpack.c.b16 %v371, %v368
  %v543 = vpack.c.b16 %v372, %v369
  %v544 = vpack.c.b16 %v373, %v370
  %v545 = vpack.c.b16 %v377, %v374
  %v546 = vpack.c.b16 %v378, %v375
  %v547 = vpack.c.b16 %v379, %v376
  %v548 = vpack.c.b16 %v383, %v380
  %v549 = vpack.c.b16 %v384, %v381
  %v550 = vpack.c.b16 %v385, %v382
  %v551 = vpack.c.b16 %v389, %v386
  %v552 = vpack.c.b16 %v390, %v387
  %v553 = vpack.c.b16 %v391, %v388
  %v554 = vpack.c.b16 %v395, %v392
  %v555 = vpack.c.b16 %v396, %v393
  %v556 = vpack.c.b16 %v397, %v394
  %v557 = vpack.c.b16 %v401, %v398
  %v558 = vpack.c.b16 %v402, %v399
  %v559 = vpack.c.b16 %v403, %v400
  %v560 = vpack.c.b16 %v407, %v404
  %v561 = vpack.c.b16 %v408, %v405
  %v562 = vpack.c.b16 %v409, %v406
  %v563 = vpack.c.b16 %v413, %v410
  %v564 = vpack.c.b16 %v414, %v411
  %v565 = vpack.c.b16 %v415, %v412
  %v566 = vpack.c.b16 %v419, %v416
  %v567 = vpack.c.b16 %v420, %v417
  %v568 = vpack.c.b16 %v421, %v418
  %v569 = vpack.c.b16 %v425, %v422
  %v570 = vpack.c.b16 %v426, %v423
  %v571 = vpack.c.b16 %v427, %v424
  %v572 = vpack.c.b16 %v431, %v428
  %v573 = vpack.c.b16 %v432, %v429
  %v574 = vpack.c.b16 %v433, %v430
  %v575 = vpack.c.b16 %v437, %v434
  %v576 = vpack.c.b16 %v438, %v435
  %v577 = vpack.c.b16 %v439, %v436
  %v578 = vpack.c.b16 %v443, %v440
  %v579 = vpack.c.b16 %v444, %v441
  %v580 = vpack.c.b16 %v445, %v442
  %v581 = vpack.c.b16 %v449, %v446
  %v582 = vpack.c.b16 %v450, %v447
  %v583 = vpack.c.b16 %v451, %v448
  %v584 = vpack.c.b16 %v455, %v452
  %v585 = vpack.c.b16 %v456, %v453
  %v586 = vpack.c.b16 %v457, %v454
  %v587 = vpack.c.b16 %v461, %v458
  %v588 = vpack.c.b16 %v462, %v459
  %v589 = vpack.c.b16 %v463, %v460
  %v590 = vpack.c.b16 %v467, %v464
  %v591 = vpack.c.b16 %v468, %v465
  %v592 = vpack.c.b16 %v469, %v466
  %v593 = vpack.c.b16 %v473, %v470
  %v594 = vpack.c.b16 %v474, %v471
  %v595 = vpack.c.b16 %v475, %v472
  %v596 = vpack.c.b16 %v479, %v476
  %v597 = vpack.c.b16 %v480, %v477
  %v598 = vpack.c.b16 %v481, %v478
  %v599 = vpack.c.b16 %v485, %v482
  %v600 = vpack.c.b16 %v486, %v483
  %v601 = vpack.c.b16 %v487, %v484
  %v602 = vpack.c.b16 %v491, %v488
  %v603 = vpack.c.b16 %v492, %v489
  %v604 = vpack.c.b16 %v493, %v490
  %v605 = vpack.c.b16 %v497, %v494
  %v606 = vpack.c.b16 %v498, %v495
  %v607 = vpack.c.b16 %v499, %v496
  %v608 = vpack.c.b16 %v503, %v500
  %v609 = vpack.c.b16 %v504, %v501
  %v610 = vpack.c.b16 %v505, %v502
  %v611 = vpack.c.b16 %v509, %v506
  %v612 = vpack.c.b16 %v510, %v507
  %v613 = vpack.c.b16 %v511, %v508
  %v614 = vpack.c.b16 %v515, %v512
  %v615 = vpack.c.b16 %v516, %v513
  %v616 = vpack.c.b16 %v517, %v514
  %v617 = vpack.c.b16 %v521, %v518
  %v618 = vpack.c.b16 %v522, %v519
  %v619 = vpack.c.b16 %v523, %v520
  %vm713 = vcmask 998400
  %v715 = vsel %vm713, %v58, 0
  %vm717 = vcmask 1044480
  %v719 = vsel %vm717, %v617, 0
  %v722 = vsel %vm717, %v618, 0
  %v725 = vsel %vm717, %v619, 0
  %727 = vmatprep.subr.bf16.mxu0 %v525
  %728 = vmatpush1.bf16.msra.mxu0 %v524
  %729 = vmatprep.subr.bf16.mxu0 %v528
  %730 = vmatpush1.bf16.msra.mxu0 %v527
  %731 = vmatprep.subr.bf16.mxu0 %v531
  %732 = vmatpush1.bf16.msra.mxu0 %v530
  %733 = vmatprep.subr.bf16.mxu0 %v534
  %734 = vmatpush1.bf16.msra.mxu0 %v533
  %735 = vmatprep.subr.bf16.mxu0 %v537
  %736 = vmatpush1.bf16.msra.mxu0 %v536
  %737 = vmatprep.subr.bf16.mxu0 %v540
  %738 = vmatpush1.bf16.msra.mxu0 %v539
  %739 = vmatprep.subr.bf16.mxu0 %v543
  %740 = vmatpush1.bf16.msra.mxu0 %v542
  %741 = vmatprep.subr.bf16.mxu0 %v546
  %742 = vmatpush1.bf16.msra.mxu0 %v545
  %743 = vmatprep.subr.bf16.mxu0 %v549
  %744 = vmatpush1.bf16.msra.mxu0 %v548
  %745 = vmatprep.subr.bf16.mxu0 %v552
  %746 = vmatpush1.bf16.msra.mxu0 %v551
  %747 = vmatprep.subr.bf16.mxu0 %v555
  %748 = vmatpush1.bf16.msra.mxu0 %v554
  %749 = vmatprep.subr.bf16.mxu0 %v558
  %750 = vmatpush1.bf16.msra.mxu0 %v557
  %751 = vmatprep.subr.bf16.mxu0 %v561
  %752 = vmatpush1.bf16.msra.mxu0 %v560
  %753 = vmatprep.subr.bf16.mxu0 %v564
  %754 = vmatpush1.bf16.msra.mxu0 %v563
  %755 = vmatprep.subr.bf16.mxu0 %v567
  %756 = vmatpush1.bf16.msra.mxu0 %v566
  %757 = vmatprep.subr.bf16.mxu0 %v570
  %758 = vmatpush1.bf16.msra.mxu0 %v569
  %759 = vmatprep.mubr.bf16.mxu0 %v56
  %760 = vmatmul.mubr.bf16.gmra.mrb[0].mxu0 %v55
  %v761 = vpop.f32.mrb[0].mxu0
  %v762 = vadd.f32 %v192, %v761
  %v763 = vpop.f32.mrb[0].mxu0
  %v764 = vadd.f32 %v196, %v763
  %v765 = vpop.f32.mrb[0].mxu0
  %v766 = vadd.f32 %v192, %v765
  %v767 = vpop.f32.mrb[0].mxu0
  %v768 = vadd.f32 %v196, %v767
  %769 = vdwg.mxu0
  %770 = vmatprep.subr.bf16.mxu0 %v573
  %771 = vmatpush1.bf16.msra.mxu0 %v572
  %772 = vmatprep.subr.bf16.mxu0 %v576
  %773 = vmatpush1.bf16.msra.mxu0 %v575
  %774 = vmatprep.subr.bf16.mxu0 %v579
  %775 = vmatpush1.bf16.msra.mxu0 %v578
  %776 = vmatprep.subr.bf16.mxu0 %v582
  %777 = vmatpush1.bf16.msra.mxu0 %v581
  %778 = vmatprep.subr.bf16.mxu0 %v585
  %779 = vmatpush1.bf16.msra.mxu0 %v584
  %780 = vmatprep.subr.bf16.mxu0 %v588
  %781 = vmatpush1.bf16.msra.mxu0 %v587
  %782 = vmatprep.subr.bf16.mxu0 %v591
  %783 = vmatpush1.bf16.msra.mxu0 %v590
  %784 = vmatprep.subr.bf16.mxu0 %v594
  %785 = vmatpush1.bf16.msra.mxu0 %v593
  %786 = vmatprep.subr.bf16.mxu0 %v597
  %787 = vmatpush1.bf16.msra.mxu0 %v596
  %788 = vmatprep.subr.bf16.mxu0 %v600
  %789 = vmatpush1.bf16.msra.mxu0 %v599
  %790 = vmatprep.subr.bf16.mxu0 %v603
  %791 = vmatpush1.bf16.msra.mxu0 %v602
  %792 = vmatprep.subr.bf16.mxu0 %v606
  %793 = vmatpush1.bf16.msra.mxu0 %v605
  %794 = vmatprep.subr.bf16.mxu0 %v609
  %795 = vmatpush1.bf16.msra.mxu0 %v608
  %796 = vmatprep.subr.bf16.mxu0 %v612
  %797 = vmatpush1.bf16.msra.mxu0 %v611
  %798 = vmatprep.subr.bf16.mxu0 %v615
  %799 = vmatpush1.bf16.msra.mxu0 %v614
  %800 = vmatprep.subr.bf16.mxu0 %v722
  %801 = vmatpush1.bf16.msra.mxu0 %v719
  %802 = vmatprep.mubr.bf16.mxu0 %v715
  %803 = vmatmul.mubr.bf16.gmra.mrb[0].mxu0 %v57
  %v804 = vpop.f32.mrb[0].mxu0
  %v805 = vadd.f32 %v762, %v804
  %v806 = vpop.f32.mrb[0].mxu0
  %v807 = vadd.f32 %v764, %v806
  %v808 = vpop.f32.mrb[0].mxu0
  %v809 = vadd.f32 %v766, %v808
  %v810 = vpop.f32.mrb[0].mxu0
  %v811 = vadd.f32 %v768, %v810
  %812 = vdwg.mxu0
  %813 = vmatprep.subr.bf16.mxu0 0
  %814 = vmatpush1.bf16.msra.mxu0 %v526
  %815 = vmatprep.subr.bf16.mxu0 0
  %816 = vmatpush1.bf16.msra.mxu0 %v529
  %817 = vmatprep.subr.bf16.mxu0 0
  %818 = vmatpush1.bf16.msra.mxu0 %v532
  %819 = vmatprep.subr.bf16.mxu0 0
  %820 = vmatpush1.bf16.msra.mxu0 %v535
  %821 = vmatprep.subr.bf16.mxu0 0
  %822 = vmatpush1.bf16.msra.mxu0 %v538
  %823 = vmatprep.subr.bf16.mxu0 0
  %824 = vmatpush1.bf16.msra.mxu0 %v541
  %825 = vmatprep.subr.bf16.mxu0 0
  %826 = vmatpush1.bf16.msra.mxu0 %v544
  %827 = vmatprep.subr.bf16.mxu0 0
  %828 = vmatpush1.bf16.msra.mxu0 %v547
  %829 = vmatprep.subr.bf16.mxu0 0
  %830 = vmatpush1.bf16.msra.mxu0 %v550
  %831 = vmatprep.subr.bf16.mxu0 0
  %832 = vmatpush1.bf16.msra.mxu0 %v553
  %833 = vmatprep.subr.bf16.mxu0 0
  %834 = vmatpush1.bf16.msra.mxu0 %v556
  %835 = vmatprep.subr.bf16.mxu0 0
  %836 = vmatpush1.bf16.msra.mxu0 %v559
  %837 = vmatprep.subr.bf16.mxu0 0
  %838 = vmatpush1.bf16.msra.mxu0 %v562
  %839 = vmatprep.subr.bf16.mxu0 0
  %840 = vmatpush1.bf16.msra.mxu0 %v565
  %841 = vmatprep.subr.bf16.mxu0 0
  %842 = vmatpush1.bf16.msra.mxu0 %v568
  %843 = vmatprep.subr.bf16.mxu0 0
  %844 = vmatpush1.bf16.msra.mxu0 %v571
  %845 = vmatprep.mubr.bf16.mxu0 %v56
  %846 = vmatmul.mubr.bf16.gmra.mrb[0].mxu0 %v55
  %v847 = vpop.f32.mrb[0].mxu0
  %v848 = vadd.f32 %v200, %v847
  %v849 = vpop.f32.mrb[0].mxu0
  %v850 = vpop.f32.mrb[0].mxu0
  %v851 = vadd.f32 %v200, %v850
  %v852 = vpop.f32.mrb[0].mxu0
  %853 = vdwg.mxu0
  %854 = vmatprep.subr.bf16.mxu0 0
  %855 = vmatpush1.bf16.msra.mxu0 %v574
  %856 = vmatprep.subr.bf16.mxu0 0
  %857 = vmatpush1.bf16.msra.mxu0 %v577
  %858 = vmatprep.subr.bf16.mxu0 0
  %859 = vmatpush1.bf16.msra.mxu0 %v580
  %860 = vmatprep.subr.bf16.mxu0 0
  %861 = vmatpush1.bf16.msra.mxu0 %v583
  %862 = vmatprep.subr.bf16.mxu0 0
  %863 = vmatpush1.bf16.msra.mxu0 %v586
  %864 = vmatprep.subr.bf16.mxu0 0
  %865 = vmatpush1.bf16.msra.mxu0 %v589
  %866 = vmatprep.subr.bf16.mxu0 0
  %867 = vmatpush1.bf16.msra.mxu0 %v592
  %868 = vmatprep.subr.bf16.mxu0 0
  %869 = vmatpush1.bf16.msra.mxu0 %v595
  %870 = vmatprep.subr.bf16.mxu0 0
  %871 = vmatpush1.bf16.msra.mxu0 %v598
  %872 = vmatprep.subr.bf16.mxu0 0
  %873 = vmatpush1.bf16.msra.mxu0 %v601
  %874 = vmatprep.subr.bf16.mxu0 0
  %875 = vmatpush1.bf16.msra.mxu0 %v604
  %876 = vmatprep.subr.bf16.mxu0 0
  %877 = vmatpush1.bf16.msra.mxu0 %v607
  %878 = vmatprep.subr.bf16.mxu0 0
  %879 = vmatpush1.bf16.msra.mxu0 %v610
  %880 = vmatprep.subr.bf16.mxu0 0
  %881 = vmatpush1.bf16.msra.mxu0 %v613
  %882 = vmatprep.subr.bf16.mxu0 0
  %883 = vmatpush1.bf16.msra.mxu0 %v616
  %884 = vmatprep.subr.bf16.mxu0 0
  %885 = vmatpush1.bf16.msra.mxu0 %v725
  %886 = vmatprep.mubr.bf16.mxu0 %v715
  %887 = vmatmul.mubr.bf16.gmra.mrb[0].mxu0 %v57
  %v888 = vpop.f32.mrb[0].mxu0
  %v889 = vadd.f32 %v848, %v888
  %v890 = vpop.f32.mrb[0].mxu0
  %v891 = vpop.f32.mrb[0].mxu0
  %v892 = vadd.f32 %v851, %v891
  %v893 = vpop.f32.mrb[0].mxu0
  %894 = vdwg.mxu0
  %vm895 = vcmp.gt.f32.partialorder %v805, 0.0
  %vm896 = vcmp.gt.f32.partialorder %v807, 0.0
  %vm897 = vcmp.gt.f32.partialorder %v889, 0.0
  %vm898 = vcmp.gt.f32.partialorder %v809, 0.0
  %vm899 = vcmp.gt.f32.partialorder %v811, 0.0
  %vm900 = vcmp.gt.f32.partialorder %v892, 0.0
  %v901 = vmul.f32 %v805, 0.2
  %v902 = vmul.f32 %v807, 0.2
  %v903 = vmul.f32 %v889, 0.2
  %v904 = vmul.f32 %v809, 0.2
  %v905 = vmul.f32 %v811, 0.2
  %v906 = vmul.f32 %v892, 0.2
  %v907 = vsel %vm895, %v805, %v901
  %v908 = vsel %vm896, %v807, %v902
  %v909 = vsel %vm897, %v889, %v903
  %v910 = vsel %vm898, %v809, %v904
  %v911 = vsel %vm899, %v811, %v905
  %v912 = vsel %vm900, %v892, %v906
  %v913 = vpack.c.bf16 %v910, %v907
  %v914 = vpack.c.bf16 %v911, %v908
  %v915 = vpack.c.bf16 %v912, %v909
  %916 = vst [vmem:[#allocation2] sm:$0xff] %v913
  %917 = vst [vmem:[#allocation2 + $0x8] sm:$0xff] %v914
  %vm918 = vcmask 785408
  %919 = vst.msk [vmem:[#allocation2 + $0x10] sm:$0xff] %vm918, %v915
  %v920 = vld [vmem:[%s3] sm:$0xf]
  %v921 = vld [vmem:[%s3 + $0x4] sm:$0xf]
  %v922 = vld [vmem:[%s3 + $0x8] sm:$0xf]
  %v923 = vld [vmem:[%s3 + $0xc] sm:$0xf]
  %v924 = vld [vmem:[%s3 + $0x10] sm:$0xf]
  %v925 = vld [vmem:[%s3 + $0x14] sm:$0xf]
  %v926 = vld [vmem:[%s3 + $0x18] sm:$0xf]
  %v927 = vld [vmem:[%s3 + $0x1c] sm:$0xf]
  %v928 = vld [vmem:[%s3 + $0x20] sm:$0xf]
  %v929 = vld [vmem:[%s3 + $0x24] sm:$0xf]
  %v930 = vld [vmem:[%s3 + $0x28] sm:$0xf]
  %v931 = vld [vmem:[%s3 + $0x2c] sm:$0xf]
  %v932 = vld [vmem:[%s4] sm:$0x1]
  %v933 = vld [vmem:[#allocation2] sm:$0xff]
  %v935 = vlaneseq
  %v936 = vshrl.u32 %v935, 7
  %v937 = vsub.s32 0, %v936
  %v938 = vrot.slane %v932, %v937
  %v952 = vunpack.c.l.b16 %v920
  %v953 = vunpack.c.l.b16 %v921
  %v954 = vunpack.c.l.b16 %v922
  %v955 = vunpack.c.l.b16 %v923
  %v956 = vunpack.c.l.b16 %v924
  %v957 = vunpack.c.l.b16 %v925
  %v958 = vunpack.c.l.b16 %v926
  %v959 = vunpack.c.l.b16 %v927
  %v960 = vunpack.c.l.b16 %v928
  %v961 = vunpack.c.l.b16 %v929
  %v962 = vunpack.c.l.b16 %v930
  %v963 = vunpack.c.l.b16 %v931
  %v964 = vpack.c.b16 %v953, %v952
  %v965 = vpack.c.b16 %v955, %v954
  %v966 = vpack.c.b16 %v957, %v956
  %v967 = vpack.c.b16 %v959, %v958
  %v968 = vpack.c.b16 %v961, %v960
  %v969 = vpack.c.b16 %v963, %v962
  %v977 = vsel %vm918, %v933, 0
  %979 = vmatprep.subr.bf16.mxu0 0
  %980 = vmatpush1.bf16.msra.mxu0 %v964
  %981 = vmatprep.subr.bf16.mxu0 0
  %982 = vmatpush1.bf16.msra.mxu0 %v965
  %983 = vmatprep.subr.bf16.mxu0 0
  %984 = vmatpush1.bf16.msra.mxu0 %v966
  %985 = vmatprep.subr.bf16.mxu0 0
  %986 = vmatpush1.bf16.msra.mxu0 %v967
  %987 = vmatprep.subr.bf16.mxu0 0
  %988 = vmatpush1.bf16.msra.mxu0 %v968
  %989 = vmatprep.subr.bf16.mxu0 0
  %990 = vmatpush1.bf16.msra.mxu0 %v969
  %991 = vmatprep.subr.bf16.mxu0 0
  %992 = vmatpush1.bf16.msra.mxu0 0
  %993 = vmatprep.subr.bf16.mxu0 0
  %994 = vmatpush1.bf16.msra.mxu0 0
  %995 = vmatprep.subr.bf16.mxu0 0
  %996 = vmatpush1.bf16.msra.mxu0 0
  %997 = vmatprep.subr.bf16.mxu0 0
  %998 = vmatpush1.bf16.msra.mxu0 0
  %999 = vmatprep.subr.bf16.mxu0 0
  %1000 = vmatpush1.bf16.msra.mxu0 0
  %1001 = vmatprep.subr.bf16.mxu0 0
  %1002 = vmatpush1.bf16.msra.mxu0 0
  %1003 = vmatprep.subr.bf16.mxu0 0
  %1004 = vmatpush1.bf16.msra.mxu0 0
  %1005 = vmatprep.subr.bf16.mxu0 0
  %1006 = vmatpush1.bf16.msra.mxu0 0
  %1007 = vmatprep.subr.bf16.mxu0 0
  %1008 = vmatpush1.bf16.msra.mxu0 0
  %1009 = vmatprep.subr.bf16.mxu0 0
  %1010 = vmatpush1.bf16.msra.mxu0 0
  %1011 = vmatprep.mubr.bf16.mxu0 0
  %1012 = vmatmul.mubr.bf16.gmra.mrb[0].mxu0 %v977
  %v1013 = vpop.f32.mrb[0].mxu0
  %v1014 = vadd.f32 %v938, %v1013
  %v1015 = vpop.f32.mrb[0].mxu0
  %v1016 = vpop.f32.mrb[0].mxu0
  %v1017 = vadd.f32 %v938, %v1016
  %v1018 = vpop.f32.mrb[0].mxu0
  %1019 = vdwg.mxu0
  %vm1020 = vcmp.gt.f32.partialorder %v1014, 0.0
  %vm1021 = vcmp.gt.f32.partialorder %v1017, 0.0
  %v1022 = vmul.f32 %v1014, 0.2
  %v1023 = vmul.f32 %v1017, 0.2
  %v1024 = vsel %vm1020, %v1014, %v1022
  %v1025 = vsel %vm1021, %v1017, %v1023
  %v1026 = vpack.c.bf16 %v1025, %v1024
  %vm1027 = vcmask 523264
  %1028 = vst.msk [vmem:[#allocation3] sm:$0xff] %vm1027, %v1026
  %v1029 = vld [vmem:[#allocation2] sm:$0xff]
  %1031 = vrot.lane.b32.xlu0 %v1029, 96
  %v1032 = vpop.permute.xlu0 %1031
  %v1034 = vsel %vm918, %v1032, 0
  %1036 = vmatprep.subr.bf16.mxu0 0
  %1037 = vmatpush1.bf16.msra.mxu0 %v964
  %1038 = vmatprep.subr.bf16.mxu0 0
  %1039 = vmatpush1.bf16.msra.mxu0 %v965
  %1040 = vmatprep.subr.bf16.mxu0 0
  %1041 = vmatpush1.bf16.msra.mxu0 %v966
  %1042 = vmatprep.subr.bf16.mxu0 0
  %1043 = vmatpush1.bf16.msra.mxu0 %v967
  %1044 = vmatprep.subr.bf16.mxu0 0
  %1045 = vmatpush1.bf16.msra.mxu0 %v968
  %1046 = vmatprep.subr.bf16.mxu0 0
  %1047 = vmatpush1.bf16.msra.mxu0 %v969
  %1048 = vmatprep.subr.bf16.mxu0 0
  %1049 = vmatpush1.bf16.msra.mxu0 0
  %1050 = vmatprep.subr.bf16.mxu0 0
  %1051 = vmatpush1.bf16.msra.mxu0 0
  %1052 = vmatprep.subr.bf16.mxu0 0
  %1053 = vmatpush1.bf16.msra.mxu0 0
  %1054 = vmatprep.subr.bf16.mxu0 0
  %1055 = vmatpush1.bf16.msra.mxu0 0
  %1056 = vmatprep.subr.bf16.mxu0 0
  %1057 = vmatpush1.bf16.msra.mxu0 0
  %1058 = vmatprep.subr.bf16.mxu0 0
  %1059 = vmatpush1.bf16.msra.mxu0 0
  %1060 = vmatprep.subr.bf16.mxu0 0
  %1061 = vmatpush1.bf16.msra.mxu0 0
  %1062 = vmatprep.subr.bf16.mxu0 0
  %1063 = vmatpush1.bf16.msra.mxu0 0
  %1064 = vmatprep.subr.bf16.mxu0 0
  %1065 = vmatpush1.bf16.msra.mxu0 0
  %1066 = vmatprep.subr.bf16.mxu0 0
  %1067 = vmatpush1.bf16.msra.mxu0 0
  %1068 = vmatprep.mubr.bf16.mxu0 0
  %1069 = vmatmul.mubr.bf16.gmra.mrb[0].mxu0 %v1034
  %v1070 = vpop.f32.mrb[0].mxu0
  %v1071 = vadd.f32 %v938, %v1070
  %v1072 = vpop.f32.mrb[0].mxu0
  %v1073 = vpop.f32.mrb[0].mxu0
  %v1074 = vadd.f32 %v938, %v1073
  %v1075 = vpop.f32.mrb[0].mxu0
  %1076 = vdwg.mxu0
  %vm1077 = vcmp.gt.f32.partialorder %v1071, 0.0
  %vm1078 = vcmp.gt.f32.partialorder %v1074, 0.0
  %v1079 = vmul.f32 %v1071, 0.2
  %v1080 = vmul.f32 %v1074, 0.2
  %v1081 = vsel %vm1077, %v1071, %v1079
  %v1082 = vsel %vm1078, %v1074, %v1080
  %v1083 = vpack.c.bf16 %v1082, %v1081
  %1085 = vrot.lane.b32.xlu0 %v1083, 64
  %v1086 = vpop.permute.xlu0 %1085
  %vm1088 = vcmask 1048064
  %1089 = vst.msk [vmem:[#allocation3] sm:$0xff] %vm1088, %v1086
  %v1090 = vld [vmem:[#allocation2] sm:$0xff]
  %v1091 = vld [vmem:[#allocation2 + $0x8] sm:$0xff]
  %1094 = vrot.lane.b32.xlu0 %v1090, 64
  %v1095 = vpop.permute.xlu0 %1094
  %1096 = vrot.lane.b32.xlu0 %v1091, 64
  %v1097 = vpop.permute.xlu0 %1096
  %vm1098 = vcmask 523264
  %v1099 = vsel %vm1098, %v1095, %v1097
  %v1101 = vsel %vm918, %v1099, 0
  %1103 = vmatprep.subr.bf16.mxu0 0
  %1104 = vmatpush1.bf16.msra.mxu0 %v964
  %1105 = vmatprep.subr.bf16.mxu0 0
  %1106 = vmatpush1.bf16.msra.mxu0 %v965
  %1107 = vmatprep.subr.bf16.mxu0 0
  %1108 = vmatpush1.bf16.msra.mxu0 %v966
  %1109 = vmatprep.subr.bf16.mxu0 0
  %1110 = vmatpush1.bf16.msra.mxu0 %v967
  %1111 = vmatprep.subr.bf16.mxu0 0
  %1112 = vmatpush1.bf16.msra.mxu0 %v968
  %1113 = vmatprep.subr.bf16.mxu0 0
  %1114 = vmatpush1.bf16.msra.mxu0 %v969
  %1115 = vmatprep.subr.bf16.mxu0 0
  %1116 = vmatpush1.bf16.msra.mxu0 0
  %1117 = vmatprep.subr.bf16.mxu0 0
  %1118 = vmatpush1.bf16.msra.mxu0 0
  %1119 = vmatprep.subr.bf16.mxu0 0
  %1120 = vmatpush1.bf16.msra.mxu0 0
  %1121 = vmatprep.subr.bf16.mxu0 0
  %1122 = vmatpush1.bf16.msra.mxu0 0
  %1123 = vmatprep.subr.bf16.mxu0 0
  %1124 = vmatpush1.bf16.msra.mxu0 0
  %1125 = vmatprep.subr.bf16.mxu0 0
  %1126 = vmatpush1.bf16.msra.mxu0 0
  %1127 = vmatprep.subr.bf16.mxu0 0
  %1128 = vmatpush1.bf16.msra.mxu0 0
  %1129 = vmatprep.subr.bf16.mxu0 0
  %1130 = vmatpush1.bf16.msra.mxu0 0
  %1131 = vmatprep.subr.bf16.mxu0 0
  %1132 = vmatpush1.bf16.msra.mxu0 0
  %1133 = vmatprep.subr.bf16.mxu0 0
  %1134 = vmatpush1.bf16.msra.mxu0 0
  %1135 = vmatprep.mubr.bf16.mxu0 0
  %1136 = vmatmul.mubr.bf16.gmra.mrb[0].mxu0 %v1101
  %v1137 = vpop.f32.mrb[0].mxu0
  %v1138 = vadd.f32 %v938, %v1137
  %v1139 = vpop.f32.mrb[0].mxu0
  %v1140 = vpop.f32.mrb[0].mxu0
  %v1141 = vadd.f32 %v938, %v1140
  %v1142 = vpop.f32.mrb[0].mxu0
  %1143 = vdwg.mxu0
  %vm1144 = vcmp.gt.f32.partialorder %v1138, 0.0
  %vm1145 = vcmp.gt.f32.partialorder %v1141, 0.0
  %v1146 = vmul.f32 %v1138, 0.2
  %v1147 = vmul.f32 %v1141, 0.2
  %v1148 = vsel %vm1144, %v1138, %v1146
  %v1149 = vsel %vm1145, %v1141, %v1147
  %v1150 = vpack.c.bf16 %v1149, %v1148
  %1151 = vst.msk [vmem:[#allocation3 + $0x8] sm:$0xff] %vm1027, %v1150
  %v1152 = vld [vmem:[#allocation2] sm:$0xff]
  %v1153 = vld [vmem:[#allocation2 + $0x8] sm:$0xff]
  %1156 = vrot.lane.b32.xlu0 %v1152, 32
  %v1157 = vpop.permute.xlu0 %1156
  %1158 = vrot.lane.b32.xlu0 %v1153, 32
  %v1159 = vpop.permute.xlu0 %1158
  %vm1160 = vcmask 261120
  %v1161 = vsel %vm1160, %v1157, %v1159
  %v1163 = vsel %vm918, %v1161, 0
  %1165 = vmatprep.subr.bf16.mxu0 0
  %1166 = vmatpush1.bf16.msra.mxu0 %v964
  %1167 = vmatprep.subr.bf16.mxu0 0
  %1168 = vmatpush1.bf16.msra.mxu0 %v965
  %1169 = vmatprep.subr.bf16.mxu0 0
  %1170 = vmatpush1.bf16.msra.mxu0 %v966
  %1171 = vmatprep.subr.bf16.mxu0 0
  %1172 = vmatpush1.bf16.msra.mxu0 %v967
  %1173 = vmatprep.subr.bf16.mxu0 0
  %1174 = vmatpush1.bf16.msra.mxu0 %v968
  %1175 = vmatprep.subr.bf16.mxu0 0
  %1176 = vmatpush1.bf16.msra.mxu0 %v969
  %1177 = vmatprep.subr.bf16.mxu0 0
  %1178 = vmatpush1.bf16.msra.mxu0 0
  %1179 = vmatprep.subr.bf16.mxu0 0
  %1180 = vmatpush1.bf16.msra.mxu0 0
  %1181 = vmatprep.subr.bf16.mxu0 0
  %1182 = vmatpush1.bf16.msra.mxu0 0
  %1183 = vmatprep.subr.bf16.mxu0 0
  %1184 = vmatpush1.bf16.msra.mxu0 0
  %1185 = vmatprep.subr.bf16.mxu0 0
  %1186 = vmatpush1.bf16.msra.mxu0 0
  %1187 = vmatprep.subr.bf16.mxu0 0
  %1188 = vmatpush1.bf16.msra.mxu0 0
  %1189 = vmatprep.subr.bf16.mxu0 0
  %1190 = vmatpush1.bf16.msra.mxu0 0
  %1191 = vmatprep.subr.bf16.mxu0 0
  %1192 = vmatpush1.bf16.msra.mxu0 0
  %1193 = vmatprep.subr.bf16.mxu0 0
  %1194 = vmatpush1.bf16.msra.mxu0 0
  %1195 = vmatprep.subr.bf16.mxu0 0
  %1196 = vmatpush1.bf16.msra.mxu0 0
  %1197 = vmatprep.mubr.bf16.mxu0 0
  %1198 = vmatmul.mubr.bf16.gmra.mrb[0].mxu0 %v1163
  %v1199 = vpop.f32.mrb[0].mxu0
  %v1200 = vadd.f32 %v938, %v1199
  %v1201 = vpop.f32.mrb[0].mxu0
  %v1202 = vpop.f32.mrb[0].mxu0
  %v1203 = vadd.f32 %v938, %v1202
  %v1204 = vpop.f32.mrb[0].mxu0
  %1205 = vdwg.mxu0
  %vm1206 = vcmp.gt.f32.partialorder %v1200, 0.0
  %vm1207 = vcmp.gt.f32.partialorder %v1203, 0.0
  %v1208 = vmul.f32 %v1200, 0.2
  %v1209 = vmul.f32 %v1203, 0.2
  %v1210 = vsel %vm1206, %v1200, %v1208
  %v1211 = vsel %vm1207, %v1203, %v1209
  %v1212 = vpack.c.bf16 %v1211, %v1210
  %1214 = vrot.lane.b32.xlu0 %v1212, 64
  %v1215 = vpop.permute.xlu0 %1214
  %1217 = vst.msk [vmem:[#allocation3 + $0x8] sm:$0xff] %vm1088, %v1215
  %v1218 = vld [vmem:[#allocation2 + $0x8] sm:$0xff]
  %v1220 = vsel %vm918, %v1218, 0
  %1222 = vmatprep.subr.bf16.mxu0 0
  %1223 = vmatpush1.bf16.msra.mxu0 %v964
  %1224 = vmatprep.subr.bf16.mxu0 0
  %1225 = vmatpush1.bf16.msra.mxu0 %v965
  %1226 = vmatprep.subr.bf16.mxu0 0
  %1227 = vmatpush1.bf16.msra.mxu0 %v966
  %1228 = vmatprep.subr.bf16.mxu0 0
  %1229 = vmatpush1.bf16.msra.mxu0 %v967
  %1230 = vmatprep.subr.bf16.mxu0 0
  %1231 = vmatpush1.bf16.msra.mxu0 %v968
  %1232 = vmatprep.subr.bf16.mxu0 0
  %1233 = vmatpush1.bf16.msra.mxu0 %v969
  %1234 = vmatprep.subr.bf16.mxu0 0
  %1235 = vmatpush1.bf16.msra.mxu0 0
  %1236 = vmatprep.subr.bf16.mxu0 0
  %1237 = vmatpush1.bf16.msra.mxu0 0
  %1238 = vmatprep.subr.bf16.mxu0 0
  %1239 = vmatpush1.bf16.msra.mxu0 0
  %1240 = vmatprep.subr.bf16.mxu0 0
  %1241 = vmatpush1.bf16.msra.mxu0 0
  %1242 = vmatprep.subr.bf16.mxu0 0
  %1243 = vmatpush1.bf16.msra.mxu0 0
  %1244 = vmatprep.subr.bf16.mxu0 0
  %1245 = vmatpush1.bf16.msra.mxu0 0
  %1246 = vmatprep.subr.bf16.mxu0 0
  %1247 = vmatpush1.bf16.msra.mxu0 0
  %1248 = vmatprep.subr.bf16.mxu0 0
  %1249 = vmatpush1.bf16.msra.mxu0 0
  %1250 = vmatprep.subr.bf16.mxu0 0
  %1251 = vmatpush1.bf16.msra.mxu0 0
  %1252 = vmatprep.subr.bf16.mxu0 0
  %1253 = vmatpush1.bf16.msra.mxu0 0
  %1254 = vmatprep.mubr.bf16.mxu0 0
  %1255 = vmatmul.mubr.bf16.gmra.mrb[0].mxu0 %v1220
  %v1256 = vpop.f32.mrb[0].mxu0
  %v1257 = vadd.f32 %v938, %v1256
  %v1258 = vpop.f32.mrb[0].mxu0
  %v1259 = vpop.f32.mrb[0].mxu0
  %v1260 = vadd.f32 %v938, %v1259
  %v1261 = vpop.f32.mrb[0].mxu0
  %1262 = vdwg.mxu0
  %vm1263 = vcmp.gt.f32.partialorder %v1257, 0.0
  %vm1264 = vcmp.gt.f32.partialorder %v1260, 0.0
  %v1265 = vmul.f32 %v1257, 0.2
  %v1266 = vmul.f32 %v1260, 0.2
  %v1267 = vsel %vm1263, %v1257, %v1265
  %v1268 = vsel %vm1264, %v1260, %v1266
  %v1269 = vpack.c.bf16 %v1268, %v1267
  %1270 = vst.msk [vmem:[#allocation3 + $0x10] sm:$0xff] %vm1027, %v1269
  %v1271 = vld [vmem:[#allocation2 + $0x8] sm:$0xff]
  %1273 = vrot.lane.b32.xlu0 %v1271, 96
  %v1274 = vpop.permute.xlu0 %1273
  %v1276 = vsel %vm918, %v1274, 0
  %1278 = vmatprep.subr.bf16.mxu0 0
  %1279 = vmatpush1.bf16.msra.mxu0 %v964
  %1280 = vmatprep.subr.bf16.mxu0 0
  %1281 = vmatpush1.bf16.msra.mxu0 %v965
  %1282 = vmatprep.subr.bf16.mxu0 0
  %1283 = vmatpush1.bf16.msra.mxu0 %v966
  %1284 = vmatprep.subr.bf16.mxu0 0
  %1285 = vmatpush1.bf16.msra.mxu0 %v967
  %1286 = vmatprep.subr.bf16.mxu0 0
  %1287 = vmatpush1.bf16.msra.mxu0 %v968
  %1288 = vmatprep.subr.bf16.mxu0 0
  %1289 = vmatpush1.bf16.msra.mxu0 %v969
  %1290 = vmatprep.subr.bf16.mxu0 0
  %1291 = vmatpush1.bf16.msra.mxu0 0
  %1292 = vmatprep.subr.bf16.mxu0 0
  %1293 = vmatpush1.bf16.msra.mxu0 0
  %1294 = vmatprep.subr.bf16.mxu0 0
  %1295 = vmatpush1.bf16.msra.mxu0 0
  %1296 = vmatprep.subr.bf16.mxu0 0
  %1297 = vmatpush1.bf16.msra.mxu0 0
  %1298 = vmatprep.subr.bf16.mxu0 0
  %1299 = vmatpush1.bf16.msra.mxu0 0
  %1300 = vmatprep.subr.bf16.mxu0 0
  %1301 = vmatpush1.bf16.msra.mxu0 0
  %1302 = vmatprep.subr.bf16.mxu0 0
  %1303 = vmatpush1.bf16.msra.mxu0 0
  %1304 = vmatprep.subr.bf16.mxu0 0
  %1305 = vmatpush1.bf16.msra.mxu0 0
  %1306 = vmatprep.subr.bf16.mxu0 0
  %1307 = vmatpush1.bf16.msra.mxu0 0
  %1308 = vmatprep.subr.bf16.mxu0 0
  %1309 = vmatpush1.bf16.msra.mxu0 0
  %1310 = vmatprep.mubr.bf16.mxu0 0
  %1311 = vmatmul.mubr.bf16.gmra.mrb[0].mxu0 %v1276
  %v1312 = vpop.f32.mrb[0].mxu0
  %v1313 = vadd.f32 %v938, %v1312
  %v1314 = vpop.f32.mrb[0].mxu0
  %v1315 = vpop.f32.mrb[0].mxu0
  %v1316 = vadd.f32 %v938, %v1315
  %v1317 = vpop.f32.mrb[0].mxu0
  %1318 = vdwg.mxu0
  %vm1319 = vcmp.gt.f32.partialorder %v1313, 0.0
  %vm1320 = vcmp.gt.f32.partialorder %v1316, 0.0
  %v1321 = vmul.f32 %v1313, 0.2
  %v1322 = vmul.f32 %v1316, 0.2
  %v1323 = vsel %vm1319, %v1313, %v1321
  %v1324 = vsel %vm1320, %v1316, %v1322
  %v1325 = vpack.c.bf16 %v1324, %v1323
  %1327 = vrot.lane.b32.xlu0 %v1325, 64
  %v1328 = vpop.permute.xlu0 %1327
  %1330 = vst.msk [vmem:[#allocation3 + $0x10] sm:$0xff] %vm1088, %v1328
  %v1331 = vld [vmem:[#allocation2 + $0x8] sm:$0xff]
  %v1332 = vld [vmem:[#allocation2 + $0x10] sm:$0xff]
  %1335 = vrot.lane.b32.xlu0 %v1331, 64
  %v1336 = vpop.permute.xlu0 %1335
  %1337 = vrot.lane.b32.xlu0 %v1332, 64
  %v1338 = vpop.permute.xlu0 %1337
  %v1339 = vsel %vm1098, %v1336, %v1338
  %v1341 = vsel %vm918, %v1339, 0
  %1343 = vmatprep.subr.bf16.mxu0 0
  %1344 = vmatpush1.bf16.msra.mxu0 %v964
  %1345 = vmatprep.subr.bf16.mxu0 0
  %1346 = vmatpush1.bf16.msra.mxu0 %v965
  %1347 = vmatprep.subr.bf16.mxu0 0
  %1348 = vmatpush1.bf16.msra.mxu0 %v966
  %1349 = vmatprep.subr.bf16.mxu0 0
  %1350 = vmatpush1.bf16.msra.mxu0 %v967
  %1351 = vmatprep.subr.bf16.mxu0 0
  %1352 = vmatpush1.bf16.msra.mxu0 %v968
  %1353 = vmatprep.subr.bf16.mxu0 0
  %1354 = vmatpush1.bf16.msra.mxu0 %v969
  %1355 = vmatprep.subr.bf16.mxu0 0
  %1356 = vmatpush1.bf16.msra.mxu0 0
  %1357 = vmatprep.subr.bf16.mxu0 0
  %1358 = vmatpush1.bf16.msra.mxu0 0
  %1359 = vmatprep.subr.bf16.mxu0 0
  %1360 = vmatpush1.bf16.msra.mxu0 0
  %1361 = vmatprep.subr.bf16.mxu0 0
  %1362 = vmatpush1.bf16.msra.mxu0 0
  %1363 = vmatprep.subr.bf16.mxu0 0
  %1364 = vmatpush1.bf16.msra.mxu0 0
  %1365 = vmatprep.subr.bf16.mxu0 0
  %1366 = vmatpush1.bf16.msra.mxu0 0
  %1367 = vmatprep.subr.bf16.mxu0 0
  %1368 = vmatpush1.bf16.msra.mxu0 0
  %1369 = vmatprep.subr.bf16.mxu0 0
  %1370 = vmatpush1.bf16.msra.mxu0 0
  %1371 = vmatprep.subr.bf16.mxu0 0
  %1372 = vmatpush1.bf16.msra.mxu0 0
  %1373 = vmatprep.subr.bf16.mxu0 0
  %1374 = vmatpush1.bf16.msra.mxu0 0
  %1375 = vmatprep.mubr.bf16.mxu0 0
  %1376 = vmatmul.mubr.bf16.gmra.mrb[0].mxu0 %v1341
  %v1377 = vpop.f32.mrb[0].mxu0
  %v1378 = vadd.f32 %v938, %v1377
  %v1379 = vpop.f32.mrb[0].mxu0
  %v1380 = vpop.f32.mrb[0].mxu0
  %v1381 = vadd.f32 %v938, %v1380
  %v1382 = vpop.f32.mrb[0].mxu0
  %1383 = vdwg.mxu0
  %vm1384 = vcmp.gt.f32.partialorder %v1378, 0.0
  %vm1385 = vcmp.gt.f32.partialorder %v1381, 0.0
  %v1386 = vmul.f32 %v1378, 0.2
  %v1387 = vmul.f32 %v1381, 0.2
  %v1388 = vsel %vm1384, %v1378, %v1386
  %v1389 = vsel %vm1385, %v1381, %v1387
  %v1390 = vpack.c.bf16 %v1389, %v1388
  %1391 = vst.msk [vmem:[#allocation3 + $0x18] sm:$0xff] %vm1027, %v1390
  %v1392 = vld [vmem:[#allocation2 + $0x8] sm:$0xff]
  %v1393 = vld [vmem:[#allocation2 + $0x10] sm:$0xff]
  %1396 = vrot.lane.b32.xlu0 %v1392, 32
  %v1397 = vpop.permute.xlu0 %1396
  %1398 = vrot.lane.b32.xlu0 %v1393, 32
  %v1399 = vpop.permute.xlu0 %1398
  %v1400 = vsel %vm1160, %v1397, %v1399
  %v1402 = vsel %vm918, %v1400, 0
  %1404 = vmatprep.subr.bf16.mxu0 0
  %1405 = vmatpush1.bf16.msra.mxu0 %v964
  %1406 = vmatprep.subr.bf16.mxu0 0
  %1407 = vmatpush1.bf16.msra.mxu0 %v965
  %1408 = vmatprep.subr.bf16.mxu0 0
  %1409 = vmatpush1.bf16.msra.mxu0 %v966
  %1410 = vmatprep.subr.bf16.mxu0 0
  %1411 = vmatpush1.bf16.msra.mxu0 %v967
  %1412 = vmatprep.subr.bf16.mxu0 0
  %1413 = vmatpush1.bf16.msra.mxu0 %v968
  %1414 = vmatprep.subr.bf16.mxu0 0
  %1415 = vmatpush1.bf16.msra.mxu0 %v969
  %1416 = vmatprep.subr.bf16.mxu0 0
  %1417 = vmatpush1.bf16.msra.mxu0 0
  %1418 = vmatprep.subr.bf16.mxu0 0
  %1419 = vmatpush1.bf16.msra.mxu0 0
  %1420 = vmatprep.subr.bf16.mxu0 0
  %1421 = vmatpush1.bf16.msra.mxu0 0
  %1422 = vmatprep.subr.bf16.mxu0 0
  %1423 = vmatpush1.bf16.msra.mxu0 0
  %1424 = vmatprep.subr.bf16.mxu0 0
  %1425 = vmatpush1.bf16.msra.mxu0 0
  %1426 = vmatprep.subr.bf16.mxu0 0
  %1427 = vmatpush1.bf16.msra.mxu0 0
  %1428 = vmatprep.subr.bf16.mxu0 0
  %1429 = vmatpush1.bf16.msra.mxu0 0
  %1430 = vmatprep.subr.bf16.mxu0 0
  %1431 = vmatpush1.bf16.msra.mxu0 0
  %1432 = vmatprep.subr.bf16.mxu0 0
  %1433 = vmatpush1.bf16.msra.mxu0 0
  %1434 = vmatprep.subr.bf16.mxu0 0
  %1435 = vmatpush1.bf16.msra.mxu0 0
  %1436 = vmatprep.mubr.bf16.mxu0 0
  %1437 = vmatmul.mubr.bf16.gmra.mrb[0].mxu0 %v1402
  %v1438 = vpop.f32.mrb[0].mxu0
  %v1439 = vadd.f32 %v938, %v1438
  %v1440 = vpop.f32.mrb[0].mxu0
  %v1441 = vpop.f32.mrb[0].mxu0
  %v1442 = vadd.f32 %v938, %v1441
  %v1443 = vpop.f32.mrb[0].mxu0
  %1444 = vdwg.mxu0
  %vm1445 = vcmp.gt.f32.partialorder %v1439, 0.0
  %vm1446 = vcmp.gt.f32.partialorder %v1442, 0.0
  %v1447 = vmul.f32 %v1439, 0.2
  %v1448 = vmul.f32 %v1442, 0.2
  %v1449 = vsel %vm1445, %v1439, %v1447
  %v1450 = vsel %vm1446, %v1442, %v1448
  %v1451 = vpack.c.bf16 %v1450, %v1449
  %1453 = vrot.lane.b32.xlu0 %v1451, 64
  %v1454 = vpop.permute.xlu0 %1453
  %1456 = vst.msk [vmem:[#allocation3 + $0x18] sm:$0xff] %vm1088, %v1454
  %v1457 = vld [vmem:[#allocation2 + $0x10] sm:$0xff]
  %v1459 = vsel %vm918, %v1457, 0
  %1461 = vmatprep.subr.bf16.mxu0 0
  %1462 = vmatpush1.bf16.msra.mxu0 %v964
  %1463 = vmatprep.subr.bf16.mxu0 0
  %1464 = vmatpush1.bf16.msra.mxu0 %v965
  %1465 = vmatprep.subr.bf16.mxu0 0
  %1466 = vmatpush1.bf16.msra.mxu0 %v966
  %1467 = vmatprep.subr.bf16.mxu0 0
  %1468 = vmatpush1.bf16.msra.mxu0 %v967
  %1469 = vmatprep.subr.bf16.mxu0 0
  %1470 = vmatpush1.bf16.msra.mxu0 %v968
  %1471 = vmatprep.subr.bf16.mxu0 0
  %1472 = vmatpush1.bf16.msra.mxu0 %v969
  %1473 = vmatprep.subr.bf16.mxu0 0
  %1474 = vmatpush1.bf16.msra.mxu0 0
  %1475 = vmatprep.subr.bf16.mxu0 0
  %1476 = vmatpush1.bf16.msra.mxu0 0
  %1477 = vmatprep.subr.bf16.mxu0 0
  %1478 = vmatpush1.bf16.msra.mxu0 0
  %1479 = vmatprep.subr.bf16.mxu0 0
  %1480 = vmatpush1.bf16.msra.mxu0 0
  %1481 = vmatprep.subr.bf16.mxu0 0
  %1482 = vmatpush1.bf16.msra.mxu0 0
  %1483 = vmatprep.subr.bf16.mxu0 0
  %1484 = vmatpush1.bf16.msra.mxu0 0
  %1485 = vmatprep.subr.bf16.mxu0 0
  %1486 = vmatpush1.bf16.msra.mxu0 0
  %1487 = vmatprep.subr.bf16.mxu0 0
  %1488 = vmatpush1.bf16.msra.mxu0 0
  %1489 = vmatprep.subr.bf16.mxu0 0
  %1490 = vmatpush1.bf16.msra.mxu0 0
  %1491 = vmatprep.subr.bf16.mxu0 0
  %1492 = vmatpush1.bf16.msra.mxu0 0
  %1493 = vmatprep.mubr.bf16.mxu0 0
  %1494 = vmatmul.mubr.bf16.gmra.mrb[0].mxu0 %v1459
  %v1495 = vpop.f32.mrb[0].mxu0
  %v1496 = vadd.f32 %v938, %v1495
  %v1497 = vpop.f32.mrb[0].mxu0
  %v1498 = vpop.f32.mrb[0].mxu0
  %v1499 = vadd.f32 %v938, %v1498
  %v1500 = vpop.f32.mrb[0].mxu0
  %1501 = vdwg.mxu0
  %vm1502 = vcmp.gt.f32.partialorder %v1496, 0.0
  %vm1503 = vcmp.gt.f32.partialorder %v1499, 0.0
  %v1504 = vmul.f32 %v1496, 0.2
  %v1505 = vmul.f32 %v1499, 0.2
  %v1506 = vsel %vm1502, %v1496, %v1504
  %v1507 = vsel %vm1503, %v1499, %v1505
  %v1508 = vpack.c.bf16 %v1507, %v1506
  %1509 = vst.msk [vmem:[#allocation3 + $0x20] sm:$0xff] %vm1027, %v1508
  %v1510 = vld [vmem:[%s5] sm:$0xf]
  %v1511 = vld [vmem:[%s5 + $0x4] sm:$0xf]
  %v1512 = vld [vmem:[%s5 + $0x8] sm:$0xf]
  %v1513 = vld [vmem:[%s5 + $0xc] sm:$0xf]
  %v1514 = vld [vmem:[%s5 + $0x10] sm:$0xf]
  %v1515 = vld [vmem:[%s5 + $0x14] sm:$0xf]
  %v1516 = vld [vmem:[%s5 + $0x18] sm:$0xf]
  %v1517 = vld [vmem:[%s5 + $0x1c] sm:$0xf]
  %v1518 = vld [vmem:[%s5 + $0x20] sm:$0xf]
  %v1519 = vld [vmem:[%s5 + $0x24] sm:$0xf]
  %v1520 = vld [vmem:[%s5 + $0x28] sm:$0xf]
  %v1521 = vld [vmem:[%s5 + $0x2c] sm:$0xf]
  %v1522 = vld [vmem:[%s5 + $0x30] sm:$0xf]
  %v1523 = vld [vmem:[%s5 + $0x34] sm:$0xf]
  %v1524 = vld [vmem:[%s5 + $0x38] sm:$0xf]
  %v1525 = vld [vmem:[%s5 + $0x3c] sm:$0xf]
  %v1526 = vld [vmem:[%s5 + $0x40] sm:$0xf]
  %v1527 = vld [vmem:[%s5 + $0x44] sm:$0xf]
  %v1528 = vld [vmem:[%s5 + $0x48] sm:$0xf]
  %v1529 = vld [vmem:[%s5 + $0x4c] sm:$0xf]
  %v1530 = vld [vmem:[%s5 + $0x50] sm:$0xf]
  %v1531 = vld [vmem:[%s5 + $0x54] sm:$0xf]
  %v1532 = vld [vmem:[%s5 + $0x58] sm:$0xf]
  %v1533 = vld [vmem:[%s5 + $0x5c] sm:$0xf]
  %v1534 = vld [vmem:[%s6] sm:$0x1]
  %v1535 = vld [vmem:[#allocation3] sm:$0xff]
  %v1536 = vld [vmem:[#allocation3 + $0x8] sm:$0xff]
  %v1538 = vlaneseq
  %v1539 = vshrl.u32 %v1538, 7
  %v1540 = vsub.s32 0, %v1539
  %v1541 = vrot.slane %v1534, %v1540
  %v1567 = vunpack.c.l.b16 %v1510
  %v1568 = vunpack.c.l.b16 %v1511
  %v1569 = vunpack.c.l.b16 %v1512
  %v1570 = vunpack.c.l.b16 %v1513
  %v1571 = vunpack.c.l.b16 %v1514
  %v1572 = vunpack.c.l.b16 %v1515
  %v1573 = vunpack.c.l.b16 %v1516
  %v1574 = vunpack.c.l.b16 %v1517
  %v1575 = vunpack.c.l.b16 %v1518
  %v1576 = vunpack.c.l.b16 %v1519
  %v1577 = vunpack.c.l.b16 %v1520
  %v1578 = vunpack.c.l.b16 %v1521
  %v1579 = vunpack.c.l.b16 %v1522
  %v1580 = vunpack.c.l.b16 %v1523
  %v1581 = vunpack.c.l.b16 %v1524
  %v1582 = vunpack.c.l.b16 %v1525
  %v1583 = vunpack.c.l.b16 %v1526
  %v1584 = vunpack.c.l.b16 %v1527
  %v1585 = vunpack.c.l.b16 %v1528
  %v1586 = vunpack.c.l.b16 %v1529
  %v1587 = vunpack.c.l.b16 %v1530
  %v1588 = vunpack.c.l.b16 %v1531
  %v1589 = vunpack.c.l.b16 %v1532
  %v1590 = vunpack.c.l.b16 %v1533
  %v1591 = vpack.c.b16 %v1568, %v1567
  %v1592 = vpack.c.b16 %v1570, %v1569
  %v1593 = vpack.c.b16 %v1572, %v1571
  %v1594 = vpack.c.b16 %v1574, %v1573
  %v1595 = vpack.c.b16 %v1576, %v1575
  %v1596 = vpack.c.b16 %v1578, %v1577
  %v1597 = vpack.c.b16 %v1580, %v1579
  %v1598 = vpack.c.b16 %v1582, %v1581
  %v1599 = vpack.c.b16 %v1584, %v1583
  %v1600 = vpack.c.b16 %v1586, %v1585
  %v1601 = vpack.c.b16 %v1588, %v1587
  %v1602 = vpack.c.b16 %v1590, %v1589
  %v1616 = vsel %vm1027, %v1536, 0
  %1618 = vmatprep.subr.bf16.mxu0 0
  %1619 = vmatpush1.bf16.msra.mxu0 %v1591
  %1620 = vmatprep.subr.bf16.mxu0 0
  %1621 = vmatpush1.bf16.msra.mxu0 %v1592
  %1622 = vmatprep.subr.bf16.mxu0 0
  %1623 = vmatpush1.bf16.msra.mxu0 %v1593
  %1624 = vmatprep.subr.bf16.mxu0 0
  %1625 = vmatpush1.bf16.msra.mxu0 %v1594
  %1626 = vmatprep.subr.bf16.mxu0 0
  %1627 = vmatpush1.bf16.msra.mxu0 %v1595
  %1628 = vmatprep.subr.bf16.mxu0 0
  %1629 = vmatpush1.bf16.msra.mxu0 %v1596
  %1630 = vmatprep.subr.bf16.mxu0 0
  %1631 = vmatpush1.bf16.msra.mxu0 %v1597
  %1632 = vmatprep.subr.bf16.mxu0 0
  %1633 = vmatpush1.bf16.msra.mxu0 %v1598
  %1634 = vmatprep.subr.bf16.mxu0 0
  %1635 = vmatpush1.bf16.msra.mxu0 %v1599
  %1636 = vmatprep.subr.bf16.mxu0 0
  %1637 = vmatpush1.bf16.msra.mxu0 %v1600
  %1638 = vmatprep.subr.bf16.mxu0 0
  %1639 = vmatpush1.bf16.msra.mxu0 %v1601
  %1640 = vmatprep.subr.bf16.mxu0 0
  %1641 = vmatpush1.bf16.msra.mxu0 %v1602
  %1642 = vmatprep.subr.bf16.mxu0 0
  %1643 = vmatpush1.bf16.msra.mxu0 0
  %1644 = vmatprep.subr.bf16.mxu0 0
  %1645 = vmatpush1.bf16.msra.mxu0 0
  %1646 = vmatprep.subr.bf16.mxu0 0
  %1647 = vmatpush1.bf16.msra.mxu0 0
  %1648 = vmatprep.subr.bf16.mxu0 0
  %1649 = vmatpush1.bf16.msra.mxu0 0
  %1650 = vmatprep.mubr.bf16.mxu0 %v1616
  %1651 = vmatmul.mubr.bf16.gmra.mrb[0].mxu0 %v1535
  %v1652 = vpop.f32.mrb[0].mxu0
  %v1653 = vadd.f32 %v1541, %v1652
  %v1654 = vpop.f32.mrb[0].mxu0
  %v1655 = vpop.f32.mrb[0].mxu0
  %v1656 = vadd.f32 %v1541, %v1655
  %v1657 = vpop.f32.mrb[0].mxu0
  %1658 = vdwg.mxu0
  %vm1659 = vcmp.gt.f32.partialorder %v1653, 0.0
  %vm1660 = vcmp.gt.f32.partialorder %v1656, 0.0
  %v1661 = vmul.f32 %v1653, 0.2
  %v1662 = vmul.f32 %v1656, 0.2
  %v1663 = vsel %vm1659, %v1653, %v1661
  %v1664 = vsel %vm1660, %v1656, %v1662
  %v1665 = vpack.c.bf16 %v1664, %v1663
  %1666 = vst [vmem:[#allocation4] sm:$0xff] %v1665
  %v1667 = vld [vmem:[#allocation3 + $0x8] sm:$0xff]
  %v1668 = vld [vmem:[#allocation3 + $0x10] sm:$0xff]
  %v1670 = vsel %vm1027, %v1668, 0
  %1672 = vmatprep.subr.bf16.mxu0 0
  %1673 = vmatpush1.bf16.msra.mxu0 %v1591
  %1674 = vmatprep.subr.bf16.mxu0 0
  %1675 = vmatpush1.bf16.msra.mxu0 %v1592
  %1676 = vmatprep.subr.bf16.mxu0 0
  %1677 = vmatpush1.bf16.msra.mxu0 %v1593
  %1678 = vmatprep.subr.bf16.mxu0 0
  %1679 = vmatpush1.bf16.msra.mxu0 %v1594
  %1680 = vmatprep.subr.bf16.mxu0 0
  %1681 = vmatpush1.bf16.msra.mxu0 %v1595
  %1682 = vmatprep.subr.bf16.mxu0 0
  %1683 = vmatpush1.bf16.msra.mxu0 %v1596
  %1684 = vmatprep.subr.bf16.mxu0 0
  %1685 = vmatpush1.bf16.msra.mxu0 %v1597
  %1686 = vmatprep.subr.bf16.mxu0 0
  %1687 = vmatpush1.bf16.msra.mxu0 %v1598
  %1688 = vmatprep.subr.bf16.mxu0 0
  %1689 = vmatpush1.bf16.msra.mxu0 %v1599
  %1690 = vmatprep.subr.bf16.mxu0 0
  %1691 = vmatpush1.bf16.msra.mxu0 %v1600
  %1692 = vmatprep.subr.bf16.mxu0 0
  %1693 = vmatpush1.bf16.msra.mxu0 %v1601
  %1694 = vmatprep.subr.bf16.mxu0 0
  %1695 = vmatpush1.bf16.msra.mxu0 %v1602
  %1696 = vmatprep.subr.bf16.mxu0 0
  %1697 = vmatpush1.bf16.msra.mxu0 0
  %1698 = vmatprep.subr.bf16.mxu0 0
  %1699 = vmatpush1.bf16.msra.mxu0 0
  %1700 = vmatprep.subr.bf16.mxu0 0
  %1701 = vmatpush1.bf16.msra.mxu0 0
  %1702 = vmatprep.subr.bf16.mxu0 0
  %1703 = vmatpush1.bf16.msra.mxu0 0
  %1704 = vmatprep.mubr.bf16.mxu0 %v1670
  %1705 = vmatmul.mubr.bf16.gmra.mrb[0].mxu0 %v1667
  %v1706 = vpop.f32.mrb[0].mxu0
  %v1707 = vadd.f32 %v1541, %v1706
  %v1708 = vpop.f32.mrb[0].mxu0
  %v1709 = vpop.f32.mrb[0].mxu0
  %v1710 = vadd.f32 %v1541, %v1709
  %v1711 = vpop.f32.mrb[0].mxu0
  %1712 = vdwg.mxu0
  %vm1713 = vcmp.gt.f32.partialorder %v1707, 0.0
  %vm1714 = vcmp.gt.f32.partialorder %v1710, 0.0
  %v1715 = vmul.f32 %v1707, 0.2
  %v1716 = vmul.f32 %v1710, 0.2
  %v1717 = vsel %vm1713, %v1707, %v1715
  %v1718 = vsel %vm1714, %v1710, %v1716
  %v1719 = vpack.c.bf16 %v1718, %v1717
  %1720 = vst [vmem:[#allocation4 + $0x8] sm:$0xff] %v1719
  %v1721 = vld [vmem:[#allocation3 + $0x10] sm:$0xff]
  %v1722 = vld [vmem:[#allocation3 + $0x18] sm:$0xff]
  %v1724 = vsel %vm1027, %v1722, 0
  %1726 = vmatprep.subr.bf16.mxu0 0
  %1727 = vmatpush1.bf16.msra.mxu0 %v1591
  %1728 = vmatprep.subr.bf16.mxu0 0
  %1729 = vmatpush1.bf16.msra.mxu0 %v1592
  %1730 = vmatprep.subr.bf16.mxu0 0
  %1731 = vmatpush1.bf16.msra.mxu0 %v1593
  %1732 = vmatprep.subr.bf16.mxu0 0
  %1733 = vmatpush1.bf16.msra.mxu0 %v1594
  %1734 = vmatprep.subr.bf16.mxu0 0
  %1735 = vmatpush1.bf16.msra.mxu0 %v1595
  %1736 = vmatprep.subr.bf16.mxu0 0
  %1737 = vmatpush1.bf16.msra.mxu0 %v1596
  %1738 = vmatprep.subr.bf16.mxu0 0
  %1739 = vmatpush1.bf16.msra.mxu0 %v1597
  %1740 = vmatprep.subr.bf16.mxu0 0
  %1741 = vmatpush1.bf16.msra.mxu0 %v1598
  %1742 = vmatprep.subr.bf16.mxu0 0
  %1743 = vmatpush1.bf16.msra.mxu0 %v1599
  %1744 = vmatprep.subr.bf16.mxu0 0
  %1745 = vmatpush1.bf16.msra.mxu0 %v1600
  %1746 = vmatprep.subr.bf16.mxu0 0
  %1747 = vmatpush1.bf16.msra.mxu0 %v1601
  %1748 = vmatprep.subr.bf16.mxu0 0
  %1749 = vmatpush1.bf16.msra.mxu0 %v1602
  %1750 = vmatprep.subr.bf16.mxu0 0
  %1751 = vmatpush1.bf16.msra.mxu0 0
  %1752 = vmatprep.subr.bf16.mxu0 0
  %1753 = vmatpush1.bf16.msra.mxu0 0
  %1754 = vmatprep.subr.bf16.mxu0 0
  %1755 = vmatpush1.bf16.msra.mxu0 0
  %1756 = vmatprep.subr.bf16.mxu0 0
  %1757 = vmatpush1.bf16.msra.mxu0 0
  %1758 = vmatprep.mubr.bf16.mxu0 %v1724
  %1759 = vmatmul.mubr.bf16.gmra.mrb[0].mxu0 %v1721
  %v1760 = vpop.f32.mrb[0].mxu0
  %v1761 = vadd.f32 %v1541, %v1760
  %v1762 = vpop.f32.mrb[0].mxu0
  %v1763 = vpop.f32.mrb[0].mxu0
  %v1764 = vadd.f32 %v1541, %v1763
  %v1765 = vpop.f32.mrb[0].mxu0
  %1766 = vdwg.mxu0
  %vm1767 = vcmp.gt.f32.partialorder %v1761, 0.0
  %vm1768 = vcmp.gt.f32.partialorder %v1764, 0.0
  %v1769 = vmul.f32 %v1761, 0.2
  %v1770 = vmul.f32 %v1764, 0.2
  %v1771 = vsel %vm1767, %v1761, %v1769
  %v1772 = vsel %vm1768, %v1764, %v1770
  %v1773 = vpack.c.bf16 %v1772, %v1771
  %1774 = vst [vmem:[#allocation4 + $0x10] sm:$0xff] %v1773
  %v1775 = vld [vmem:[#allocation3 + $0x18] sm:$0xff]
  %v1776 = vld [vmem:[#allocation3 + $0x20] sm:$0xff]
  %v1778 = vsel %vm1027, %v1776, 0
  %1780 = vmatprep.subr.bf16.mxu0 0
  %1781 = vmatpush1.bf16.msra.mxu0 %v1591
  %1782 = vmatprep.subr.bf16.mxu0 0
  %1783 = vmatpush1.bf16.msra.mxu0 %v1592
  %1784 = vmatprep.subr.bf16.mxu0 0
  %1785 = vmatpush1.bf16.msra.mxu0 %v1593
  %1786 = vmatprep.subr.bf16.mxu0 0
  %1787 = vmatpush1.bf16.msra.mxu0 %v1594
  %1788 = vmatprep.subr.bf16.mxu0 0
  %1789 = vmatpush1.bf16.msra.mxu0 %v1595
  %1790 = vmatprep.subr.bf16.mxu0 0
  %1791 = vmatpush1.bf16.msra.mxu0 %v1596
  %1792 = vmatprep.subr.bf16.mxu0 0
  %1793 = vmatpush1.bf16.msra.mxu0 %v1597
  %1794 = vmatprep.subr.bf16.mxu0 0
  %1795 = vmatpush1.bf16.msra.mxu0 %v1598
  %1796 = vmatprep.subr.bf16.mxu0 0
  %1797 = vmatpush1.bf16.msra.mxu0 %v1599
  %1798 = vmatprep.subr.bf16.mxu0 0
  %1799 = vmatpush1.bf16.msra.mxu0 %v1600
  %1800 = vmatprep.subr.bf16.mxu0 0
  %1801 = vmatpush1.bf16.msra.mxu0 %v1601
  %1802 = vmatprep.subr.bf16.mxu0 0
  %1803 = vmatpush1.bf16.msra.mxu0 %v1602
  %1804 = vmatprep.subr.bf16.mxu0 0
  %1805 = vmatpush1.bf16.msra.mxu0 0
  %1806 = vmatprep.subr.bf16.mxu0 0
  %1807 = vmatpush1.bf16.msra.mxu0 0
  %1808 = vmatprep.subr.bf16.mxu0 0
  %1809 = vmatpush1.bf16.msra.mxu0 0
  %1810 = vmatprep.subr.bf16.mxu0 0
  %1811 = vmatpush1.bf16.msra.mxu0 0
  %1812 = vmatprep.mubr.bf16.mxu0 %v1778
  %1813 = vmatmul.mubr.bf16.gmra.mrb[0].mxu0 %v1775
  %v1814 = vpop.f32.mrb[0].mxu0
  %v1815 = vadd.f32 %v1541, %v1814
  %v1816 = vpop.f32.mrb[0].mxu0
  %v1817 = vpop.f32.mrb[0].mxu0
  %v1818 = vadd.f32 %v1541, %v1817
  %v1819 = vpop.f32.mrb[0].mxu0
  %1820 = vdwg.mxu0
  %vm1821 = vcmp.gt.f32.partialorder %v1815, 0.0
  %vm1822 = vcmp.gt.f32.partialorder %v1818, 0.0
  %v1823 = vmul.f32 %v1815, 0.2
  %v1824 = vmul.f32 %v1818, 0.2
  %v1825 = vsel %vm1821, %v1815, %v1823
  %v1826 = vsel %vm1822, %v1818, %v1824
  %v1827 = vpack.c.bf16 %v1826, %v1825
  %1828 = vst [vmem:[#allocation4 + $0x18] sm:$0xff] %v1827
  %v1829 = vld [vmem:[%s7] sm:$0xff]
  %v1830 = vld [vmem:[%s7 + $0x8] sm:$0xff]
  %v1831 = vld [vmem:[%s7 + $0x10] sm:$0xff]
  %v1832 = vld [vmem:[%s7 + $0x18] sm:$0xff]
  %v1833 = vld [vmem:[%s7 + $0x20] sm:$0xff]
  %v1834 = vld [vmem:[%s7 + $0x28] sm:$0xff]
  %v1835 = vld [vmem:[%s7 + $0x30] sm:$0xff]
  %v1836 = vld [vmem:[%s7 + $0x38] sm:$0xff]
  %v1837 = vld [vmem:[%s7 + $0x40] sm:$0xff]
  %v1838 = vld [vmem:[%s7 + $0x48] sm:$0xff]
  %v1839 = vld [vmem:[%s7 + $0x50] sm:$0xff]
  %v1840 = vld [vmem:[%s7 + $0x58] sm:$0xff]
  %v1841 = vld [vmem:[%s7 + $0x60] sm:$0xff]
  %v1842 = vld [vmem:[%s7 + $0x68] sm:$0xff]
  %v1843 = vld [vmem:[%s7 + $0x70] sm:$0xff]
  %v1844 = vld [vmem:[%s7 + $0x78] sm:$0xff]
  %v1845 = vld [vmem:[%s7 + $0x80] sm:$0xff]
  %v1846 = vld [vmem:[%s7 + $0x88] sm:$0xff]
  %v1847 = vld [vmem:[%s7 + $0x90] sm:$0xff]
  %v1848 = vld [vmem:[%s7 + $0x98] sm:$0xff]
  %v1849 = vld [vmem:[%s7 + $0xa0] sm:$0xff]
  %v1850 = vld [vmem:[%s7 + $0xa8] sm:$0xff]
  %v1851 = vld [vmem:[%s7 + $0xb0] sm:$0xff]
  %v1852 = vld [vmem:[%s7 + $0xb8] sm:$0xff]
  %v1853 = vld [vmem:[%s7 + $0xc0] sm:$0xff]
  %v1854 = vld [vmem:[%s7 + $0xc8] sm:$0xff]
  %v1855 = vld [vmem:[%s7 + $0xd0] sm:$0xff]
  %v1856 = vld [vmem:[%s7 + $0xd8] sm:$0xff]
  %v1857 = vld [vmem:[%s7 + $0xe0] sm:$0xff]
  %v1858 = vld [vmem:[%s7 + $0xe8] sm:$0xff]
  %v1859 = vld [vmem:[%s7 + $0xf0] sm:$0xff]
  %v1860 = vld [vmem:[%s7 + $0xf8] sm:$0xff]
  %v1861 = vld [vmem:[%s7 + $0x100] sm:$0xff]
  %v1862 = vld [vmem:[%s7 + $0x108] sm:$0xff]
  %v1863 = vld [vmem:[%s7 + $0x110] sm:$0xff]
  %v1864 = vld [vmem:[%s7 + $0x118] sm:$0xff]
  %v1865 = vld [vmem:[%s7 + $0x120] sm:$0xff]
  %v1866 = vld [vmem:[%s7 + $0x128] sm:$0xff]
  %v1867 = vld [vmem:[%s7 + $0x130] sm:$0xff]
  %v1868 = vld [vmem:[%s7 + $0x138] sm:$0xff]
  %v1869 = vld [vmem:[%s7 + $0x140] sm:$0xff]
  %v1870 = vld [vmem:[%s7 + $0x148] sm:$0xff]
  %v1871 = vld [vmem:[%s7 + $0x150] sm:$0xff]
  %v1872 = vld [vmem:[%s7 + $0x158] sm:$0xff]
  %v1873 = vld [vmem:[%s7 + $0x160] sm:$0xff]
  %v1874 = vld [vmem:[%s7 + $0x168] sm:$0xff]
  %v1875 = vld [vmem:[%s7 + $0x170] sm:$0xff]
  %v1876 = vld [vmem:[%s7 + $0x178] sm:$0xff]
  %v1877 = vld [vmem:[#allocation4] sm:$0xff]
  %v1878 = vld [vmem:[#allocation4 + $0x8] sm:$0xff]
  %v1879 = vld [vmem:[#allocation4 + $0x10] sm:$0xff]
  %v1928 = vunpack.c.l.b16 %v1829
  %v1929 = vunpack.c.h.b16 %v1829
  %v1930 = vunpack.c.l.b16 %v1830
  %v1931 = vunpack.c.h.b16 %v1830
  %v1932 = vunpack.c.l.b16 %v1831
  %v1933 = vunpack.c.h.b16 %v1831
  %v1934 = vunpack.c.l.b16 %v1832
  %v1935 = vunpack.c.h.b16 %v1832
  %v1936 = vunpack.c.l.b16 %v1833
  %v1937 = vunpack.c.h.b16 %v1833
  %v1938 = vunpack.c.l.b16 %v1834
  %v1939 = vunpack.c.h.b16 %v1834
  %v1940 = vunpack.c.l.b16 %v1835
  %v1941 = vunpack.c.h.b16 %v1835
  %v1942 = vunpack.c.l.b16 %v1836
  %v1943 = vunpack.c.h.b16 %v1836
  %v1944 = vunpack.c.l.b16 %v1837
  %v1945 = vunpack.c.h.b16 %v1837
  %v1946 = vunpack.c.l.b16 %v1838
  %v1947 = vunpack.c.h.b16 %v1838
  %v1948 = vunpack.c.l.b16 %v1839
  %v1949 = vunpack.c.h.b16 %v1839
  %v1950 = vunpack.c.l.b16 %v1840
  %v1951 = vunpack.c.h.b16 %v1840
  %v1952 = vunpack.c.l.b16 %v1841
  %v1953 = vunpack.c.h.b16 %v1841
  %v1954 = vunpack.c.l.b16 %v1842
  %v1955 = vunpack.c.h.b16 %v1842
  %v1956 = vunpack.c.l.b16 %v1843
  %v1957 = vunpack.c.h.b16 %v1843
  %v1958 = vunpack.c.l.b16 %v1844
  %v1959 = vunpack.c.h.b16 %v1844
  %v1960 = vunpack.c.l.b16 %v1845
  %v1961 = vunpack.c.h.b16 %v1845
  %v1962 = vunpack.c.l.b16 %v1846
  %v1963 = vunpack.c.h.b16 %v1846
  %v1964 = vunpack.c.l.b16 %v1847
  %v1965 = vunpack.c.h.b16 %v1847
  %v1966 = vunpack.c.l.b16 %v1848
  %v1967 = vunpack.c.h.b16 %v1848
  %v1968 = vunpack.c.l.b16 %v1849
  %v1969 = vunpack.c.h.b16 %v1849
  %v1970 = vunpack.c.l.b16 %v1850
  %v1971 = vunpack.c.h.b16 %v1850
  %v1972 = vunpack.c.l.b16 %v1851
  %v1973 = vunpack.c.h.b16 %v1851
  %v1974 = vunpack.c.l.b16 %v1852
  %v1975 = vunpack.c.h.b16 %v1852
  %v1976 = vunpack.c.l.b16 %v1853
  %v1977 = vunpack.c.h.b16 %v1853
  %v1978 = vunpack.c.l.b16 %v1854
  %v1979 = vunpack.c.h.b16 %v1854
  %v1980 = vunpack.c.l.b16 %v1855
  %v1981 = vunpack.c.h.b16 %v1855
  %v1982 = vunpack.c.l.b16 %v1856
  %v1983 = vunpack.c.h.b16 %v1856
  %v1984 = vunpack.c.l.b16 %v1857
  %v1985 = vunpack.c.h.b16 %v1857
  %v1986 = vunpack.c.l.b16 %v1858
  %v1987 = vunpack.c.h.b16 %v1858
  %v1988 = vunpack.c.l.b16 %v1859
  %v1989 = vunpack.c.h.b16 %v1859
  %v1990 = vunpack.c.l.b16 %v1860
  %v1991 = vunpack.c.h.b16 %v1860
  %v1992 = vunpack.c.l.b16 %v1861
  %v1993 = vunpack.c.h.b16 %v1861
  %v1994 = vunpack.c.l.b16 %v1862
  %v1995 = vunpack.c.h.b16 %v1862
  %v1996 = vunpack.c.l.b16 %v1863
  %v1997 = vunpack.c.h.b16 %v1863
  %v1998 = vunpack.c.l.b16 %v1864
  %v1999 = vunpack.c.h.b16 %v1864
  %v2000 = vunpack.c.l.b16 %v1865
  %v2001 = vunpack.c.h.b16 %v1865
  %v2002 = vunpack.c.l.b16 %v1866
  %v2003 = vunpack.c.h.b16 %v1866
  %v2004 = vunpack.c.l.b16 %v1867
  %v2005 = vunpack.c.h.b16 %v1867
  %v2006 = vunpack.c.l.b16 %v1868
  %v2007 = vunpack.c.h.b16 %v1868
  %v2008 = vunpack.c.l.b16 %v1869
  %v2009 = vunpack.c.h.b16 %v1869
  %v2010 = vunpack.c.l.b16 %v1870
  %v2011 = vunpack.c.h.b16 %v1870
  %v2012 = vunpack.c.l.b16 %v1871
  %v2013 = vunpack.c.h.b16 %v1871
  %v2014 = vunpack.c.l.b16 %v1872
  %v2015 = vunpack.c.h.b16 %v1872
  %v2016 = vunpack.c.l.b16 %v1873
  %v2017 = vunpack.c.h.b16 %v1873
  %v2018 = vunpack.c.l.b16 %v1874
  %v2019 = vunpack.c.h.b16 %v1874
  %v2020 = vunpack.c.l.b16 %v1875
  %v2021 = vunpack.c.h.b16 %v1875
  %v2022 = vunpack.c.l.b16 %v1876
  %v2023 = vunpack.c.h.b16 %v1876
  %v2024 = vpack.c.b16 %v1930, %v1928
  %v2025 = vpack.c.b16 %v1931, %v1929
  %v2026 = vpack.c.b16 %v1934, %v1932
  %v2027 = vpack.c.b16 %v1935, %v1933
  %v2028 = vpack.c.b16 %v1938, %v1936
  %v2029 = vpack.c.b16 %v1939, %v1937
  %v2030 = vpack.c.b16 %v1942, %v1940
  %v2031 = vpack.c.b16 %v1943, %v1941
  %v2032 = vpack.c.b16 %v1946, %v1944
  %v2033 = vpack.c.b16 %v1947, %v1945
  %v2034 = vpack.c.b16 %v1950, %v1948
  %v2035 = vpack.c.b16 %v1951, %v1949
  %v2036 = vpack.c.b16 %v1954, %v1952
  %v2037 = vpack.c.b16 %v1955, %v1953
  %v2038 = vpack.c.b16 %v1958, %v1956
  %v2039 = vpack.c.b16 %v1959, %v1957
  %v2040 = vpack.c.b16 %v1962, %v1960
  %v2041 = vpack.c.b16 %v1963, %v1961
  %v2042 = vpack.c.b16 %v1966, %v1964
  %v2043 = vpack.c.b16 %v1967, %v1965
  %v2044 = vpack.c.b16 %v1970, %v1968
  %v2045 = vpack.c.b16 %v1971, %v1969
  %v2046 = vpack.c.b16 %v1974, %v1972
  %v2047 = vpack.c.b16 %v1975, %v1973
  %v2048 = vpack.c.b16 %v1978, %v1976
  %v2049 = vpack.c.b16 %v1979, %v1977
  %v2050 = vpack.c.b16 %v1982, %v1980
  %v2051 = vpack.c.b16 %v1983, %v1981
  %v2052 = vpack.c.b16 %v1986, %v1984
  %v2053 = vpack.c.b16 %v1987, %v1985
  %v2054 = vpack.c.b16 %v1990, %v1988
  %v2055 = vpack.c.b16 %v1991, %v1989
  %v2056 = vpack.c.b16 %v1994, %v1992
  %v2057 = vpack.c.b16 %v1995, %v1993
  %v2058 = vpack.c.b16 %v1998, %v1996
  %v2059 = vpack.c.b16 %v1999, %v1997
  %v2060 = vpack.c.b16 %v2002, %v2000
  %v2061 = vpack.c.b16 %v2003, %v2001
  %v2062 = vpack.c.b16 %v2006, %v2004
  %v2063 = vpack.c.b16 %v2007, %v2005
  %v2064 = vpack.c.b16 %v2010, %v2008
  %v2065 = vpack.c.b16 %v2011, %v2009
  %v2066 = vpack.c.b16 %v2014, %v2012
  %v2067 = vpack.c.b16 %v2015, %v2013
  %v2068 = vpack.c.b16 %v2018, %v2016
  %v2069 = vpack.c.b16 %v2019, %v2017
  %v2070 = vpack.c.b16 %v2022, %v2020
  %v2071 = vpack.c.b16 %v2023, %v2021
  %2120 = vmatprep.subr.bf16.mxu0 %v2025
  %2121 = vmatpush1.bf16.msra.mxu0 %v2024
  %2122 = vmatprep.subr.bf16.mxu0 %v2027
  %2123 = vmatpush1.bf16.msra.mxu0 %v2026
  %2124 = vmatprep.subr.bf16.mxu0 %v2029
  %2125 = vmatpush1.bf16.msra.mxu0 %v2028
  %2126 = vmatprep.subr.bf16.mxu0 %v2031
  %2127 = vmatpush1.bf16.msra.mxu0 %v2030
  %2128 = vmatprep.subr.bf16.mxu0 %v2033
  %2129 = vmatpush1.bf16.msra.mxu0 %v2032
  %2130 = vmatprep.subr.bf16.mxu0 %v2035
  %2131 = vmatpush1.bf16.msra.mxu0 %v2034
  %2132 = vmatprep.subr.bf16.mxu0 %v2037
  %2133 = vmatpush1.bf16.msra.mxu0 %v2036
  %2134 = vmatprep.subr.bf16.mxu0 %v2039
  %2135 = vmatpush1.bf16.msra.mxu0 %v2038
  %2136 = vmatprep.subr.bf16.mxu0 %v2041
  %2137 = vmatpush1.bf16.msra.mxu0 %v2040
  %2138 = vmatprep.subr.bf16.mxu0 %v2043
  %2139 = vmatpush1.bf16.msra.mxu0 %v2042
  %2140 = vmatprep.subr.bf16.mxu0 %v2045
  %2141 = vmatpush1.bf16.msra.mxu0 %v2044
  %2142 = vmatprep.subr.bf16.mxu0 %v2047
  %2143 = vmatpush1.bf16.msra.mxu0 %v2046
  %2144 = vmatprep.subr.bf16.mxu0 %v2049
  %2145 = vmatpush1.bf16.msra.mxu0 %v2048
  %2146 = vmatprep.subr.bf16.mxu0 %v2051
  %2147 = vmatpush1.bf16.msra.mxu0 %v2050
  %2148 = vmatprep.subr.bf16.mxu0 %v2053
  %2149 = vmatpush1.bf16.msra.mxu0 %v2052
  %2150 = vmatprep.subr.bf16.mxu0 %v2055
  %2151 = vmatpush1.bf16.msra.mxu0 %v2054
  %2152 = vmatprep.mubr.bf16.mxu0 %v1878
  %2153 = vmatmul.mubr.bf16.gmra.mrb[0].mxu0 %v1877
  %v2154 = vpop.f32.mrb[0].mxu0
  %v2155 = vadd.f32 0.0, %v2154
  %v2156 = vpop.f32.mrb[0].mxu0
  %v2157 = vadd.f32 0.0, %v2156
  %v2158 = vpop.f32.mrb[0].mxu0
  %v2159 = vadd.f32 0.0, %v2158
  %v2160 = vpop.f32.mrb[0].mxu0
  %v2161 = vadd.f32 0.0, %v2160
  %2162 = vdwg.mxu0
  %2163 = vmatprep.subr.bf16.mxu0 %v2057
  %2164 = vmatpush1.bf16.msra.mxu0 %v2056
  %2165 = vmatprep.subr.bf16.mxu0 %v2059
  %2166 = vmatpush1.bf16.msra.mxu0 %v2058
  %2167 = vmatprep.subr.bf16.mxu0 %v2061
  %2168 = vmatpush1.bf16.msra.mxu0 %v2060
  %2169 = vmatprep.subr.bf16.mxu0 %v2063
  %2170 = vmatpush1.bf16.msra.mxu0 %v2062
  %2171 = vmatprep.subr.bf16.mxu0 %v2065
  %2172 = vmatpush1.bf16.msra.mxu0 %v2064
  %2173 = vmatprep.subr.bf16.mxu0 %v2067
  %2174 = vmatpush1.bf16.msra.mxu0 %v2066
  %2175 = vmatprep.subr.bf16.mxu0 %v2069
  %2176 = vmatpush1.bf16.msra.mxu0 %v2068
  %2177 = vmatprep.subr.bf16.mxu0 %v2071
  %2178 = vmatpush1.bf16.msra.mxu0 %v2070
  %2179 = vmatprep.subr.bf16.mxu0 0
  %2180 = vmatpush1.bf16.msra.mxu0 0
  %2181 = vmatprep.subr.bf16.mxu0 0
  %2182 = vmatpush1.bf16.msra.mxu0 0
  %2183 = vmatprep.subr.bf16.mxu0 0
  %2184 = vmatpush1.bf16.msra.mxu0 0
  %2185 = vmatprep.subr.bf16.mxu0 0
  %2186 = vmatpush1.bf16.msra.mxu0 0
  %2187 = vmatprep.subr.bf16.mxu0 0
  %2188 = vmatpush1.bf16.msra.mxu0 0
  %2189 = vmatprep.subr.bf16.mxu0 0
  %2190 = vmatpush1.bf16.msra.mxu0 0
  %2191 = vmatprep.subr.bf16.mxu0 0
  %2192 = vmatpush1.bf16.msra.mxu0 0
  %2193 = vmatprep.subr.bf16.mxu0 0
  %2194 = vmatpush1.bf16.msra.mxu0 0
  %2195 = vmatprep.mubr.bf16.mxu0 0
  %2196 = vmatmul.mubr.bf16.gmra.mrb[0].mxu0 %v1879
  %v2197 = vpop.f32.mrb[0].mxu0
  %v2198 = vadd.f32 %v2155, %v2197
  %v2199 = vpop.f32.mrb[0].mxu0
  %v2200 = vadd.f32 %v2157, %v2199
  %v2201 = vpop.f32.mrb[0].mxu0
  %v2202 = vadd.f32 %v2159, %v2201
  %v2203 = vpop.f32.mrb[0].mxu0
  %v2204 = vadd.f32 %v2161, %v2203
  %2205 = vdwg.mxu0
  %2206 = vst [vmem:[#allocation5] sm:$0xff] %v2198
  %2207 = vst [vmem:[#allocation5 + $0x8] sm:$0xff] %v2200
  %2208 = vst [vmem:[#allocation5 + $0x10] sm:$0xff] %v2202
  %2209 = vst [vmem:[#allocation5 + $0x18] sm:$0xff] %v2204
  %v2210 = vld [vmem:[#allocation4 + $0x8] sm:$0xff]
  %v2211 = vld [vmem:[#allocation4 + $0x10] sm:$0xff]
  %v2212 = vld [vmem:[#allocation4 + $0x18] sm:$0xff]
  %2213 = vmatprep.subr.bf16.mxu0 %v2025
  %2214 = vmatpush1.bf16.msra.mxu0 %v2024
  %2215 = vmatprep.subr.bf16.mxu0 %v2027
  %2216 = vmatpush1.bf16.msra.mxu0 %v2026
  %2217 = vmatprep.subr.bf16.mxu0 %v2029
  %2218 = vmatpush1.bf16.msra.mxu0 %v2028
  %2219 = vmatprep.subr.bf16.mxu0 %v2031
  %2220 = vmatpush1.bf16.msra.mxu0 %v2030
  %2221 = vmatprep.subr.bf16.mxu0 %v2033
  %2222 = vmatpush1.bf16.msra.mxu0 %v2032
  %2223 = vmatprep.subr.bf16.mxu0 %v2035
  %2224 = vmatpush1.bf16.msra.mxu0 %v2034
  %2225 = vmatprep.subr.bf16.mxu0 %v2037
  %2226 = vmatpush1.bf16.msra.mxu0 %v2036
  %2227 = vmatprep.subr.bf16.mxu0 %v2039
  %2228 = vmatpush1.bf16.msra.mxu0 %v2038
  %2229 = vmatprep.subr.bf16.mxu0 %v2041
  %2230 = vmatpush1.bf16.msra.mxu0 %v2040
  %2231 = vmatprep.subr.bf16.mxu0 %v2043
  %2232 = vmatpush1.bf16.msra.mxu0 %v2042
  %2233 = vmatprep.subr.bf16.mxu0 %v2045
  %2234 = vmatpush1.bf16.msra.mxu0 %v2044
  %2235 = vmatprep.subr.bf16.mxu0 %v2047
  %2236 = vmatpush1.bf16.msra.mxu0 %v2046
  %2237 = vmatprep.subr.bf16.mxu0 %v2049
  %2238 = vmatpush1.bf16.msra.mxu0 %v2048
  %2239 = vmatprep.subr.bf16.mxu0 %v2051
  %2240 = vmatpush1.bf16.msra.mxu0 %v2050
  %2241 = vmatprep.subr.bf16.mxu0 %v2053
  %2242 = vmatpush1.bf16.msra.mxu0 %v2052
  %2243 = vmatprep.subr.bf16.mxu0 %v2055
  %2244 = vmatpush1.bf16.msra.mxu0 %v2054
  %2245 = vmatprep.mubr.bf16.mxu0 %v2211
  %2246 = vmatmul.mubr.bf16.gmra.mrb[0].mxu0 %v2210
  %v2247 = vpop.f32.mrb[0].mxu0
  %v2248 = vadd.f32 0.0, %v2247
  %v2249 = vpop.f32.mrb[0].mxu0
  %v2250 = vadd.f32 0.0, %v2249
  %v2251 = vpop.f32.mrb[0].mxu0
  %v2252 = vadd.f32 0.0, %v2251
  %v2253 = vpop.f32.mrb[0].mxu0
  %v2254 = vadd.f32 0.0, %v2253
  %2255 = vdwg.mxu0
  %2256 = vmatprep.subr.bf16.mxu0 %v2057
  %2257 = vmatpush1.bf16.msra.mxu0 %v2056
  %2258 = vmatprep.subr.bf16.mxu0 %v2059
  %2259 = vmatpush1.bf16.msra.mxu0 %v2058
  %2260 = vmatprep.subr.bf16.mxu0 %v2061
  %2261 = vmatpush1.bf16.msra.mxu0 %v2060
  %2262 = vmatprep.subr.bf16.mxu0 %v2063
  %2263 = vmatpush1.bf16.msra.mxu0 %v2062
  %2264 = vmatprep.subr.bf16.mxu0 %v2065
  %2265 = vmatpush1.bf16.msra.mxu0 %v2064
  %2266 = vmatprep.subr.bf16.mxu0 %v2067
  %2267 = vmatpush1.bf16.msra.mxu0 %v2066
  %2268 = vmatprep.subr.bf16.mxu0 %v2069
  %2269 = vmatpush1.bf16.msra.mxu0 %v2068
  %2270 = vmatprep.subr.bf16.mxu0 %v2071
  %2271 = vmatpush1.bf16.msra.mxu0 %v2070
  %2272 = vmatprep.subr.bf16.mxu0 0
  %2273 = vmatpush1.bf16.msra.mxu0 0
  %2274 = vmatprep.subr.bf16.mxu0 0
  %2275 = vmatpush1.bf16.msra.mxu0 0
  %2276 = vmatprep.subr.bf16.mxu0 0
  %2277 = vmatpush1.bf16.msra.mxu0 0
  %2278 = vmatprep.subr.bf16.mxu0 0
  %2279 = vmatpush1.bf16.msra.mxu0 0
  %2280 = vmatprep.subr.bf16.mxu0 0
  %2281 = vmatpush1.bf16.msra.mxu0 0
  %2282 = vmatprep.subr.bf16.mxu0 0
  %2283 = vmatpush1.bf16.msra.mxu0 0
  %2284 = vmatprep.subr.bf16.mxu0 0
  %2285 = vmatpush1.bf16.msra.mxu0 0
  %2286 = vmatprep.subr.bf16.mxu0 0
  %2287 = vmatpush1.bf16.msra.mxu0 0
  %2288 = vmatprep.mubr.bf16.mxu0 0
  %2289 = vmatmul.mubr.bf16.gmra.mrb[0].mxu0 %v2212
  %v2290 = vpop.f32.mrb[0].mxu0
  %v2291 = vadd.f32 %v2248, %v2290
  %v2292 = vpop.f32.mrb[0].mxu0
  %v2293 = vadd.f32 %v2250, %v2292
  %v2294 = vpop.f32.mrb[0].mxu0
  %v2295 = vadd.f32 %v2252, %v2294
  %v2296 = vpop.f32.mrb[0].mxu0
  %v2297 = vadd.f32 %v2254, %v2296
  %2298 = vdwg.mxu0
  %v2299 = vld [vmem:[#allocation5] sm:$0xff]
  %v2300 = vld [vmem:[#allocation5 + $0x8] sm:$0xff]
  %v2301 = vld [vmem:[#allocation5 + $0x10] sm:$0xff]
  %v2302 = vld [vmem:[#allocation5 + $0x18] sm:$0xff]
  %v2303 = vmax.f32 %v2299, %v2291
  %v2304 = vmax.f32 %v2300, %v2293
  %v2305 = vmax.f32 %v2301, %v2295
  %v2306 = vmax.f32 %v2302, %v2297
  %v2307 = vld [vmem:[%s8] sm:$0x3]
  %v2309 = vlaneseq
  %v2310 = vshrl.u32 %v2309, 7
  %v2311 = vsub.s32 0, %v2310
  %v2312 = vrot.slane %v2307, %v2311
  %v2313 = vlaneseq
  %v2314 = vshrl.u32 %v2313, 7
  %v2315 = vsub.s32 1, %v2314
  %v2316 = vrot.slane %v2307, %v2315
  %v2319 = vadd.f32 %v2303, %v2312
  %v2320 = vadd.f32 %v2304, %v2316
  %v2321 = vadd.f32 %v2305, %v2312
  %v2322 = vadd.f32 %v2306, %v2316
  %v2323 = vmax.f32 %v2319, 0.0
  %v2324 = vmax.f32 %v2320, 0.0
  %v2325 = vmax.f32 %v2321, 0.0
  %v2326 = vmax.f32 %v2322, 0.0
  %v2327 = vpack.c.bf16 %v2325, %v2323
  %v2328 = vpack.c.bf16 %v2326, %v2324
  %v2329 = vld [vmem:[%s9] sm:$0xff]
  %v2330 = vld [vmem:[%s9 + $0x8] sm:$0xff]
  %v2331 = vld [vmem:[%s9 + $0x10] sm:$0xff]
  %v2332 = vld [vmem:[%s9 + $0x18] sm:$0xff]
  %v2333 = vld [vmem:[%s9 + $0x20] sm:$0xff]
  %v2334 = vld [vmem:[%s9 + $0x28] sm:$0xff]
  %v2335 = vld [vmem:[%s9 + $0x30] sm:$0xff]
  %v2336 = vld [vmem:[%s9 + $0x38] sm:$0xff]
  %v2337 = vld [vmem:[%s9 + $0x40] sm:$0xff]
  %v2338 = vld [vmem:[%s9 + $0x48] sm:$0xff]
  %v2339 = vld [vmem:[%s9 + $0x50] sm:$0xff]
  %v2340 = vld [vmem:[%s9 + $0x58] sm:$0xff]
  %v2341 = vld [vmem:[%s9 + $0x60] sm:$0xff]
  %v2342 = vld [vmem:[%s9 + $0x68] sm:$0xff]
  %v2343 = vld [vmem:[%s9 + $0x70] sm:$0xff]
  %v2344 = vld [vmem:[%s9 + $0x78] sm:$0xff]
  %v2345 = vld [vmem:[%s9 + $0x80] sm:$0xff]
  %v2346 = vld [vmem:[%s9 + $0x88] sm:$0xff]
  %v2347 = vld [vmem:[%s9 + $0x90] sm:$0xff]
  %v2348 = vld [vmem:[%s9 + $0x98] sm:$0xff]
  %v2349 = vld [vmem:[%s9 + $0xa0] sm:$0xff]
  %v2350 = vld [vmem:[%s9 + $0xa8] sm:$0xff]
  %v2351 = vld [vmem:[%s9 + $0xb0] sm:$0xff]
  %v2352 = vld [vmem:[%s9 + $0xb8] sm:$0xff]
  %v2353 = vld [vmem:[%s9 + $0xc0] sm:$0xff]
  %v2354 = vld [vmem:[%s9 + $0xc8] sm:$0xff]
  %v2355 = vld [vmem:[%s9 + $0xd0] sm:$0xff]
  %v2356 = vld [vmem:[%s9 + $0xd8] sm:$0xff]
  %v2357 = vld [vmem:[%s9 + $0xe0] sm:$0xff]
  %v2358 = vld [vmem:[%s9 + $0xe8] sm:$0xff]
  %v2359 = vld [vmem:[%s9 + $0xf0] sm:$0xff]
  %v2360 = vld [vmem:[%s9 + $0xf8] sm:$0xff]
  %v2361 = vld [vmem:[%s9 + $0x100] sm:$0xff]
  %v2362 = vld [vmem:[%s9 + $0x108] sm:$0xff]
  %v2363 = vld [vmem:[%s9 + $0x110] sm:$0xff]
  %v2364 = vld [vmem:[%s9 + $0x118] sm:$0xff]
  %v2365 = vld [vmem:[%s9 + $0x120] sm:$0xff]
  %v2366 = vld [vmem:[%s9 + $0x128] sm:$0xff]
  %v2367 = vld [vmem:[%s9 + $0x130] sm:$0xff]
  %v2368 = vld [vmem:[%s9 + $0x138] sm:$0xff]
  %v2369 = vld [vmem:[%s9 + $0x140] sm:$0xff]
  %v2370 = vld [vmem:[%s9 + $0x148] sm:$0xff]
  %v2371 = vld [vmem:[%s9 + $0x150] sm:$0xff]
  %v2372 = vld [vmem:[%s9 + $0x158] sm:$0xff]
  %v2373 = vld [vmem:[%s9 + $0x160] sm:$0xff]
  %v2374 = vld [vmem:[%s9 + $0x168] sm:$0xff]
  %v2375 = vld [vmem:[%s9 + $0x170] sm:$0xff]
  %v2376 = vld [vmem:[%s9 + $0x178] sm:$0xff]
  %v2377 = vld [vmem:[%s9 + $0x180] sm:$0xff]
  %v2378 = vld [vmem:[%s9 + $0x188] sm:$0xff]
  %v2379 = vld [vmem:[%s9 + $0x190] sm:$0xff]
  %v2380 = vld [vmem:[%s9 + $0x198] sm:$0xff]
  %v2381 = vld [vmem:[%s9 + $0x1a0] sm:$0xff]
  %v2382 = vld [vmem:[%s9 + $0x1a8] sm:$0xff]
  %v2383 = vld [vmem:[%s9 + $0x1b0] sm:$0xff]
  %v2384 = vld [vmem:[%s9 + $0x1b8] sm:$0xff]
  %v2385 = vld [vmem:[%s9 + $0x1c0] sm:$0xff]
  %v2386 = vld [vmem:[%s9 + $0x1c8] sm:$0xff]
  %v2387 = vld [vmem:[%s9 + $0x1d0] sm:$0xff]
  %v2388 = vld [vmem:[%s9 + $0x1d8] sm:$0xff]
  %v2389 = vld [vmem:[%s9 + $0x1e0] sm:$0xff]
  %v2390 = vld [vmem:[%s9 + $0x1e8] sm:$0xff]
  %v2391 = vld [vmem:[%s9 + $0x1f0] sm:$0xff]
  %v2392 = vld [vmem:[%s9 + $0x1f8] sm:$0xff]
  %v2393 = vld [vmem:[%s10] sm:$0xf]
  %v2395 = vlaneseq
  %v2396 = vshrl.u32 %v2395, 7
  %v2397 = vsub.s32 0, %v2396
  %v2398 = vrot.slane %v2393, %v2397
  %v2399 = vlaneseq
  %v2400 = vshrl.u32 %v2399, 7
  %v2401 = vsub.s32 1, %v2400
  %v2402 = vrot.slane %v2393, %v2401
  %v2403 = vlaneseq
  %v2404 = vshrl.u32 %v2403, 7
  %v2405 = vsub.s32 2, %v2404
  %v2406 = vrot.slane %v2393, %v2405
  %v2407 = vlaneseq
  %v2408 = vshrl.u32 %v2407, 7
  %v2409 = vsub.s32 3, %v2408
  %v2410 = vrot.slane %v2393, %v2409
  %v2479 = vunpack.c.l.b16 %v2329
  %v2480 = vunpack.c.h.b16 %v2329
  %v2481 = vunpack.c.l.b16 %v2330
  %v2482 = vunpack.c.h.b16 %v2330
  %v2483 = vunpack.c.l.b16 %v2331
  %v2484 = vunpack.c.h.b16 %v2331
  %v2485 = vunpack.c.l.b16 %v2332
  %v2486 = vunpack.c.h.b16 %v2332
  %v2487 = vunpack.c.l.b16 %v2333
  %v2488 = vunpack.c.h.b16 %v2333
  %v2489 = vunpack.c.l.b16 %v2334
  %v2490 = vunpack.c.h.b16 %v2334
  %v2491 = vunpack.c.l.b16 %v2335
  %v2492 = vunpack.c.h.b16 %v2335
  %v2493 = vunpack.c.l.b16 %v2336
  %v2494 = vunpack.c.h.b16 %v2336
  %v2495 = vunpack.c.l.b16 %v2337
  %v2496 = vunpack.c.h.b16 %v2337
  %v2497 = vunpack.c.l.b16 %v2338
  %v2498 = vunpack.c.h.b16 %v2338
  %v2499 = vunpack.c.l.b16 %v2339
  %v2500 = vunpack.c.h.b16 %v2339
  %v2501 = vunpack.c.l.b16 %v2340
  %v2502 = vunpack.c.h.b16 %v2340
  %v2503 = vunpack.c.l.b16 %v2341
  %v2504 = vunpack.c.h.b16 %v2341
  %v2505 = vunpack.c.l.b16 %v2342
  %v2506 = vunpack.c.h.b16 %v2342
  %v2507 = vunpack.c.l.b16 %v2343
  %v2508 = vunpack.c.h.b16 %v2343
  %v2509 = vunpack.c.l.b16 %v2344
  %v2510 = vunpack.c.h.b16 %v2344
  %v2511 = vunpack.c.l.b16 %v2345
  %v2512 = vunpack.c.h.b16 %v2345
  %v2513 = vunpack.c.l.b16 %v2346
  %v2514 = vunpack.c.h.b16 %v2346
  %v2515 = vunpack.c.l.b16 %v2347
  %v2516 = vunpack.c.h.b16 %v2347
  %v2517 = vunpack.c.l.b16 %v2348
  %v2518 = vunpack.c.h.b16 %v2348
  %v2519 = vunpack.c.l.b16 %v2349
  %v2520 = vunpack.c.h.b16 %v2349
  %v2521 = vunpack.c.l.b16 %v2350
  %v2522 = vunpack.c.h.b16 %v2350
  %v2523 = vunpack.c.l.b16 %v2351
  %v2524 = vunpack.c.h.b16 %v2351
  %v2525 = vunpack.c.l.b16 %v2352
  %v2526 = vunpack.c.h.b16 %v2352
  %v2527 = vunpack.c.l.b16 %v2353
  %v2528 = vunpack.c.h.b16 %v2353
  %v2529 = vunpack.c.l.b16 %v2354
  %v2530 = vunpack.c.h.b16 %v2354
  %v2531 = vunpack.c.l.b16 %v2355
  %v2532 = vunpack.c.h.b16 %v2355
  %v2533 = vunpack.c.l.b16 %v2356
  %v2534 = vunpack.c.h.b16 %v2356
  %v2535 = vunpack.c.l.b16 %v2357
  %v2536 = vunpack.c.h.b16 %v2357
  %v2537 = vunpack.c.l.b16 %v2358
  %v2538 = vunpack.c.h.b16 %v2358
  %v2539 = vunpack.c.l.b16 %v2359
  %v2540 = vunpack.c.h.b16 %v2359
  %v2541 = vunpack.c.l.b16 %v2360
  %v2542 = vunpack.c.h.b16 %v2360
  %v2543 = vunpack.c.l.b16 %v2361
  %v2544 = vunpack.c.h.b16 %v2361
  %v2545 = vunpack.c.l.b16 %v2362
  %v2546 = vunpack.c.h.b16 %v2362
  %v2547 = vunpack.c.l.b16 %v2363
  %v2548 = vunpack.c.h.b16 %v2363
  %v2549 = vunpack.c.l.b16 %v2364
  %v2550 = vunpack.c.h.b16 %v2364
  %v2551 = vunpack.c.l.b16 %v2365
  %v2552 = vunpack.c.h.b16 %v2365
  %v2553 = vunpack.c.l.b16 %v2366
  %v2554 = vunpack.c.h.b16 %v2366
  %v2555 = vunpack.c.l.b16 %v2367
  %v2556 = vunpack.c.h.b16 %v2367
  %v2557 = vunpack.c.l.b16 %v2368
  %v2558 = vunpack.c.h.b16 %v2368
  %v2559 = vunpack.c.l.b16 %v2369
  %v2560 = vunpack.c.h.b16 %v2369
  %v2561 = vunpack.c.l.b16 %v2370
  %v2562 = vunpack.c.h.b16 %v2370
  %v2563 = vunpack.c.l.b16 %v2371
  %v2564 = vunpack.c.h.b16 %v2371
  %v2565 = vunpack.c.l.b16 %v2372
  %v2566 = vunpack.c.h.b16 %v2372
  %v2567 = vunpack.c.l.b16 %v2373
  %v2568 = vunpack.c.h.b16 %v2373
  %v2569 = vunpack.c.l.b16 %v2374
  %v2570 = vunpack.c.h.b16 %v2374
  %v2571 = vunpack.c.l.b16 %v2375
  %v2572 = vunpack.c.h.b16 %v2375
  %v2573 = vunpack.c.l.b16 %v2376
  %v2574 = vunpack.c.h.b16 %v2376
  %v2575 = vunpack.c.l.b16 %v2377
  %v2576 = vunpack.c.h.b16 %v2377
  %v2577 = vunpack.c.l.b16 %v2378
  %v2578 = vunpack.c.h.b16 %v2378
  %v2579 = vunpack.c.l.b16 %v2379
  %v2580 = vunpack.c.h.b16 %v2379
  %v2581 = vunpack.c.l.b16 %v2380
  %v2582 = vunpack.c.h.b16 %v2380
  %v2583 = vunpack.c.l.b16 %v2381
  %v2584 = vunpack.c.h.b16 %v2381
  %v2585 = vunpack.c.l.b16 %v2382
  %v2586 = vunpack.c.h.b16 %v2382
  %v2587 = vunpack.c.l.b16 %v2383
  %v2588 = vunpack.c.h.b16 %v2383
  %v2589 = vunpack.c.l.b16 %v2384
  %v2590 = vunpack.c.h.b16 %v2384
  %v2591 = vunpack.c.l.b16 %v2385
  %v2592 = vunpack.c.h.b16 %v2385
  %v2593 = vunpack.c.l.b16 %v2386
  %v2594 = vunpack.c.h.b16 %v2386
  %v2595 = vunpack.c.l.b16 %v2387
  %v2596 = vunpack.c.h.b16 %v2387
  %v2597 = vunpack.c.l.b16 %v2388
  %v2598 = vunpack.c.h.b16 %v2388
  %v2599 = vunpack.c.l.b16 %v2389
  %v2600 = vunpack.c.h.b16 %v2389
  %v2601 = vunpack.c.l.b16 %v2390
  %v2602 = vunpack.c.h.b16 %v2390
  %v2603 = vunpack.c.l.b16 %v2391
  %v2604 = vunpack.c.h.b16 %v2391
  %v2605 = vunpack.c.l.b16 %v2392
  %v2606 = vunpack.c.h.b16 %v2392
  %v2607 = vpack.c.b16 %v2483, %v2479
  %v2608 = vpack.c.b16 %v2484, %v2480
  %v2609 = vpack.c.b16 %v2485, %v2481
  %v2610 = vpack.c.b16 %v2486, %v2482
  %v2611 = vpack.c.b16 %v2491, %v2487
  %v2612 = vpack.c.b16 %v2492, %v2488
  %v2613 = vpack.c.b16 %v2493, %v2489
  %v2614 = vpack.c.b16 %v2494, %v2490
  %v2615 = vpack.c.b16 %v2499, %v2495
  %v2616 = vpack.c.b16 %v2500, %v2496
  %v2617 = vpack.c.b16 %v2501, %v2497
  %v2618 = vpack.c.b16 %v2502, %v2498
  %v2619 = vpack.c.b16 %v2507, %v2503
  %v2620 = vpack.c.b16 %v2508, %v2504
  %v2621 = vpack.c.b16 %v2509, %v2505
  %v2622 = vpack.c.b16 %v2510, %v2506
  %v2623 = vpack.c.b16 %v2515, %v2511
  %v2624 = vpack.c.b16 %v2516, %v2512
  %v2625 = vpack.c.b16 %v2517, %v2513
  %v2626 = vpack.c.b16 %v2518, %v2514
  %v2627 = vpack.c.b16 %v2523, %v2519
  %v2628 = vpack.c.b16 %v2524, %v2520
  %v2629 = vpack.c.b16 %v2525, %v2521
  %v2630 = vpack.c.b16 %v2526, %v2522
  %v2631 = vpack.c.b16 %v2531, %v2527
  %v2632 = vpack.c.b16 %v2532, %v2528
  %v2633 = vpack.c.b16 %v2533, %v2529
  %v2634 = vpack.c.b16 %v2534, %v2530
  %v2635 = vpack.c.b16 %v2539, %v2535
  %v2636 = vpack.c.b16 %v2540, %v2536
  %v2637 = vpack.c.b16 %v2541, %v2537
  %v2638 = vpack.c.b16 %v2542, %v2538
  %v2639 = vpack.c.b16 %v2547, %v2543
  %v2640 = vpack.c.b16 %v2548, %v2544
  %v2641 = vpack.c.b16 %v2549, %v2545
  %v2642 = vpack.c.b16 %v2550, %v2546
  %v2643 = vpack.c.b16 %v2555, %v2551
  %v2644 = vpack.c.b16 %v2556, %v2552
  %v2645 = vpack.c.b16 %v2557, %v2553
  %v2646 = vpack.c.b16 %v2558, %v2554
  %v2647 = vpack.c.b16 %v2563, %v2559
  %v2648 = vpack.c.b16 %v2564, %v2560
  %v2649 = vpack.c.b16 %v2565, %v2561
  %v2650 = vpack.c.b16 %v2566, %v2562
  %v2651 = vpack.c.b16 %v2571, %v2567
  %v2652 = vpack.c.b16 %v2572, %v2568
  %v2653 = vpack.c.b16 %v2573, %v2569
  %v2654 = vpack.c.b16 %v2574, %v2570
  %v2655 = vpack.c.b16 %v2579, %v2575
  %v2656 = vpack.c.b16 %v2580, %v2576
  %v2657 = vpack.c.b16 %v2581, %v2577
  %v2658 = vpack.c.b16 %v2582, %v2578
  %v2659 = vpack.c.b16 %v2587, %v2583
  %v2660 = vpack.c.b16 %v2588, %v2584
  %v2661 = vpack.c.b16 %v2589, %v2585
  %v2662 = vpack.c.b16 %v2590, %v2586
  %v2663 = vpack.c.b16 %v2595, %v2591
  %v2664 = vpack.c.b16 %v2596, %v2592
  %v2665 = vpack.c.b16 %v2597, %v2593
  %v2666 = vpack.c.b16 %v2598, %v2594
  %v2667 = vpack.c.b16 %v2603, %v2599
  %v2668 = vpack.c.b16 %v2604, %v2600
  %v2669 = vpack.c.b16 %v2605, %v2601
  %v2670 = vpack.c.b16 %v2606, %v2602
  %2735 = vmatprep.subr.bf16.mxu0 %v2608
  %2736 = vmatpush1.bf16.msra.mxu0 %v2607
  %2737 = vmatprep.subr.bf16.mxu0 %v2612
  %2738 = vmatpush1.bf16.msra.mxu0 %v2611
  %2739 = vmatprep.subr.bf16.mxu0 %v2616
  %2740 = vmatpush1.bf16.msra.mxu0 %v2615
  %2741 = vmatprep.subr.bf16.mxu0 %v2620
  %2742 = vmatpush1.bf16.msra.mxu0 %v2619
  %2743 = vmatprep.subr.bf16.mxu0 %v2624
  %2744 = vmatpush1.bf16.msra.mxu0 %v2623
  %2745 = vmatprep.subr.bf16.mxu0 %v2628
  %2746 = vmatpush1.bf16.msra.mxu0 %v2627
  %2747 = vmatprep.subr.bf16.mxu0 %v2632
  %2748 = vmatpush1.bf16.msra.mxu0 %v2631
  %2749 = vmatprep.subr.bf16.mxu0 %v2636
  %2750 = vmatpush1.bf16.msra.mxu0 %v2635
  %2751 = vmatprep.subr.bf16.mxu0 %v2640
  %2752 = vmatpush1.bf16.msra.mxu0 %v2639
  %2753 = vmatprep.subr.bf16.mxu0 %v2644
  %2754 = vmatpush1.bf16.msra.mxu0 %v2643
  %2755 = vmatprep.subr.bf16.mxu0 %v2648
  %2756 = vmatpush1.bf16.msra.mxu0 %v2647
  %2757 = vmatprep.subr.bf16.mxu0 %v2652
  %2758 = vmatpush1.bf16.msra.mxu0 %v2651
  %2759 = vmatprep.subr.bf16.mxu0 %v2656
  %2760 = vmatpush1.bf16.msra.mxu0 %v2655
  %2761 = vmatprep.subr.bf16.mxu0 %v2660
  %2762 = vmatpush1.bf16.msra.mxu0 %v2659
  %2763 = vmatprep.subr.bf16.mxu0 %v2664
  %2764 = vmatpush1.bf16.msra.mxu0 %v2663
  %2765 = vmatprep.subr.bf16.mxu0 %v2668
  %2766 = vmatpush1.bf16.msra.mxu0 %v2667
  %2767 = vmatprep.mubr.bf16.mxu0 %v2328
  %2768 = vmatmul.mubr.bf16.gmra.mrb[0].mxu0 %v2327
  %v2769 = vpop.f32.mrb[0].mxu0
  %v2770 = vadd.f32 %v2398, %v2769
  %v2771 = vpop.f32.mrb[0].mxu0
  %v2772 = vadd.f32 %v2402, %v2771
  %v2773 = vpop.f32.mrb[0].mxu0
  %v2774 = vadd.f32 %v2398, %v2773
  %v2775 = vpop.f32.mrb[0].mxu0
  %v2776 = vadd.f32 %v2402, %v2775
  %2777 = vdwg.mxu0
  %2778 = vmatprep.subr.bf16.mxu0 %v2610
  %2779 = vmatpush1.bf16.msra.mxu0 %v2609
  %2780 = vmatprep.subr.bf16.mxu0 %v2614
  %2781 = vmatpush1.bf16.msra.mxu0 %v2613
  %2782 = vmatprep.subr.bf16.mxu0 %v2618
  %2783 = vmatpush1.bf16.msra.mxu0 %v2617
  %2784 = vmatprep.subr.bf16.mxu0 %v2622
  %2785 = vmatpush1.bf16.msra.mxu0 %v2621
  %2786 = vmatprep.subr.bf16.mxu0 %v2626
  %2787 = vmatpush1.bf16.msra.mxu0 %v2625
  %2788 = vmatprep.subr.bf16.mxu0 %v2630
  %2789 = vmatpush1.bf16.msra.mxu0 %v2629
  %2790 = vmatprep.subr.bf16.mxu0 %v2634
  %2791 = vmatpush1.bf16.msra.mxu0 %v2633
  %2792 = vmatprep.subr.bf16.mxu0 %v2638
  %2793 = vmatpush1.bf16.msra.mxu0 %v2637
  %2794 = vmatprep.subr.bf16.mxu0 %v2642
  %2795 = vmatpush1.bf16.msra.mxu0 %v2641
  %2796 = vmatprep.subr.bf16.mxu0 %v2646
  %2797 = vmatpush1.bf16.msra.mxu0 %v2645
  %2798 = vmatprep.subr.bf16.mxu0 %v2650
  %2799 = vmatpush1.bf16.msra.mxu0 %v2649
  %2800 = vmatprep.subr.bf16.mxu0 %v2654
  %2801 = vmatpush1.bf16.msra.mxu0 %v2653
  %2802 = vmatprep.subr.bf16.mxu0 %v2658
  %2803 = vmatpush1.bf16.msra.mxu0 %v2657
  %2804 = vmatprep.subr.bf16.mxu0 %v2662
  %2805 = vmatpush1.bf16.msra.mxu0 %v2661
  %2806 = vmatprep.subr.bf16.mxu0 %v2666
  %2807 = vmatpush1.bf16.msra.mxu0 %v2665
  %2808 = vmatprep.subr.bf16.mxu0 %v2670
  %2809 = vmatpush1.bf16.msra.mxu0 %v2669
  %2810 = vmatprep.mubr.bf16.mxu0 %v2328
  %2811 = vmatmul.mubr.bf16.gmra.mrb[0].mxu0 %v2327
  %v2812 = vpop.f32.mrb[0].mxu0
  %v2813 = vadd.f32 %v2406, %v2812
  %v2814 = vpop.f32.mrb[0].mxu0
  %v2815 = vadd.f32 %v2410, %v2814
  %v2816 = vpop.f32.mrb[0].mxu0
  %v2817 = vadd.f32 %v2406, %v2816
  %v2818 = vpop.f32.mrb[0].mxu0
  %v2819 = vadd.f32 %v2410, %v2818
  %2820 = vdwg.mxu0
  %v2821 = vmax.f32 %v2770, 0.0
  %v2822 = vmax.f32 %v2772, 0.0
  %v2823 = vmax.f32 %v2813, 0.0
  %v2824 = vmax.f32 %v2815, 0.0
  %v2825 = vmax.f32 %v2774, 0.0
  %v2826 = vmax.f32 %v2776, 0.0
  %v2827 = vmax.f32 %v2817, 0.0
  %v2828 = vmax.f32 %v2819, 0.0
  %v2829 = vld [vmem:[%s11] sm:$0xf]
  %v2831 = vlaneseq
  %v2832 = vshrl.u32 %v2831, 7
  %v2833 = vsub.s32 0, %v2832
  %v2834 = vrot.slane %v2829, %v2833
  %v2835 = vlaneseq
  %v2836 = vshrl.u32 %v2835, 7
  %v2837 = vsub.s32 1, %v2836
  %v2838 = vrot.slane %v2829, %v2837
  %v2839 = vlaneseq
  %v2840 = vshrl.u32 %v2839, 7
  %v2841 = vsub.s32 2, %v2840
  %v2842 = vrot.slane %v2829, %v2841
  %v2843 = vlaneseq
  %v2844 = vshrl.u32 %v2843, 7
  %v2845 = vsub.s32 3, %v2844
  %v2846 = vrot.slane %v2829, %v2845
  %v2851 = vmul.f32 %v2821, %v2834
  %v2852 = vmul.f32 %v2822, %v2838
  %v2853 = vmul.f32 %v2823, %v2842
  %v2854 = vmul.f32 %v2824, %v2846
  %v2855 = vmul.f32 %v2825, %v2834
  %v2856 = vmul.f32 %v2826, %v2838
  %v2857 = vmul.f32 %v2827, %v2842
  %v2858 = vmul.f32 %v2828, %v2846
  %v2859 = vadd.f32 %v2851, %v2852
  %v2860 = vadd.f32 %v2859, %v2853
  %v2861 = vadd.f32 %v2860, %v2854
  %2862 = vadd.xlane.f32.xlu0 %v2861
  %v2863 = vpop.xlane.xlu0 %2862
  %v2864 = vadd.f32 %v2855, %v2856
  %v2865 = vadd.f32 %v2864, %v2857
  %v2866 = vadd.f32 %v2865, %v2858
  %2867 = vadd.xlane.f32.xlu0 %v2866
  %v2868 = vpop.xlane.xlu0 %2867
  %v2869 = vld [vmem:[#allocation6] sm:$0x1]
  %v2871 = vlaneseq
  %v2872 = vshrl.u32 %v2871, 7
  %v2873 = vsub.s32 0, %v2872
  %v2874 = vrot.slane %v2869, %v2873
  %v2876 = vadd.f32 %v2863, %v2874
  %v2877 = vadd.f32 %v2868, %v2874
  %vm2878 = vcmask 7168
  %2879 = vst.msk [vmem:[%s13] sm:$0xff] %vm2878, %v2876
  %2880 = vst.msk [vmem:[%s13 + $0x8] sm:$0xff] %vm2878, %v2877
  // Predicated region
  $region54: #{_lambda_.1} parent=0 // pred_check
    _
  $region55: #{_lambda_.1} parent=0 // pred_check_branch
    %2882 = sbr.rel (0) target = $region57
  $region56: #{_lambda_.1} parent=0 // pred_region
    _
  $region57: #{_lambda_.1} parent=0 // pred_fallthru
    _
  // Predicated region
  $region58: #{_lambda_.1} parent=0 // pred_check
    _
  $region59: #{_lambda_.1} parent=0 // pred_check_branch
    %2884 = sbr.rel (0) target = $region61
  $region60: #{_lambda_.1} parent=0 // pred_region
    _
  $region61: #{_lambda_.1} parent=0 // pred_fallthru
    _

</llo_original>
